<compile_context>
chip_gen: v7x
topology: tpu7x:2x2x1
jax: 0.10.0
libtpu: 0.0.40
codegen_flags: <defaults>
</compile_context>

<pallas_src>
import functools

import jax
import jax.numpy as jnp
from jax import lax
from jax.experimental import pallas as pl
from jax.experimental.pallas import tpu as pltpu

BN_EPS = 1e-5
LANE = 128
SUBLANE = 8


def _cdiv(a, b):
    return -(-a // b)


def _round_up(x, m):
    return _cdiv(x, m) * m


# --------------------------------------------------------------------------
# Kernels
# --------------------------------------------------------------------------
def _conv_pass_kernel(body_ref, h0_ref, h1_ref, h2_ref, w_ref, sc_ref, sh_ref,
                      mask_ref, y_ref, stats_ref, *, apply_act, compute_dtype):
    """Fused (optional BN+ReLU of previous layer) + 3x3 valid conv + BN partial stats.

    body_ref : (1, TM, Cin)        flat input rows of this tile
    h*_ref   : (1, W, Cin)         3 halo row-blocks (next 3 image rows)
    w_ref    : (9, Cin, Coutp)     conv taps, k = dy*3 + dx
    sc_ref   : (1, Cin)            BN scale of previous layer (if apply_act)
    sh_ref   : (1, Cin)            BN shift of previous layer (if apply_act)
    mask_ref : (1, TM, 1)          1.0 for valid output pixels, 0.0 for padded
    y_ref    : (1, TM, Coutp)      pre-BN conv output of this layer
    stats_ref: (1, 1, 2, Coutp)    per-tile (sum, sum-of-squares) over valid pixels
    """
    tm = body_ref.shape[1]
    w_stride = h0_ref.shape[1]

    # Assemble the (TM + 3*W, Cin) input slab for this tile (body + row halo).
    slab = jnp.concatenate(
        [body_ref[0], h0_ref[0], h1_ref[0], h2_ref[0]], axis=0).astype(jnp.float32)
    if apply_act:
        # Fused finalize of the previous layer: BN scale/shift + ReLU.
        slab = jnp.maximum(slab * sc_ref[...] + sh_ref[...], 0.0)
    slab = slab.astype(compute_dtype)

    # 3x3 'valid' conv as 9 shifted matmuls over the flattened row-major layout:
    # output flat position q reads input flat positions q + dy*W + dx.
    acc = None
    for dy in range(3):
        for dx in range(3):
            off = dy * w_stride + dx
            lhs = slab[off:off + tm, :]
            contrib = jnp.dot(lhs, w_ref[dy * 3 + dx],
                              preferred_element_type=jnp.float32)
            acc = contrib if acc is None else acc + contrib

    y_ref[0] = acc.astype(y_ref.dtype)

    # Streamed BatchNorm statistics: masked per-channel sum / sum-of-squares.
    ym = acc * mask_ref[0]
    s = jnp.sum(ym, axis=0, keepdims=True)
    ss = jnp.sum(ym * ym, axis=0, keepdims=True)
    stats_ref[0, 0] = jnp.concatenate([s, ss], axis=0)


def _bn_relu_kernel(y_ref, sc_ref, sh_ref, o_ref):
    """Finalize pass: per-channel scale/shift (folded BN) + ReLU on one tile."""
    y = y_ref[0].astype(jnp.float32)
    o_ref[0] = jnp.maximum(y * sc_ref[...] + sh_ref[...], 0.0).astype(o_ref.dtype)


# --------------------------------------------------------------------------
# Wrappers around pallas_call
# --------------------------------------------------------------------------
def _conv_pass(x_flat, w_taps, scale_in, shift_in, *, w_stride, oh, ow,
               n_tiles, rows_per_tile, apply_act, compute_dtype, out_dtype):
    n, l_pad, cin = x_flat.shape
    cout_p = w_taps.shape[-1]
    tm = rows_per_tile * w_stride
    assert l_pad >= n_tiles * tm + 3 * w_stride

    # Validity mask (1.0 for real output pixels, 0.0 for row/col padding) so
    # padded positions never bias the BatchNorm statistics.
    rows = jnp.arange(n_tiles * rows_per_tile)
    cols = jnp.arange(w_stride)
    mask = ((rows[:, None] < oh) & (cols[None, :] < ow)).astype(jnp.float32)
    mask = mask.reshape(1, n_tiles * tm, 1)

    kernel = functools.partial(_conv_pass_kernel, apply_act=apply_act,
                               compute_dtype=compute_dtype)

    body_idx = lambda b, i: (b, i, 0)
    halo_specs = [
        pl.BlockSpec((1, w_stride, cin),
                     (lambda b, i, k=k: (b, (i + 1) * rows_per_tile + k, 0)))
        for k in range(3)
    ]

    in_bytes = n * n_tiles * (tm + 3 * w_stride) * cin * jnp.dtype(x_flat.dtype).itemsize
    w_bytes = 9 * cin * cout_p * jnp.dtype(w_taps.dtype).itemsize
    out_bytes = n * n_tiles * tm * cout_p * jnp.dtype(out_dtype).itemsize
    cost = pl.CostEstimate(
        flops=int(2 * n * n_tiles * tm * 9 * cin * cout_p),
        transcendentals=0,
        bytes_accessed=int(in_bytes + w_bytes + out_bytes + n * n_tiles * 2 * cout_p * 4))

    y, stats = pl.pallas_call(
        kernel,
        out_shape=(jax.ShapeDtypeStruct((n, n_tiles * tm, cout_p), out_dtype),
                   jax.ShapeDtypeStruct((n, n_tiles, 2, cout_p), jnp.float32)),
        grid_spec=pltpu.PrefetchScalarGridSpec(
            num_scalar_prefetch=0,
            grid=(n, n_tiles),
            in_specs=[pl.BlockSpec((1, tm, cin), body_idx)] + halo_specs + [
                pl.BlockSpec((9, cin, cout_p), lambda b, i: (0, 0, 0)),
                pl.BlockSpec((1, cin), lambda b, i: (0, 0)),
                pl.BlockSpec((1, cin), lambda b, i: (0, 0)),
                pl.BlockSpec((1, tm, 1), lambda b, i: (0, i, 0)),
            ],
            out_specs=[pl.BlockSpec((1, tm, cout_p), body_idx),
                       pl.BlockSpec((1, 1, 2, cout_p), lambda b, i: (b, i, 0, 0))]),
        compiler_params=pltpu.CompilerParams(
            dimension_semantics=("parallel", "parallel"),
            vmem_limit_bytes=48 * 1024 * 1024),
        cost_estimate=cost,
    )(x_flat, x_flat, x_flat, x_flat, w_taps, scale_in, shift_in, mask)
    return y, stats


def _bn_relu_pass(y_flat, scale, shift, *, n_tiles, rows_per_tile, w_stride):
    n, _, cp = y_flat.shape
    tm = rows_per_tile * w_stride
    return pl.pallas_call(
        _bn_relu_kernel,
        out_shape=jax.ShapeDtypeStruct((n, n_tiles * tm, cp), jnp.float32),
        grid_spec=pltpu.PrefetchScalarGridSpec(
            num_scalar_prefetch=0,
            grid=(n, n_tiles),
            in_specs=[pl.BlockSpec((1, tm, cp), lambda b, i: (b, i, 0)),
                      pl.BlockSpec((1, cp), lambda b, i: (0, 0)),
                      pl.BlockSpec((1, cp), lambda b, i: (0, 0))],
            out_specs=pl.BlockSpec((1, tm, cp), lambda b, i: (b, i, 0))),
        compiler_params=pltpu.CompilerParams(
            dimension_semantics=("parallel", "parallel")),
    )(y_flat, scale, shift)


# --------------------------------------------------------------------------
# Parameter / glue helpers
# --------------------------------------------------------------------------
def _prep_weight(w_oihw, cin_p, cout_p, dtype):
    """PyTorch (Cout, Cin, 3, 3) -> (9, Cin_p, Cout_p), tap order k = dy*3 + dx."""
    cout, cin, kh, kw = w_oihw.shape
    w = jnp.transpose(w_oihw, (2, 3, 1, 0)).reshape(kh * kw, cin, cout)
    w = jnp.pad(w, ((0, 0), (0, cin_p - cin), (0, cout_p - cout)))
    return w.astype(dtype)


def _pad_channels(v, cp):
    return jnp.pad(v.astype(jnp.float32), (0, cp - v.shape[0]))


def _bn_scale_shift(stats, gamma_p, beta_p, count):
    """Reduce tiny per-tile (sum, sumsq) partials -> folded per-channel scale/shift."""
    total = jnp.sum(stats, axis=(0, 1))                        # (2, Cp)
    mean = total[0] / count
    var = jnp.maximum(total[1] / count - mean * mean, 0.0)     # biased var, clamped
    inv = lax.rsqrt(var + BN_EPS)
    scale = gamma_p * inv
    shift = beta_p - mean * scale
    return scale[None, :], shift[None, :]                      # (1, Cp) each


# --------------------------------------------------------------------------
# Forward pass of Compress (maxpool -> DoubleConv)
# --------------------------------------------------------------------------
def compress_forward(x_nchw, params, *, maxpool=True, block_rows=8,
                     compute_dtype=jnp.float32):
    assert block_rows >= 1
    x = jnp.transpose(x_nchw, (0, 2, 3, 1)).astype(jnp.float32)   # NCHW -> NHWC
    n, h, w, cin = x.shape

    cout = params["w1"].shape[0]
    cout_p = _round_up(cout, LANE)          # lane-dense output channels

    if maxpool:
        h_e, w_e = (h // 2) * 2, (w // 2) * 2          # PyTorch MaxPool2d(2) floors
        ph, pw = h_e // 2, w_e // 2
    else:
        ph, pw = h, w
    assert ph >= 5 and pw >= 5, "spatial dims too small for two valid 3x3 convs"

    oh1, ow1 = ph - 2, pw - 2
    oh2, ow2 = oh1 - 2, ow1 - 2

    tr = block_rows                          # image rows per tile
    w8 = _round_up(pw, SUBLANE)              # padded width == flat row stride
    tm = tr * w8                             # flat rows per tile (multiple of 8)

    nt2 = _cdiv(oh2, tr)
    nt1 = max(_cdiv(oh1, tr), nt2 + _cdiv(3, tr))   # layer-1 must also cover layer-2's halo
    rows_needed = nt1 * tr + 3                       # image rows required by layer 1

    if maxpool:
        # Pad the raw input so that after 2x2 pooling we have `rows_needed` rows
        # and `w8` columns.  Padding starts at even indices, so no pooling window
        # mixes real and padded pixels.
        x = x[:, :h_e, :w_e, :]
        x = jnp.pad(x, ((0, 0), (0, 2 * rows_needed - h_e), (0, 2 * w8 - w_e), (0, 0)))
        # 2x2 max pooling (memory-trivial JAX glue; the hot path is the convs).
        # TODO(synk): fold the 2x2 maxpool into the layer-1 conv kernel to avoid
        # one HBM round-trip of the pooled image.
        x = x.reshape(n, rows_needed, 2, w8, 2, cin)
        x = jnp.max(jnp.max(x, axis=4), axis=2)                 # (N, rows, W8, Cin)
    else:
        x = jnp.pad(x, ((0, 0), (0, rows_needed - ph), (0, w8 - pw), (0, 0)))

    x_flat = x.reshape(n, rows_needed * w8, cin)                # flattened NHWC

    # --- layer 1: conv3x3 + streamed BN partial stats ---------------------
    w1 = _prep_weight(params["w1"], cin, cout_p, compute_dtype)
    ones_in = jnp.ones((1, cin), jnp.float32)
    zeros_in = jnp.zeros((1, cin), jnp.float32)
    # NOTE: conv bias cancels exactly under training-mode BatchNorm -> not used.
    y1, stats1 = _conv_pass(x_flat, w1, ones_in, zeros_in,
                            w_stride=w8, oh=oh1, ow=ow1, n_tiles=nt1,
                            rows_per_tile=tr, apply_act=False,
                            compute_dtype=compute_dtype, out_dtype=compute_dtype)
    scale1, shift1 = _bn_scale_shift(stats1,
                                     _pad_channels(params["gamma1"], cout_p),
                                     _pad_channels(params["beta1"], cout_p),
                                     n * oh1 * ow1)

    # --- layer 2: (BN1 + ReLU fused on input) + conv3x3 + BN partial stats -
    w2 = _prep_weight(params["w2"], cout_p, cout_p, compute_dtype)
    y2, stats2 = _conv_pass(y1, w2, scale1, shift1,
                            w_stride=w8, oh=oh2, ow=ow2, n_tiles=nt2,
                            rows_per_tile=tr, apply_act=True,
                            compute_dtype=compute_dtype, out_dtype=compute_dtype)
    scale2, shift2 = _bn_scale_shift(stats2,
                                     _pad_channels(params["gamma2"], cout_p),
                                     _pad_channels(params["beta2"], cout_p),
                                     n * oh2 * ow2)

    # --- finalize: BN2 + ReLU ---------------------------------------------
    out_flat = _bn_relu_pass(y2, scale2, shift2,
                             n_tiles=nt2, rows_per_tile=tr, w_stride=w8)

    out = out_flat.reshape(n, nt2 * tr, w8, cout_p)[:, :oh2, :ow2, :cout]
    return jnp.transpose(out, (0, 3, 1, 2))                     # NHWC -> NCHW


def init_params(key, in_filters, out_filters):
    k1, k2, k3, k4 = jax.random.split(key, 4)
    scale1 = 1.0 / jnp.sqrt(in_filters * 9.0)
    scale2 = 1.0 / jnp.sqrt(out_filters * 9.0)
    return {
        # conv1 (Cout, Cin, 3, 3) + bias.  The bias is kept for interface parity
        # with nn.Conv2d(bias=True) but is not used: it cancels under train-mode BN.
        "w1": jax.random.uniform(k1, (out_filters, in_filters, 3, 3),
                                 jnp.float32, -scale1, scale1),
        "b1": jax.random.uniform(k2, (out_filters,), jnp.float32, -scale1, scale1),
        "gamma1": jnp.ones((out_filters,), jnp.float32),
        "beta1": jnp.zeros((out_filters,), jnp.float32),
        # conv2 (Cout, Cout, 3, 3) + bias
        "w2": jax.random.uniform(k3, (out_filters, out_filters, 3, 3),
                                 jnp.float32, -scale2, scale2),
        "b2": jax.random.uniform(k4, (out_filters,), jnp.float32, -scale2, scale2),
        "gamma2": jnp.ones((out_filters,), jnp.float32),
        "beta2": jnp.zeros((out_filters,), jnp.float32),
    }


if __name__ == "__main__":
    key = jax.random.PRNGKey(0)
    k_x, k_p = jax.random.split(key)

    in_filters, out_filters = 4, 8
    N, H, W = 2, 16, 16

    x = jax.random.normal(k_x, (N, in_filters, H, W), dtype=jnp.float32)  # NCHW
    params = init_params(k_p, in_filters, out_filters)

    fwd = jax.jit(compress_forward,
                  static_argnames=("maxpool", "block_rows", "compute_dtype"))
    out = fwd(x, params)
    out = jax.block_until_ready(out)

    # Compress: 2x2 maxpool then two 'valid' 3x3 convs -> (H/2 - 4, W/2 - 4).
    assert out.shape == (N, out_filters, H // 2 - 4, W // 2 - 4), out.shape
    assert bool(jnp.all(out >= 0.0))            # ReLU output is non-negative
    assert bool(jnp.all(jnp.isfinite(out)))
    print("KERNEL_OK")
</pallas_src>

<mosaic_0001>
module attributes {stable_mosaic.version = 11 : i64} {
  func.func @_conv_pass_kernel(%arg0: i32, %arg1: i32, %arg2: memref<1x64x4xf32, #tpu.memory_space<vmem>>, %arg3: memref<1x8x4xf32, #tpu.memory_space<vmem>>, %arg4: memref<1x8x4xf32, #tpu.memory_space<vmem>>, %arg5: memref<1x8x4xf32, #tpu.memory_space<vmem>>, %arg6: memref<9x4x128xf32, #tpu.memory_space<vmem>>, %arg7: memref<1x4xf32, #tpu.memory_space<vmem>>, %arg8: memref<1x4xf32, #tpu.memory_space<vmem>>, %arg9: memref<1x64x1xf32, #tpu.memory_space<vmem>>, %arg10: memref<1x64x128xf32, #tpu.memory_space<vmem>>, %arg11: memref<1x1x2x128xf32, #tpu.memory_space<vmem>>) attributes {dimension_semantics = [#tpu.dimension_semantics<parallel>, #tpu.dimension_semantics<parallel>], iteration_bounds = array<i64: 2, 2>, scalar_prefetch = 0 : i64, scratch_operands = 0 : i64, tpu.core_type = #tpu.core_type<tc>, window_params = [{transform_indices = @transform_0, window_bounds = array<i64: 1, 64, 4>}, {transform_indices = @transform_1, window_bounds = array<i64: 1, 8, 4>}, {transform_indices = @transform_2, window_bounds = array<i64: 1, 8, 4>}, {transform_indices = @transform_3, window_bounds = array<i64: 1, 8, 4>}, {pipeline_mode = #tpu.pipeline_mode<synchronous>, transform_indices = @transform_4, window_bounds = array<i64: 9, 4, 128>}, {pipeline_mode = #tpu.pipeline_mode<synchronous>, transform_indices = @transform_5, window_bounds = array<i64: 1, 4>}, {pipeline_mode = #tpu.pipeline_mode<synchronous>, transform_indices = @transform_6, window_bounds = array<i64: 1, 4>}, {transform_indices = @transform_7, window_bounds = array<i64: 1, 64, 1>}, {transform_indices = @transform_8, window_bounds = array<i64: 1, 64, 128>}, {transform_indices = @transform_9, window_bounds = array<i64: 1, 1, 2, 128>}]} {
    %c0 = arith.constant 0 : index
    %c0_0 = arith.constant 0 : index
    %c0_1 = arith.constant 0 : index
    %0 = vector.load %arg2[%c0, %c0_0, %c0_1] : memref<1x64x4xf32, #tpu.memory_space<vmem>>, vector<1x64x4xf32>
    %1 = vector.shape_cast %0 : vector<1x64x4xf32> to vector<64x4xf32>
    %c0_2 = arith.constant 0 : index
    %c0_3 = arith.constant 0 : index
    %c0_4 = arith.constant 0 : index
    %2 = vector.load %arg3[%c0_2, %c0_3, %c0_4] : memref<1x8x4xf32, #tpu.memory_space<vmem>>, vector<1x8x4xf32>
    %3 = vector.shape_cast %2 : vector<1x8x4xf32> to vector<8x4xf32>
    %c0_5 = arith.constant 0 : index
    %c0_6 = arith.constant 0 : index
    %c0_7 = arith.constant 0 : index
    %4 = vector.load %arg4[%c0_5, %c0_6, %c0_7] : memref<1x8x4xf32, #tpu.memory_space<vmem>>, vector<1x8x4xf32>
    %5 = vector.shape_cast %4 : vector<1x8x4xf32> to vector<8x4xf32>
    %c0_8 = arith.constant 0 : index
    %c0_9 = arith.constant 0 : index
    %c0_10 = arith.constant 0 : index
    %6 = vector.load %arg5[%c0_8, %c0_9, %c0_10] : memref<1x8x4xf32, #tpu.memory_space<vmem>>, vector<1x8x4xf32>
    %7 = vector.shape_cast %6 : vector<1x8x4xf32> to vector<8x4xf32>
    %8 = tpu.concatenate %1, %3, %5, %7 in 0 : vector<64x4xf32>, vector<8x4xf32>, vector<8x4xf32>, vector<8x4xf32> -> vector<88x4xf32>
    %9 = vector.extract_strided_slice %8 {offsets = [0, 0], sizes = [64, 4], strides = [1, 1]} : vector<88x4xf32> to vector<64x4xf32>
    %c0_11 = arith.constant 0 : index
    %c0_12 = arith.constant 0 : index
    %c0_13 = arith.constant 0 : index
    %10 = vector.load %arg6[%c0_11, %c0_12, %c0_13] : memref<9x4x128xf32, #tpu.memory_space<vmem>>, vector<1x4x128xf32>
    %11 = vector.shape_cast %10 : vector<1x4x128xf32> to vector<4x128xf32>
    %cst = arith.constant dense<0.000000e+00> : vector<64x128xf32>
    %12 = tpu.matmul %9, %11, %cst {dimension_numbers = #tpu.dot_dimension_numbers<[1], [0], [0], [1], [0, 0, 1, 1], [], []>} : vector<64x4xf32>, vector<4x128xf32>, vector<64x128xf32> -> vector<64x128xf32>
    %13 = vector.extract_strided_slice %8 {offsets = [1, 0], sizes = [64, 4], strides = [1, 1]} : vector<88x4xf32> to vector<64x4xf32>
    %c1 = arith.constant 1 : index
    %c0_14 = arith.constant 0 : index
    %c0_15 = arith.constant 0 : index
    %14 = vector.load %arg6[%c1, %c0_14, %c0_15] : memref<9x4x128xf32, #tpu.memory_space<vmem>>, vector<1x4x128xf32>
    %15 = vector.shape_cast %14 : vector<1x4x128xf32> to vector<4x128xf32>
    %cst_16 = arith.constant dense<0.000000e+00> : vector<64x128xf32>
    %16 = tpu.matmul %13, %15, %cst_16 {dimension_numbers = #tpu.dot_dimension_numbers<[1], [0], [0], [1], [0, 0, 1, 1], [], []>} : vector<64x4xf32>, vector<4x128xf32>, vector<64x128xf32> -> vector<64x128xf32>
    %17 = arith.addf %12, %16 : vector<64x128xf32>
    %18 = vector.extract_strided_slice %8 {offsets = [2, 0], sizes = [64, 4], strides = [1, 1]} : vector<88x4xf32> to vector<64x4xf32>
    %c2 = arith.constant 2 : index
    %c0_17 = arith.constant 0 : index
    %c0_18 = arith.constant 0 : index
    %19 = vector.load %arg6[%c2, %c0_17, %c0_18] : memref<9x4x128xf32, #tpu.memory_space<vmem>>, vector<1x4x128xf32>
    %20 = vector.shape_cast %19 : vector<1x4x128xf32> to vector<4x128xf32>
    %cst_19 = arith.constant dense<0.000000e+00> : vector<64x128xf32>
    %21 = tpu.matmul %18, %20, %cst_19 {dimension_numbers = #tpu.dot_dimension_numbers<[1], [0], [0], [1], [0, 0, 1, 1], [], []>} : vector<64x4xf32>, vector<4x128xf32>, vector<64x128xf32> -> vector<64x128xf32>
    %22 = arith.addf %17, %21 : vector<64x128xf32>
    %23 = vector.extract_strided_slice %8 {offsets = [8, 0], sizes = [64, 4], strides = [1, 1]} : vector<88x4xf32> to vector<64x4xf32>
    %c3 = arith.constant 3 : index
    %c0_20 = arith.constant 0 : index
    %c0_21 = arith.constant 0 : index
    %24 = vector.load %arg6[%c3, %c0_20, %c0_21] : memref<9x4x128xf32, #tpu.memory_space<vmem>>, vector<1x4x128xf32>
    %25 = vector.shape_cast %24 : vector<1x4x128xf32> to vector<4x128xf32>
    %cst_22 = arith.constant dense<0.000000e+00> : vector<64x128xf32>
    %26 = tpu.matmul %23, %25, %cst_22 {dimension_numbers = #tpu.dot_dimension_numbers<[1], [0], [0], [1], [0, 0, 1, 1], [], []>} : vector<64x4xf32>, vector<4x128xf32>, vector<64x128xf32> -> vector<64x128xf32>
    %27 = arith.addf %22, %26 : vector<64x128xf32>
    %28 = vector.extract_strided_slice %8 {offsets = [9, 0], sizes = [64, 4], strides = [1, 1]} : vector<88x4xf32> to vector<64x4xf32>
    %c4 = arith.constant 4 : index
    %c0_23 = arith.constant 0 : index
    %c0_24 = arith.constant 0 : index
    %29 = vector.load %arg6[%c4, %c0_23, %c0_24] : memref<9x4x128xf32, #tpu.memory_space<vmem>>, vector<1x4x128xf32>
    %30 = vector.shape_cast %29 : vector<1x4x128xf32> to vector<4x128xf32>
    %cst_25 = arith.constant dense<0.000000e+00> : vector<64x128xf32>
    %31 = tpu.matmul %28, %30, %cst_25 {dimension_numbers = #tpu.dot_dimension_numbers<[1], [0], [0], [1], [0, 0, 1, 1], [], []>} : vector<64x4xf32>, vector<4x128xf32>, vector<64x128xf32> -> vector<64x128xf32>
    %32 = arith.addf %27, %31 : vector<64x128xf32>
    %33 = vector.extract_strided_slice %8 {offsets = [10, 0], sizes = [64, 4], strides = [1, 1]} : vector<88x4xf32> to vector<64x4xf32>
    %c5 = arith.constant 5 : index
    %c0_26 = arith.constant 0 : index
    %c0_27 = arith.constant 0 : index
    %34 = vector.load %arg6[%c5, %c0_26, %c0_27] : memref<9x4x128xf32, #tpu.memory_space<vmem>>, vector<1x4x128xf32>
    %35 = vector.shape_cast %34 : vector<1x4x128xf32> to vector<4x128xf32>
    %cst_28 = arith.constant dense<0.000000e+00> : vector<64x128xf32>
    %36 = tpu.matmul %33, %35, %cst_28 {dimension_numbers = #tpu.dot_dimension_numbers<[1], [0], [0], [1], [0, 0, 1, 1], [], []>} : vector<64x4xf32>, vector<4x128xf32>, vector<64x128xf32> -> vector<64x128xf32>
    %37 = arith.addf %32, %36 : vector<64x128xf32>
    %38 = vector.extract_strided_slice %8 {offsets = [16, 0], sizes = [64, 4], strides = [1, 1]} : vector<88x4xf32> to vector<64x4xf32>
    %c6 = arith.constant 6 : index
    %c0_29 = arith.constant 0 : index
    %c0_30 = arith.constant 0 : index
    %39 = vector.load %arg6[%c6, %c0_29, %c0_30] : memref<9x4x128xf32, #tpu.memory_space<vmem>>, vector<1x4x128xf32>
    %40 = vector.shape_cast %39 : vector<1x4x128xf32> to vector<4x128xf32>
    %cst_31 = arith.constant dense<0.000000e+00> : vector<64x128xf32>
    %41 = tpu.matmul %38, %40, %cst_31 {dimension_numbers = #tpu.dot_dimension_numbers<[1], [0], [0], [1], [0, 0, 1, 1], [], []>} : vector<64x4xf32>, vector<4x128xf32>, vector<64x128xf32> -> vector<64x128xf32>
    %42 = arith.addf %37, %41 : vector<64x128xf32>
    %43 = vector.extract_strided_slice %8 {offsets = [17, 0], sizes = [64, 4], strides = [1, 1]} : vector<88x4xf32> to vector<64x4xf32>
    %c7 = arith.constant 7 : index
    %c0_32 = arith.constant 0 : index
    %c0_33 = arith.constant 0 : index
    %44 = vector.load %arg6[%c7, %c0_32, %c0_33] : memref<9x4x128xf32, #tpu.memory_space<vmem>>, vector<1x4x128xf32>
    %45 = vector.shape_cast %44 : vector<1x4x128xf32> to vector<4x128xf32>
    %cst_34 = arith.constant dense<0.000000e+00> : vector<64x128xf32>
    %46 = tpu.matmul %43, %45, %cst_34 {dimension_numbers = #tpu.dot_dimension_numbers<[1], [0], [0], [1], [0, 0, 1, 1], [], []>} : vector<64x4xf32>, vector<4x128xf32>, vector<64x128xf32> -> vector<64x128xf32>
    %47 = arith.addf %42, %46 : vector<64x128xf32>
    %48 = vector.extract_strided_slice %8 {offsets = [18, 0], sizes = [64, 4], strides = [1, 1]} : vector<88x4xf32> to vector<64x4xf32>
    %c8 = arith.constant 8 : index
    %c0_35 = arith.constant 0 : index
    %c0_36 = arith.constant 0 : index
    %49 = vector.load %arg6[%c8, %c0_35, %c0_36] : memref<9x4x128xf32, #tpu.memory_space<vmem>>, vector<1x4x128xf32>
    %50 = vector.shape_cast %49 : vector<1x4x128xf32> to vector<4x128xf32>
    %cst_37 = arith.constant dense<0.000000e+00> : vector<64x128xf32>
    %51 = tpu.matmul %48, %50, %cst_37 {dimension_numbers = #tpu.dot_dimension_numbers<[1], [0], [0], [1], [0, 0, 1, 1], [], []>} : vector<64x4xf32>, vector<4x128xf32>, vector<64x128xf32> -> vector<64x128xf32>
    %52 = arith.addf %47, %51 : vector<64x128xf32>
    %c0_38 = arith.constant 0 : index
    %c0_39 = arith.constant 0 : index
    %c0_40 = arith.constant 0 : index
    %53 = vector.load %arg10[%c0_38, %c0_39, %c0_40] : memref<1x64x128xf32, #tpu.memory_space<vmem>>, vector<1x64x128xf32>
    %54 = vector.shape_cast %53 : vector<1x64x128xf32> to vector<64x128xf32>
    %55 = vector.shape_cast %52 : vector<64x128xf32> to vector<1x64x128xf32>
    tpu.vector_store %arg10[%c0_38, %c0_39, %c0_40], %55 {strides = array<i32>} : memref<1x64x128xf32, #tpu.memory_space<vmem>>, vector<1x64x128xf32>,
    %c0_41 = arith.constant 0 : index
    %c0_42 = arith.constant 0 : index
    %c0_43 = arith.constant 0 : index
    %56 = vector.load %arg9[%c0_41, %c0_42, %c0_43] : memref<1x64x1xf32, #tpu.memory_space<vmem>>, vector<1x64x1xf32>
    %57 = vector.shape_cast %56 : vector<1x64x1xf32> to vector<64x1xf32>
    %58 = vector.broadcast %57 : vector<64x1xf32> to vector<64x128xf32>
    %59 = arith.mulf %52, %58 : vector<64x128xf32>
    %cst_44 = arith.constant dense<0.000000e+00> : vector<128xf32>
    %60 = vector.multi_reduction <add>, %59, %cst_44 [0] : vector<64x128xf32> to vector<128xf32>
    %61 = vector.shape_cast %60 : vector<128xf32> to vector<1x128xf32>
    %62 = arith.mulf %59, %59 : vector<64x128xf32>
    %cst_45 = arith.constant dense<0.000000e+00> : vector<128xf32>
    %63 = vector.multi_reduction <add>, %62, %cst_45 [0] : vector<64x128xf32> to vector<128xf32>
    %64 = vector.shape_cast %63 : vector<128xf32> to vector<1x128xf32>
    %65 = tpu.concatenate %61, %64 in 0 : vector<1x128xf32>, vector<1x128xf32> -> vector<2x128xf32>
    %c0_46 = arith.constant 0 : index
    %c0_47 = arith.constant 0 : index
    %c0_48 = arith.constant 0 : index
    %c0_49 = arith.constant 0 : index
    %66 = vector.load %arg11[%c0_46, %c0_47, %c0_48, %c0_49] : memref<1x1x2x128xf32, #tpu.memory_space<vmem>>, vector<1x1x2x128xf32>
    %67 = vector.shape_cast %66 : vector<1x1x2x128xf32> to vector<2x128xf32>
    %68 = vector.shape_cast %65 : vector<2x128xf32> to vector<1x1x2x128xf32>
    tpu.vector_store %arg11[%c0_46, %c0_47, %c0_48, %c0_49], %68 {strides = array<i32>} : memref<1x1x2x128xf32, #tpu.memory_space<vmem>>, vector<1x1x2x128xf32>,
    return
  }
  func.func @transform_0(%arg0: i32, %arg1: i32) -> (i32, i32, i32) {
    %c0_i32 = arith.constant 0 : i32
    %c0_i32_0 = arith.constant 0 : i32
    return %arg0, %arg1, %c0_i32 : i32, i32, i32
  }
  func.func @transform_1(%arg0: i32, %arg1: i32) -> (i32, i32, i32) {
    %c1_i32 = arith.constant 1 : i32
    %0 = arith.addi %arg1, %c1_i32 : i32
    %c8_i32 = arith.constant 8 : i32
    %1 = arith.muli %0, %c8_i32 : i32
    %c0_i32 = arith.constant 0 : i32
    %2 = arith.addi %1, %c0_i32 : i32
    %c0_i32_0 = arith.constant 0 : i32
    %c0_i32_1 = arith.constant 0 : i32
    return %arg0, %2, %c0_i32_0 : i32, i32, i32
  }
  func.func @transform_2(%arg0: i32, %arg1: i32) -> (i32, i32, i32) {
    %c1_i32 = arith.constant 1 : i32
    %0 = arith.addi %arg1, %c1_i32 : i32
    %c8_i32 = arith.constant 8 : i32
    %1 = arith.muli %0, %c8_i32 : i32
    %c1_i32_0 = arith.constant 1 : i32
    %2 = arith.addi %1, %c1_i32_0 : i32
    %c0_i32 = arith.constant 0 : i32
    %c0_i32_1 = arith.constant 0 : i32
    return %arg0, %2, %c0_i32 : i32, i32, i32
  }
  func.func @transform_3(%arg0: i32, %arg1: i32) -> (i32, i32, i32) {
    %c1_i32 = arith.constant 1 : i32
    %0 = arith.addi %arg1, %c1_i32 : i32
    %c8_i32 = arith.constant 8 : i32
    %1 = arith.muli %0, %c8_i32 : i32
    %c2_i32 = arith.constant 2 : i32
    %2 = arith.addi %1, %c2_i32 : i32
    %c0_i32 = arith.constant 0 : i32
    %c0_i32_0 = arith.constant 0 : i32
    return %arg0, %2, %c0_i32 : i32, i32, i32
  }
  func.func @transform_4(%arg0: i32, %arg1: i32) -> (i32, i32, i32) {
    %c0_i32 = arith.constant 0 : i32
    %c0_i32_0 = arith.constant 0 : i32
    %c0_i32_1 = arith.constant 0 : i32
    %c0_i32_2 = arith.constant 0 : i32
    return %c0_i32, %c0_i32_0, %c0_i32_1 : i32, i32, i32
  }
  func.func @transform_5(%arg0: i32, %arg1: i32) -> (i32, i32) {
    %c0_i32 = arith.constant 0 : i32
    %c0_i32_0 = arith.constant 0 : i32
    %c0_i32_1 = arith.constant 0 : i32
    return %c0_i32, %c0_i32_0 : i32, i32
  }
  func.func @transform_6(%arg0: i32, %arg1: i32) -> (i32, i32) {
    %c0_i32 = arith.constant 0 : i32
    %c0_i32_0 = arith.constant 0 : i32
    %c0_i32_1 = arith.constant 0 : i32
    return %c0_i32, %c0_i32_0 : i32, i32
  }
  func.func @transform_7(%arg0: i32, %arg1: i32) -> (i32, i32, i32) {
    %c0_i32 = arith.constant 0 : i32
    %c0_i32_0 = arith.constant 0 : i32
    %c0_i32_1 = arith.constant 0 : i32
    return %c0_i32, %arg1, %c0_i32_0 : i32, i32, i32
  }
  func.func @transform_8(%arg0: i32, %arg1: i32) -> (i32, i32, i32) {
    %c0_i32 = arith.constant 0 : i32
    %c0_i32_0 = arith.constant 0 : i32
    return %arg0, %arg1, %c0_i32 : i32, i32, i32
  }
  func.func @transform_9(%arg0: i32, %arg1: i32) -> (i32, i32, i32, i32) {
    %c0_i32 = arith.constant 0 : i32
    %c0_i32_0 = arith.constant 0 : i32
    %c0_i32_1 = arith.constant 0 : i32
    return %arg0, %arg1, %c0_i32, %c0_i32_0 : i32, i32, i32, i32
  }
}

module attributes {stable_mosaic.version = 11 : i64} {
  func.func @_conv_pass_kernel(%arg0: i32, %arg1: i32, %arg2: memref<1x64x128xf32, #tpu.memory_space<vmem>>, %arg3: memref<1x8x128xf32, #tpu.memory_space<vmem>>, %arg4: memref<1x8x128xf32, #tpu.memory_space<vmem>>, %arg5: memref<1x8x128xf32, #tpu.memory_space<vmem>>, %arg6: memref<9x128x128xf32, #tpu.memory_space<vmem>>, %arg7: memref<1x128xf32, #tpu.memory_space<vmem>>, %arg8: memref<1x128xf32, #tpu.memory_space<vmem>>, %arg9: memref<1x64x1xf32, #tpu.memory_space<vmem>>, %arg10: memref<1x64x128xf32, #tpu.memory_space<vmem>>, %arg11: memref<1x1x2x128xf32, #tpu.memory_space<vmem>>) attributes {dimension_semantics = [#tpu.dimension_semantics<parallel>, #tpu.dimension_semantics<parallel>], iteration_bounds = array<i64: 2, 1>, scalar_prefetch = 0 : i64, scratch_operands = 0 : i64, tpu.core_type = #tpu.core_type<tc>, window_params = [{transform_indices = @transform_0, window_bounds = array<i64: 1, 64, 128>}, {transform_indices = @transform_1, window_bounds = array<i64: 1, 8, 128>}, {transform_indices = @transform_2, window_bounds = array<i64: 1, 8, 128>}, {transform_indices = @transform_3, window_bounds = array<i64: 1, 8, 128>}, {pipeline_mode = #tpu.pipeline_mode<synchronous>, transform_indices = @transform_4, window_bounds = array<i64: 9, 128, 128>}, {pipeline_mode = #tpu.pipeline_mode<synchronous>, transform_indices = @transform_5, window_bounds = array<i64: 1, 128>}, {pipeline_mode = #tpu.pipeline_mode<synchronous>, transform_indices = @transform_6, window_bounds = array<i64: 1, 128>}, {transform_indices = @transform_7, window_bounds = array<i64: 1, 64, 1>}, {transform_indices = @transform_8, window_bounds = array<i64: 1, 64, 128>}, {transform_indices = @transform_9, window_bounds = array<i64: 1, 1, 2, 128>}]} {
    %c0 = arith.constant 0 : index
    %c0_0 = arith.constant 0 : index
    %c0_1 = arith.constant 0 : index
    %0 = vector.load %arg2[%c0, %c0_0, %c0_1] : memref<1x64x128xf32, #tpu.memory_space<vmem>>, vector<1x64x128xf32>
    %1 = vector.shape_cast %0 : vector<1x64x128xf32> to vector<64x128xf32>
    %c0_2 = arith.constant 0 : index
    %c0_3 = arith.constant 0 : index
    %c0_4 = arith.constant 0 : index
    %2 = vector.load %arg3[%c0_2, %c0_3, %c0_4] : memref<1x8x128xf32, #tpu.memory_space<vmem>>, vector<1x8x128xf32>
    %3 = vector.shape_cast %2 : vector<1x8x128xf32> to vector<8x128xf32>
    %c0_5 = arith.constant 0 : index
    %c0_6 = arith.constant 0 : index
    %c0_7 = arith.constant 0 : index
    %4 = vector.load %arg4[%c0_5, %c0_6, %c0_7] : memref<1x8x128xf32, #tpu.memory_space<vmem>>, vector<1x8x128xf32>
    %5 = vector.shape_cast %4 : vector<1x8x128xf32> to vector<8x128xf32>
    %c0_8 = arith.constant 0 : index
    %c0_9 = arith.constant 0 : index
    %c0_10 = arith.constant 0 : index
    %6 = vector.load %arg5[%c0_8, %c0_9, %c0_10] : memref<1x8x128xf32, #tpu.memory_space<vmem>>, vector<1x8x128xf32>
    %7 = vector.shape_cast %6 : vector<1x8x128xf32> to vector<8x128xf32>
    %8 = tpu.concatenate %1, %3, %5, %7 in 0 : vector<64x128xf32>, vector<8x128xf32>, vector<8x128xf32>, vector<8x128xf32> -> vector<88x128xf32>
    %c0_11 = arith.constant 0 : index
    %c0_12 = arith.constant 0 : index
    %9 = vector.load %arg7[%c0_11, %c0_12] : memref<1x128xf32, #tpu.memory_space<vmem>>, vector<1x128xf32>
    %10 = vector.broadcast %9 : vector<1x128xf32> to vector<88x128xf32>
    %11 = arith.mulf %8, %10 : vector<88x128xf32>
    %c0_13 = arith.constant 0 : index
    %c0_14 = arith.constant 0 : index
    %12 = vector.load %arg8[%c0_13, %c0_14] : memref<1x128xf32, #tpu.memory_space<vmem>>, vector<1x128xf32>
    %13 = vector.broadcast %12 : vector<1x128xf32> to vector<88x128xf32>
    %14 = arith.addf %11, %13 : vector<88x128xf32>
    %cst = arith.constant 0.000000e+00 : f32
    %15 = vector.broadcast %cst : f32 to vector<88x128xf32>
    %16 = arith.maximumf %14, %15 : vector<88x128xf32>
    %17 = vector.extract_strided_slice %16 {offsets = [0, 0], sizes = [64, 128], strides = [1, 1]} : vector<88x128xf32> to vector<64x128xf32>
    %c0_15 = arith.constant 0 : index
    %c0_16 = arith.constant 0 : index
    %c0_17 = arith.constant 0 : index
    %18 = vector.load %arg6[%c0_15, %c0_16, %c0_17] : memref<9x128x128xf32, #tpu.memory_space<vmem>>, vector<1x128x128xf32>
    %19 = vector.shape_cast %18 : vector<1x128x128xf32> to vector<128x128xf32>
    %cst_18 = arith.constant dense<0.000000e+00> : vector<64x128xf32>
    %20 = tpu.matmul %17, %19, %cst_18 {dimension_numbers = #tpu.dot_dimension_numbers<[1], [0], [0], [1], [0, 0, 1, 1], [], []>} : vector<64x128xf32>, vector<128x128xf32>, vector<64x128xf32> -> vector<64x128xf32>
    %21 = vector.extract_strided_slice %16 {offsets = [1, 0], sizes = [64, 128], strides = [1, 1]} : vector<88x128xf32> to vector<64x128xf32>
    %c1 = arith.constant 1 : index
    %c0_19 = arith.constant 0 : index
    %c0_20 = arith.constant 0 : index
    %22 = vector.load %arg6[%c1, %c0_19, %c0_20] : memref<9x128x128xf32, #tpu.memory_space<vmem>>, vector<1x128x128xf32>
    %23 = vector.shape_cast %22 : vector<1x128x128xf32> to vector<128x128xf32>
    %cst_21 = arith.constant dense<0.000000e+00> : vector<64x128xf32>
    %24 = tpu.matmul %21, %23, %cst_21 {dimension_numbers = #tpu.dot_dimension_numbers<[1], [0], [0], [1], [0, 0, 1, 1], [], []>} : vector<64x128xf32>, vector<128x128xf32>, vector<64x128xf32> -> vector<64x128xf32>
    %25 = arith.addf %20, %24 : vector<64x128xf32>
    %26 = vector.extract_strided_slice %16 {offsets = [2, 0], sizes = [64, 128], strides = [1, 1]} : vector<88x128xf32> to vector<64x128xf32>
    %c2 = arith.constant 2 : index
    %c0_22 = arith.constant 0 : index
    %c0_23 = arith.constant 0 : index
    %27 = vector.load %arg6[%c2, %c0_22, %c0_23] : memref<9x128x128xf32, #tpu.memory_space<vmem>>, vector<1x128x128xf32>
    %28 = vector.shape_cast %27 : vector<1x128x128xf32> to vector<128x128xf32>
    %cst_24 = arith.constant dense<0.000000e+00> : vector<64x128xf32>
    %29 = tpu.matmul %26, %28, %cst_24 {dimension_numbers = #tpu.dot_dimension_numbers<[1], [0], [0], [1], [0, 0, 1, 1], [], []>} : vector<64x128xf32>, vector<128x128xf32>, vector<64x128xf32> -> vector<64x128xf32>
    %30 = arith.addf %25, %29 : vector<64x128xf32>
    %31 = vector.extract_strided_slice %16 {offsets = [8, 0], sizes = [64, 128], strides = [1, 1]} : vector<88x128xf32> to vector<64x128xf32>
    %c3 = arith.constant 3 : index
    %c0_25 = arith.constant 0 : index
    %c0_26 = arith.constant 0 : index
    %32 = vector.load %arg6[%c3, %c0_25, %c0_26] : memref<9x128x128xf32, #tpu.memory_space<vmem>>, vector<1x128x128xf32>
    %33 = vector.shape_cast %32 : vector<1x128x128xf32> to vector<128x128xf32>
    %cst_27 = arith.constant dense<0.000000e+00> : vector<64x128xf32>
    %34 = tpu.matmul %31, %33, %cst_27 {dimension_numbers = #tpu.dot_dimension_numbers<[1], [0], [0], [1], [0, 0, 1, 1], [], []>} : vector<64x128xf32>, vector<128x128xf32>, vector<64x128xf32> -> vector<64x128xf32>
    %35 = arith.addf %30, %34 : vector<64x128xf32>
    %36 = vector.extract_strided_slice %16 {offsets = [9, 0], sizes = [64, 128], strides = [1, 1]} : vector<88x128xf32> to vector<64x128xf32>
    %c4 = arith.constant 4 : index
    %c0_28 = arith.constant 0 : index
    %c0_29 = arith.constant 0 : index
    %37 = vector.load %arg6[%c4, %c0_28, %c0_29] : memref<9x128x128xf32, #tpu.memory_space<vmem>>, vector<1x128x128xf32>
    %38 = vector.shape_cast %37 : vector<1x128x128xf32> to vector<128x128xf32>
    %cst_30 = arith.constant dense<0.000000e+00> : vector<64x128xf32>
    %39 = tpu.matmul %36, %38, %cst_30 {dimension_numbers = #tpu.dot_dimension_numbers<[1], [0], [0], [1], [0, 0, 1, 1], [], []>} : vector<64x128xf32>, vector<128x128xf32>, vector<64x128xf32> -> vector<64x128xf32>
    %40 = arith.addf %35, %39 : vector<64x128xf32>
    %41 = vector.extract_strided_slice %16 {offsets = [10, 0], sizes = [64, 128], strides = [1, 1]} : vector<88x128xf32> to vector<64x128xf32>
    %c5 = arith.constant 5 : index
    %c0_31 = arith.constant 0 : index
    %c0_32 = arith.constant 0 : index
    %42 = vector.load %arg6[%c5, %c0_31, %c0_32] : memref<9x128x128xf32, #tpu.memory_space<vmem>>, vector<1x128x128xf32>
    %43 = vector.shape_cast %42 : vector<1x128x128xf32> to vector<128x128xf32>
    %cst_33 = arith.constant dense<0.000000e+00> : vector<64x128xf32>
    %44 = tpu.matmul %41, %43, %cst_33 {dimension_numbers = #tpu.dot_dimension_numbers<[1], [0], [0], [1], [0, 0, 1, 1], [], []>} : vector<64x128xf32>, vector<128x128xf32>, vector<64x128xf32> -> vector<64x128xf32>
    %45 = arith.addf %40, %44 : vector<64x128xf32>
    %46 = vector.extract_strided_slice %16 {offsets = [16, 0], sizes = [64, 128], strides = [1, 1]} : vector<88x128xf32> to vector<64x128xf32>
    %c6 = arith.constant 6 : index
    %c0_34 = arith.constant 0 : index
    %c0_35 = arith.constant 0 : index
    %47 = vector.load %arg6[%c6, %c0_34, %c0_35] : memref<9x128x128xf32, #tpu.memory_space<vmem>>, vector<1x128x128xf32>
    %48 = vector.shape_cast %47 : vector<1x128x128xf32> to vector<128x128xf32>
    %cst_36 = arith.constant dense<0.000000e+00> : vector<64x128xf32>
    %49 = tpu.matmul %46, %48, %cst_36 {dimension_numbers = #tpu.dot_dimension_numbers<[1], [0], [0], [1], [0, 0, 1, 1], [], []>} : vector<64x128xf32>, vector<128x128xf32>, vector<64x128xf32> -> vector<64x128xf32>
    %50 = arith.addf %45, %49 : vector<64x128xf32>
    %51 = vector.extract_strided_slice %16 {offsets = [17, 0], sizes = [64, 128], strides = [1, 1]} : vector<88x128xf32> to vector<64x128xf32>
    %c7 = arith.constant 7 : index
    %c0_37 = arith.constant 0 : index
    %c0_38 = arith.constant 0 : index
    %52 = vector.load %arg6[%c7, %c0_37, %c0_38] : memref<9x128x128xf32, #tpu.memory_space<vmem>>, vector<1x128x128xf32>
    %53 = vector.shape_cast %52 : vector<1x128x128xf32> to vector<128x128xf32>
    %cst_39 = arith.constant dense<0.000000e+00> : vector<64x128xf32>
    %54 = tpu.matmul %51, %53, %cst_39 {dimension_numbers = #tpu.dot_dimension_numbers<[1], [0], [0], [1], [0, 0, 1, 1], [], []>} : vector<64x128xf32>, vector<128x128xf32>, vector<64x128xf32> -> vector<64x128xf32>
    %55 = arith.addf %50, %54 : vector<64x128xf32>
    %56 = vector.extract_strided_slice %16 {offsets = [18, 0], sizes = [64, 128], strides = [1, 1]} : vector<88x128xf32> to vector<64x128xf32>
    %c8 = arith.constant 8 : index
    %c0_40 = arith.constant 0 : index
    %c0_41 = arith.constant 0 : index
    %57 = vector.load %arg6[%c8, %c0_40, %c0_41] : memref<9x128x128xf32, #tpu.memory_space<vmem>>, vector<1x128x128xf32>
    %58 = vector.shape_cast %57 : vector<1x128x128xf32> to vector<128x128xf32>
    %cst_42 = arith.constant dense<0.000000e+00> : vector<64x128xf32>
    %59 = tpu.matmul %56, %58, %cst_42 {dimension_numbers = #tpu.dot_dimension_numbers<[1], [0], [0], [1], [0, 0, 1, 1], [], []>} : vector<64x128xf32>, vector<128x128xf32>, vector<64x128xf32> -> vector<64x128xf32>
    %60 = arith.addf %55, %59 : vector<64x128xf32>
    %c0_43 = arith.constant 0 : index
    %c0_44 = arith.constant 0 : index
    %c0_45 = arith.constant 0 : index
    %61 = vector.load %arg10[%c0_43, %c0_44, %c0_45] : memref<1x64x128xf32, #tpu.memory_space<vmem>>, vector<1x64x128xf32>
    %62 = vector.shape_cast %61 : vector<1x64x128xf32> to vector<64x128xf32>
    %63 = vector.shape_cast %60 : vector<64x128xf32> to vector<1x64x128xf32>
    tpu.vector_store %arg10[%c0_43, %c0_44, %c0_45], %63 {strides = array<i32>} : memref<1x64x128xf32, #tpu.memory_space<vmem>>, vector<1x64x128xf32>,
    %c0_46 = arith.constant 0 : index
    %c0_47 = arith.constant 0 : index
    %c0_48 = arith.constant 0 : index
    %64 = vector.load %arg9[%c0_46, %c0_47, %c0_48] : memref<1x64x1xf32, #tpu.memory_space<vmem>>, vector<1x64x1xf32>
    %65 = vector.shape_cast %64 : vector<1x64x1xf32> to vector<64x1xf32>
    %66 = vector.broadcast %65 : vector<64x1xf32> to vector<64x128xf32>
    %67 = arith.mulf %60, %66 : vector<64x128xf32>
    %cst_49 = arith.constant dense<0.000000e+00> : vector<128xf32>
    %68 = vector.multi_reduction <add>, %67, %cst_49 [0] : vector<64x128xf32> to vector<128xf32>
    %69 = vector.shape_cast %68 : vector<128xf32> to vector<1x128xf32>
    %70 = arith.mulf %67, %67 : vector<64x128xf32>
    %cst_50 = arith.constant dense<0.000000e+00> : vector<128xf32>
    %71 = vector.multi_reduction <add>, %70, %cst_50 [0] : vector<64x128xf32> to vector<128xf32>
    %72 = vector.shape_cast %71 : vector<128xf32> to vector<1x128xf32>
    %73 = tpu.concatenate %69, %72 in 0 : vector<1x128xf32>, vector<1x128xf32> -> vector<2x128xf32>
    %c0_51 = arith.constant 0 : index
    %c0_52 = arith.constant 0 : index
    %c0_53 = arith.constant 0 : index
    %c0_54 = arith.constant 0 : index
    %74 = vector.load %arg11[%c0_51, %c0_52, %c0_53, %c0_54] : memref<1x1x2x128xf32, #tpu.memory_space<vmem>>, vector<1x1x2x128xf32>
    %75 = vector.shape_cast %74 : vector<1x1x2x128xf32> to vector<2x128xf32>
    %76 = vector.shape_cast %73 : vector<2x128xf32> to vector<1x1x2x128xf32>
    tpu.vector_store %arg11[%c0_51, %c0_52, %c0_53, %c0_54], %76 {strides = array<i32>} : memref<1x1x2x128xf32, #tpu.memory_space<vmem>>, vector<1x1x2x128xf32>,
    return
  }
  func.func @transform_0(%arg0: i32, %arg1: i32) -> (i32, i32, i32) {
    %c0_i32 = arith.constant 0 : i32
    %c0_i32_0 = arith.constant 0 : i32
    return %arg0, %arg1, %c0_i32 : i32, i32, i32
  }
  func.func @transform_1(%arg0: i32, %arg1: i32) -> (i32, i32, i32) {
    %c1_i32 = arith.constant 1 : i32
    %0 = arith.addi %arg1, %c1_i32 : i32
    %c8_i32 = arith.constant 8 : i32
    %1 = arith.muli %0, %c8_i32 : i32
    %c0_i32 = arith.constant 0 : i32
    %2 = arith.addi %1, %c0_i32 : i32
    %c0_i32_0 = arith.constant 0 : i32
    %c0_i32_1 = arith.constant 0 : i32
    return %arg0, %2, %c0_i32_0 : i32, i32, i32
  }
  func.func @transform_2(%arg0: i32, %arg1: i32) -> (i32, i32, i32) {
    %c1_i32 = arith.constant 1 : i32
    %0 = arith.addi %arg1, %c1_i32 : i32
    %c8_i32 = arith.constant 8 : i32
    %1 = arith.muli %0, %c8_i32 : i32
    %c1_i32_0 = arith.constant 1 : i32
    %2 = arith.addi %1, %c1_i32_0 : i32
    %c0_i32 = arith.constant 0 : i32
    %c0_i32_1 = arith.constant 0 : i32
    return %arg0, %2, %c0_i32 : i32, i32, i32
  }
  func.func @transform_3(%arg0: i32, %arg1: i32) -> (i32, i32, i32) {
    %c1_i32 = arith.constant 1 : i32
    %0 = arith.addi %arg1, %c1_i32 : i32
    %c8_i32 = arith.constant 8 : i32
    %1 = arith.muli %0, %c8_i32 : i32
    %c2_i32 = arith.constant 2 : i32
    %2 = arith.addi %1, %c2_i32 : i32
    %c0_i32 = arith.constant 0 : i32
    %c0_i32_0 = arith.constant 0 : i32
    return %arg0, %2, %c0_i32 : i32, i32, i32
  }
  func.func @transform_4(%arg0: i32, %arg1: i32) -> (i32, i32, i32) {
    %c0_i32 = arith.constant 0 : i32
    %c0_i32_0 = arith.constant 0 : i32
    %c0_i32_1 = arith.constant 0 : i32
    %c0_i32_2 = arith.constant 0 : i32
    return %c0_i32, %c0_i32_0, %c0_i32_1 : i32, i32, i32
  }
  func.func @transform_5(%arg0: i32, %arg1: i32) -> (i32, i32) {
    %c0_i32 = arith.constant 0 : i32
    %c0_i32_0 = arith.constant 0 : i32
    %c0_i32_1 = arith.constant 0 : i32
    return %c0_i32, %c0_i32_0 : i32, i32
  }
  func.func @transform_6(%arg0: i32, %arg1: i32) -> (i32, i32) {
    %c0_i32 = arith.constant 0 : i32
    %c0_i32_0 = arith.constant 0 : i32
    %c0_i32_1 = arith.constant 0 : i32
    return %c0_i32, %c0_i32_0 : i32, i32
  }
  func.func @transform_7(%arg0: i32, %arg1: i32) -> (i32, i32, i32) {
    %c0_i32 = arith.constant 0 : i32
    %c0_i32_0 = arith.constant 0 : i32
    %c0_i32_1 = arith.constant 0 : i32
    return %c0_i32, %arg1, %c0_i32_0 : i32, i32, i32
  }
  func.func @transform_8(%arg0: i32, %arg1: i32) -> (i32, i32, i32) {
    %c0_i32 = arith.constant 0 : i32
    %c0_i32_0 = arith.constant 0 : i32
    return %arg0, %arg1, %c0_i32 : i32, i32, i32
  }
  func.func @transform_9(%arg0: i32, %arg1: i32) -> (i32, i32, i32, i32) {
    %c0_i32 = arith.constant 0 : i32
    %c0_i32_0 = arith.constant 0 : i32
    %c0_i32_1 = arith.constant 0 : i32
    return %arg0, %arg1, %c0_i32, %c0_i32_0 : i32, i32, i32, i32
  }
}

module attributes {stable_mosaic.version = 11 : i64} {
  func.func @_bn_relu_kernel(%arg0: i32, %arg1: i32, %arg2: memref<1x64x128xf32, #tpu.memory_space<vmem>>, %arg3: memref<1x128xf32, #tpu.memory_space<vmem>>, %arg4: memref<1x128xf32, #tpu.memory_space<vmem>>, %arg5: memref<1x64x128xf32, #tpu.memory_space<vmem>>) attributes {dimension_semantics = [#tpu.dimension_semantics<parallel>, #tpu.dimension_semantics<parallel>], iteration_bounds = array<i64: 2, 1>, scalar_prefetch = 0 : i64, scratch_operands = 0 : i64, tpu.core_type = #tpu.core_type<tc>, window_params = [{transform_indices = @transform_0, window_bounds = array<i64: 1, 64, 128>}, {pipeline_mode = #tpu.pipeline_mode<synchronous>, transform_indices = @transform_1, window_bounds = array<i64: 1, 128>}, {pipeline_mode = #tpu.pipeline_mode<synchronous>, transform_indices = @transform_2, window_bounds = array<i64: 1, 128>}, {transform_indices = @transform_3, window_bounds = array<i64: 1, 64, 128>}]} {
    %c0 = arith.constant 0 : index
    %c0_0 = arith.constant 0 : index
    %c0_1 = arith.constant 0 : index
    %0 = vector.load %arg2[%c0, %c0_0, %c0_1] : memref<1x64x128xf32, #tpu.memory_space<vmem>>, vector<1x64x128xf32>
    %1 = vector.shape_cast %0 : vector<1x64x128xf32> to vector<64x128xf32>
    %c0_2 = arith.constant 0 : index
    %c0_3 = arith.constant 0 : index
    %2 = vector.load %arg3[%c0_2, %c0_3] : memref<1x128xf32, #tpu.memory_space<vmem>>, vector<1x128xf32>
    %3 = vector.broadcast %2 : vector<1x128xf32> to vector<64x128xf32>
    %4 = arith.mulf %1, %3 : vector<64x128xf32>
    %c0_4 = arith.constant 0 : index
    %c0_5 = arith.constant 0 : index
    %5 = vector.load %arg4[%c0_4, %c0_5] : memref<1x128xf32, #tpu.memory_space<vmem>>, vector<1x128xf32>
    %6 = vector.broadcast %5 : vector<1x128xf32> to vector<64x128xf32>
    %7 = arith.addf %4, %6 : vector<64x128xf32>
    %cst = arith.constant 0.000000e+00 : f32
    %8 = vector.broadcast %cst : f32 to vector<64x128xf32>
    %9 = arith.maximumf %7, %8 : vector<64x128xf32>
    %c0_6 = arith.constant 0 : index
    %c0_7 = arith.constant 0 : index
    %c0_8 = arith.constant 0 : index
    %10 = vector.load %arg5[%c0_6, %c0_7, %c0_8] : memref<1x64x128xf32, #tpu.memory_space<vmem>>, vector<1x64x128xf32>
    %11 = vector.shape_cast %10 : vector<1x64x128xf32> to vector<64x128xf32>
    %12 = vector.shape_cast %9 : vector<64x128xf32> to vector<1x64x128xf32>
    tpu.vector_store %arg5[%c0_6, %c0_7, %c0_8], %12 {strides = array<i32>} : memref<1x64x128xf32, #tpu.memory_space<vmem>>, vector<1x64x128xf32>,
    return
  }
  func.func @transform_0(%arg0: i32, %arg1: i32) -> (i32, i32, i32) {
    %c0_i32 = arith.constant 0 : i32
    %c0_i32_0 = arith.constant 0 : i32
    return %arg0, %arg1, %c0_i32 : i32, i32, i32
  }
  func.func @transform_1(%arg0: i32, %arg1: i32) -> (i32, i32) {
    %c0_i32 = arith.constant 0 : i32
    %c0_i32_0 = arith.constant 0 : i32
    %c0_i32_1 = arith.constant 0 : i32
    return %c0_i32, %c0_i32_0 : i32, i32
  }
  func.func @transform_2(%arg0: i32, %arg1: i32) -> (i32, i32) {
    %c0_i32 = arith.constant 0 : i32
    %c0_i32_0 = arith.constant 0 : i32
    %c0_i32_1 = arith.constant 0 : i32
    return %c0_i32, %c0_i32_0 : i32, i32
  }
  func.func @transform_3(%arg0: i32, %arg1: i32) -> (i32, i32, i32) {
    %c0_i32 = arith.constant 0 : i32
    %c0_i32_0 = arith.constant 0 : i32
    return %arg0, %arg1, %c0_i32 : i32, i32, i32
  }
}

</mosaic_0001>

<llo_original>
// kernel: compress_forward.5
$region0: #{compress_forward.5}
  #allocation0 [shape = 'u32[]', space=smem, size = 0x4, offset = 0x4, fixed_abs, tag = 'smem constant byte address 0x4 - core index']
  #allocation1 [shape = 'u32[144,128]{1,0:T(1,128)}', space=vmem, size = 0x12000, scoped, tag = 'internal scratch']
  %s0 = inlined_call_operand.vmem [shape: f32[2,64,128], index: 0, kind: input, shape index: {}]
  %s1 = inlined_call_operand.vmem [shape: f32[1,128], index: 1, kind: input, shape index: {}]
  %s2 = inlined_call_operand.vmem [shape: f32[1,128], index: 2, kind: input, shape index: {}]
  %s3 = inlined_call_operand.vmem [shape: f32[2,64,128], index: 3, kind: output, shape index: {}]
  %s4 = sld [smem:[#allocation0]]
  $region45: #{compress_forward.5} parent=0
    _
  %s6 = ssub.s32 1, %s4
  %s7 = scalar_select 0, %s6, %s4
  loop: start=0, step=1, limit=4
  $region2: #{compress_forward.5} parent=0 // loop_pre_header
    _
  $region3: #{compress_forward.5} parent=0 // loop_header
    %s9 = sphi 0, %s13
    %p10 = scmp.ge.s32.totalorder %s9, 4
    %s16 = sphi 0, %s28
    %s17 = sphi 0, %s24
    %s18 = sphi 0, %s16
    %s19 = sphi 0, %s17
    %s20 = sphi 0, %s18
    %s21 = sphi 0, %s19
    %s33 = sphi 0, %s35
    %s36 = sphi 0, %s33
    %s37 = sphi 0, %s36
    %s53 = sphi 0, %s37
    %s57 = sphi 0, %s57
    %s59 = sphi 0, %s57
    %s60 = sphi 0, %s59
    %s74 = sphi 0, %s60
    %s78 = sphi 0, %s78
    %s80 = sphi 0, %s78
    %s81 = sphi 0, %s80
    %s95 = sphi 0, %s81
    %s103 = sphi 0, %s105
    %s106 = sphi 0, %s103
    %s107 = sphi 0, %s106
    %s123 = sphi 0, %s107
  $region4: #{compress_forward.5} parent=0 // loop_header_branch
    %12 = sbr.rel (%p10) target = $region8
  $region5: #{compress_forward.5} parent=0 // loop_body
    %s14 = ssub.s32 %s9, 1
    %s15 = ssub.s32 %s9, 2
    %s22 = sadd.s32 1, %s17
    %p23 = scmp.ge.s32.totalorder %s22, 1
    %s24 = scalar_select %p23, 0, %s22
    %s25 = sadd.s32 1, %s16
    %s26 = scalar_select %p23, %s25, %s16
    %p27 = scmp.ge.s32.totalorder %s26, 2
    %s28 = scalar_select %p27, 0, %s26
    %s29 = ssub.s32 %s16, %s28
    %s30 = ssub.s32 %s17, %s24
    %s31 = sor.u32 %s29, %s30
    %p32 = scmp.eq.s32.totalorder %s31, 0
    %s34 = sadd.s32 %s33, 1
    %s35 = scalar_select %p32, %s33, %s34
    %p38 = pneg %p32
    %p39 = scmp.eq.s32.totalorder %s9, 1
    %p40 = por %p38, %p39
    %p41 = scmp.ne.s32.totalorder %s33, %s36
    %p42 = scmp.eq.s32.totalorder %s9, 0
    %p43 = por %p41, %p42
    %p44 = scmp.ne.s32.totalorder %s33, %s36
    %p45 = scmp.eq.s32.totalorder %s14, 1
    %p46 = por %p44, %p45
    %p47 = scmp.ne.s32.totalorder %s36, %s37
    %p48 = scmp.eq.s32.totalorder %s14, 0
    %p49 = por %p47, %p48
    %p50 = scmp.ne.s32.totalorder %s36, %s37
    %p51 = scmp.eq.s32.totalorder %s15, 1
    %p52 = por %p50, %p51
    %p54 = scmp.ne.s32.totalorder %s37, %s53
    %p55 = scmp.eq.s32.totalorder %s15, 0
    %p56 = por %p54, %p55
    %s58 = sadd.s32 %s57, 1
    %p61 = scmp.eq.s32.totalorder %s9, 1
    %p62 = scmp.ne.s32.totalorder %s57, %s59
    %p63 = scmp.eq.s32.totalorder %s9, 0
    %p64 = por %p62, %p63
    %p65 = scmp.ne.s32.totalorder %s57, %s59
    %p66 = scmp.eq.s32.totalorder %s14, 1
    %p67 = por %p65, %p66
    %p68 = scmp.ne.s32.totalorder %s59, %s60
    %p69 = scmp.eq.s32.totalorder %s14, 0
    %p70 = por %p68, %p69
    %p71 = scmp.ne.s32.totalorder %s59, %s60
    %p72 = scmp.eq.s32.totalorder %s15, 1
    %p73 = por %p71, %p72
    %p75 = scmp.ne.s32.totalorder %s60, %s74
    %p76 = scmp.eq.s32.totalorder %s15, 0
    %p77 = por %p75, %p76
    %s79 = sadd.s32 %s78, 1
    %p82 = scmp.eq.s32.totalorder %s9, 1
    %p83 = scmp.ne.s32.totalorder %s78, %s80
    %p84 = scmp.eq.s32.totalorder %s9, 0
    %p85 = por %p83, %p84
    %p86 = scmp.ne.s32.totalorder %s78, %s80
    %p87 = scmp.eq.s32.totalorder %s14, 1
    %p88 = por %p86, %p87
    %p89 = scmp.ne.s32.totalorder %s80, %s81
    %p90 = scmp.eq.s32.totalorder %s14, 0
    %p91 = por %p89, %p90
    %p92 = scmp.ne.s32.totalorder %s80, %s81
    %p93 = scmp.eq.s32.totalorder %s15, 1
    %p94 = por %p92, %p93
    %p96 = scmp.ne.s32.totalorder %s81, %s95
    %p97 = scmp.eq.s32.totalorder %s15, 0
    %p98 = por %p96, %p97
    %s99 = ssub.s32 %s16, %s28
    %s100 = ssub.s32 %s17, %s24
    %s101 = sor.u32 %s99, %s100
    %p102 = scmp.eq.s32.totalorder %s101, 0
    %s104 = sadd.s32 %s103, 1
    %s105 = scalar_select %p102, %s103, %s104
    %p108 = pneg %p102
    %p109 = scmp.eq.s32.totalorder %s9, 1
    %p110 = por %p108, %p109
    %p111 = scmp.ne.s32.totalorder %s103, %s106
    %p112 = scmp.eq.s32.totalorder %s9, 0
    %p113 = por %p111, %p112
    %p114 = scmp.ne.s32.totalorder %s103, %s106
    %p115 = scmp.eq.s32.totalorder %s14, 1
    %p116 = por %p114, %p115
    %p117 = scmp.ne.s32.totalorder %s106, %s107
    %p118 = scmp.eq.s32.totalorder %s14, 0
    %p119 = por %p117, %p118
    %p120 = scmp.ne.s32.totalorder %s106, %s107
    %p121 = scmp.eq.s32.totalorder %s15, 1
    %p122 = por %p120, %p121
    %p124 = scmp.ne.s32.totalorder %s107, %s123
    %p125 = scmp.eq.s32.totalorder %s15, 0
    %p126 = por %p124, %p125
    %p127 = scmp.le.s32.totalorder 1, %s9
    %p128 = scmp.lt.s32.totalorder %s9, 3
    %p129 = pnand %p127, %p128
    %p130 = pneg %p129
    // Predicated region
    $region9: #{compress_forward.5} parent=5 // pred_check
      _
    $region10: #{compress_forward.5} parent=5 // pred_check_branch
      %132 = sbr.rel (%p129) target = $region12
    $region11: #{compress_forward.5} parent=5 // pred_region
      %s133 = ssub.s32 %s9, 1
      // Predicated region
      $region13: #{compress_forward.5} parent=11 // pred_check
        %p134 = pneg %p70
      $region14: #{compress_forward.5} parent=11 // pred_check_branch
        %136 = sbr.rel (%p134) target = $region16
      $region15: #{compress_forward.5} parent=11 // pred_region
        _
      $region16: #{compress_forward.5} parent=11 // pred_fallthru
        _
      // Predicated region
      $region17: #{compress_forward.5} parent=11 // pred_check
        %p137 = pneg %p91
      $region18: #{compress_forward.5} parent=11 // pred_check_branch
        %139 = sbr.rel (%p137) target = $region20
      $region19: #{compress_forward.5} parent=11 // pred_region
        _
      $region20: #{compress_forward.5} parent=11 // pred_fallthru
        _
    $region12: #{compress_forward.5} parent=5 // pred_fallthru
      _
    %p140 = scmp.lt.s32.totalorder %s9, 2
    // Predicated region
    $region21: #{compress_forward.5} parent=5 // pred_check
      %p141 = pneg %p140
    $region22: #{compress_forward.5} parent=5 // pred_check_branch
      %143 = sbr.rel (%p141) target = $region24
    $region23: #{compress_forward.5} parent=5 // pred_region
      // Predicated region
      $region25: #{compress_forward.5} parent=23 // pred_check
        %p144 = pneg %p43
      $region26: #{compress_forward.5} parent=23 // pred_check_branch
        %146 = sbr.rel (%p144) target = $region28
      $region27: #{compress_forward.5} parent=23 // pred_region
        %s147 = smul.u32 8, %s17
        %p148 = scmp.lt.s32.totalorder %s16, 1
        %s149 = scalar_select %p148, %s16, 1
        %p150 = scmp.lt.s32.totalorder %s147, 7
        %s151 = scalar_select %p150, %s147, 7
        %s152 = smul.addr %s149, 8
        %s153 = sadd.s32 %s151, %s152
        %s154 = smul.addr %s153, 8
        %s155 = scalar_lea.vmem %s0, %s154
        %s156 = smul.u32 8, %s17
      $region28: #{compress_forward.5} parent=23 // pred_fallthru
        _
    $region24: #{compress_forward.5} parent=5 // pred_fallthru
      _
    %p157 = scmp.le.s32.totalorder 1, %s9
    %p158 = scmp.lt.s32.totalorder %s9, 3
    %p159 = pnand %p157, %p158
    %p160 = pneg %p159
    // Predicated region
    $region29: #{compress_forward.5} parent=5 // pred_check
      _
    $region30: #{compress_forward.5} parent=5 // pred_check_branch
      %162 = sbr.rel (%p159) target = $region32
    $region31: #{compress_forward.5} parent=5 // pred_region
      %s163 = ssub.s32 %s9, 1
      %s164 = smul.u32 8, %s19
      %p165 = scmp.lt.s32.totalorder %s18, 1
      %s166 = scalar_select %p165, %s18, 1
      %p167 = scmp.lt.s32.totalorder %s164, 7
      %s168 = scalar_select %p167, %s164, 7
      %s169 = smul.addr %s166, 8
      %s170 = sadd.s32 %s168, %s169
      %s171 = smul.addr %s170, 8
      %s172 = scalar_lea.vmem %s0, %s171
      %p173 = pneg %p49
      %p174 = pneg %p46
      %p175 = pneg %p70
      %p176 = pneg %p67
      %p177 = pneg %p91
      %p178 = pneg %p88
      %p179 = pneg %p119
      %p180 = pneg %p116
      %s181 = smul.u32 8, %s19
      %p182 = scmp.lt.s32.totalorder %s18, 1
      %s183 = scalar_select %p182, %s18, 1
      %p184 = scmp.lt.s32.totalorder %s181, 7
      %s185 = scalar_select %p184, %s181, 7
      %s186 = smul.addr %s183, 8
      %s187 = sadd.s32 %s185, %s186
      %s188 = smul.addr %s187, 8
      %s189 = scalar_lea.vmem %s3, %s188
      %s190 = smul.u32 8, %s19
      %p191 = scmp.lt.s32.totalorder %s18, 1
      %s192 = scalar_select %p191, %s18, 1
      %p193 = scmp.lt.s32.totalorder %s190, 7
      %s194 = scalar_select %p193, %s190, 7
      %s195 = smul.addr %s192, 8
      %s196 = sadd.s32 %s194, %s195
      %s197 = smul.addr %s196, 8
      %s198 = scalar_lea.vmem %s0, %s197
      %s199 = smul.u32 8, %s19
      %s200 = smul.u32 8, %s19
      %p201 = scmp.lt.s32.totalorder %s18, 1
      %s202 = scalar_select %p201, %s18, 1
      %p203 = scmp.lt.s32.totalorder %s200, 7
      %s204 = scalar_select %p203, %s200, 7
      %s205 = smul.addr %s202, 8
      %s206 = sadd.s32 %s204, %s205
      %s207 = smul.addr %s206, 8
      %s208 = scalar_lea.vmem %s3, %s207
      %s209 = smul.u32 8, %s19
      %v210 = vld [vmem:[%s198] sm:$0xff]
      %v211 = vld [vmem:[%s198 + $0x8] sm:$0xff]
      %v212 = vld [vmem:[%s198 + $0x10] sm:$0xff]
      %v213 = vld [vmem:[%s198 + $0x18] sm:$0xff]
      %v214 = vld [vmem:[%s198 + $0x20] sm:$0xff]
      %v215 = vld [vmem:[%s198 + $0x28] sm:$0xff]
      %v216 = vld [vmem:[%s198 + $0x30] sm:$0xff]
      %v217 = vld [vmem:[%s198 + $0x38] sm:$0xff]
      %v218 = vld [vmem:[%s1] sm:$0x1]
      %v220 = vlaneseq
      %v221 = vshrl.u32 %v220, 7
      %v222 = vsub.s32 0, %v221
      %v223 = vrot.slane %v218, %v222
      %v225 = vmul.f32 %v210, %v223
      %v226 = vmul.f32 %v211, %v223
      %v227 = vmul.f32 %v212, %v223
      %v228 = vmul.f32 %v213, %v223
      %v229 = vmul.f32 %v214, %v223
      %v230 = vmul.f32 %v215, %v223
      %v231 = vmul.f32 %v216, %v223
      %v232 = vmul.f32 %v217, %v223
      %v233 = vld [vmem:[%s2] sm:$0x1]
      %v235 = vlaneseq
      %v236 = vshrl.u32 %v235, 7
      %v237 = vsub.s32 0, %v236
      %v238 = vrot.slane %v233, %v237
      %v240 = vadd.f32 %v225, %v238
      %v241 = vadd.f32 %v226, %v238
      %v242 = vadd.f32 %v227, %v238
      %v243 = vadd.f32 %v228, %v238
      %v244 = vadd.f32 %v229, %v238
      %v245 = vadd.f32 %v230, %v238
      %v246 = vadd.f32 %v231, %v238
      %v247 = vadd.f32 %v232, %v238
      %v248 = vmax.f32 %v240, 0.0
      %v249 = vmax.f32 %v241, 0.0
      %v250 = vmax.f32 %v242, 0.0
      %v251 = vmax.f32 %v243, 0.0
      %v252 = vmax.f32 %v244, 0.0
      %v253 = vmax.f32 %v245, 0.0
      %v254 = vmax.f32 %v246, 0.0
      %v255 = vmax.f32 %v247, 0.0
      %256 = vst [vmem:[%s208] sm:$0xff] %v248
      %257 = vst [vmem:[%s208 + $0x8] sm:$0xff] %v249
      %258 = vst [vmem:[%s208 + $0x10] sm:$0xff] %v250
      %259 = vst [vmem:[%s208 + $0x18] sm:$0xff] %v251
      %260 = vst [vmem:[%s208 + $0x20] sm:$0xff] %v252
      %261 = vst [vmem:[%s208 + $0x28] sm:$0xff] %v253
      %262 = vst [vmem:[%s208 + $0x30] sm:$0xff] %v254
      %263 = vst [vmem:[%s208 + $0x38] sm:$0xff] %v255
      %s264 = smul.u32 8, %s19
      %p265 = scmp.lt.s32.totalorder %s18, 1
      %s266 = scalar_select %p265, %s18, 1
      %p267 = scmp.lt.s32.totalorder %s264, 7
      %s268 = scalar_select %p267, %s264, 7
      %s269 = smul.addr %s266, 8
      %s270 = sadd.s32 %s268, %s269
      %s271 = smul.addr %s270, 8
      %s272 = scalar_lea.vmem %s3, %s271
      // Predicated region
      $region33: #{compress_forward.5} parent=31 // pred_check
        %p273 = pneg %p116
      $region34: #{compress_forward.5} parent=31 // pred_check_branch
        %275 = sbr.rel (%p273) target = $region36
      $region35: #{compress_forward.5} parent=31 // pred_region
        %s276 = smul.u32 8, %s19
      $region36: #{compress_forward.5} parent=31 // pred_fallthru
        _
    $region32: #{compress_forward.5} parent=5 // pred_fallthru
      _
    %p277 = scmp.le.s32.totalorder 2, %s9
    // Predicated region
    $region37: #{compress_forward.5} parent=5 // pred_check
      %p278 = pneg %p277
    $region38: #{compress_forward.5} parent=5 // pred_check_branch
      %280 = sbr.rel (%p278) target = $region40
    $region39: #{compress_forward.5} parent=5 // pred_region
      %s281 = ssub.s32 %s9, 2
      // Predicated region
      $region41: #{compress_forward.5} parent=39 // pred_check
        %p282 = pneg %p122
      $region42: #{compress_forward.5} parent=39 // pred_check_branch
        %284 = sbr.rel (%p282) target = $region44
      $region43: #{compress_forward.5} parent=39 // pred_region
        %s285 = smul.u32 8, %s21
        %p286 = scmp.lt.s32.totalorder %s20, 1
        %s287 = scalar_select %p286, %s20, 1
        %p288 = scmp.lt.s32.totalorder %s285, 7
        %s289 = scalar_select %p288, %s285, 7
        %s290 = smul.addr %s287, 8
        %s291 = sadd.s32 %s289, %s290
        %s292 = smul.addr %s291, 8
        %s293 = scalar_lea.vmem %s3, %s292
      $region44: #{compress_forward.5} parent=39 // pred_fallthru
        _
    $region40: #{compress_forward.5} parent=5 // pred_fallthru
      _
  $region6: #{compress_forward.5} parent=0 // loop_footer
    %s13 = sadd.s32 1, %s9
  $region7: #{compress_forward.5} parent=0 // loop_footer_branch
    %8 = sbr.rel target = $region3
  $region8: #{compress_forward.5} parent=0 // loop_exit
    _

// kernel: compress_forward.3
$region0: #{compress_forward.3}
  #allocation0 [shape = 'u32[]', space=smem, size = 0x4, offset = 0x4, fixed_abs, tag = 'smem constant byte address 0x4 - core index']
  #allocation1 [shape = 'u32[144,128]{1,0:T(1,128)}', space=vmem, size = 0x12000, scoped, tag = 'internal scratch']
  %s0 = inlined_call_operand.vmem [shape: f32[2,152,4], index: 0, kind: input, shape index: {}, may-alias: {0,1,2,3}]
  %s1 = inlined_call_operand.vmem [shape: f32[2,152,4], index: 1, kind: input, shape index: {}, may-alias: {0,1,2,3}]
  %s2 = inlined_call_operand.vmem [shape: f32[2,152,4], index: 2, kind: input, shape index: {}, may-alias: {0,1,2,3}]
  %s3 = inlined_call_operand.vmem [shape: f32[2,152,4], index: 3, kind: input, shape index: {}, may-alias: {0,1,2,3}]
  %s4 = inlined_call_operand.vmem [shape: f32[9,4,128], index: 4, kind: input, shape index: {}]
  %s5 = inlined_call_operand.vmem [shape: f32[1,4], index: 5, kind: input, shape index: {}]
  %s6 = inlined_call_operand.vmem [shape: f32[1,4], index: 6, kind: input, shape index: {}]
  %s7 = inlined_call_operand.vmem [shape: f32[1,128,1], index: 7, kind: input, shape index: {}]
  %s8 = inlined_call_operand.vmem [shape: f32[2,128,128], index: 8, kind: output, shape index: {0}]
  %s9 = inlined_call_operand.vmem [shape: f32[2,2,2,128], index: 9, kind: output, shape index: {1}]
  %10 = xla_tuple %s8, %s9
  %s11 = sld [smem:[#allocation0]]
  $region73: #{compress_forward.3} parent=0
    _
  %s13 = ssub.s32 1, %s11
  %s14 = scalar_select 0, %s13, %s11
  loop: start=0, step=1, limit=6
  $region2: #{compress_forward.3} parent=0 // loop_pre_header
    _
  $region3: #{compress_forward.3} parent=0 // loop_header
    %s16 = sphi 0, %s20
    %p17 = scmp.ge.s32.totalorder %s16, 6
    %s23 = sphi 0, %s35
    %s24 = sphi 0, %s31
    %s25 = sphi 0, %s23
    %s26 = sphi 0, %s24
    %s27 = sphi 0, %s25
    %s28 = sphi 0, %s26
    %s40 = sphi 0, %s42
    %s43 = sphi 0, %s40
    %s44 = sphi 0, %s43
    %s60 = sphi 0, %s44
    %s72 = sphi 0, %s74
    %s75 = sphi 0, %s72
    %s76 = sphi 0, %s75
    %s92 = sphi 0, %s76
    %s106 = sphi 0, %s108
    %s109 = sphi 0, %s106
    %s110 = sphi 0, %s109
    %s126 = sphi 0, %s110
    %s140 = sphi 0, %s142
    %s143 = sphi 0, %s140
    %s144 = sphi 0, %s143
    %s160 = sphi 0, %s144
    %s164 = sphi 0, %s164
    %s166 = sphi 0, %s164
    %s167 = sphi 0, %s166
    %s181 = sphi 0, %s167
    %s185 = sphi 0, %s185
    %s187 = sphi 0, %s185
    %s188 = sphi 0, %s187
    %s202 = sphi 0, %s188
    %s206 = sphi 0, %s206
    %s208 = sphi 0, %s206
    %s209 = sphi 0, %s208
    %s223 = sphi 0, %s209
    %s229 = sphi 0, %s231
    %s232 = sphi 0, %s229
    %s233 = sphi 0, %s232
    %s249 = sphi 0, %s233
    %s257 = sphi 0, %s259
    %s260 = sphi 0, %s257
    %s261 = sphi 0, %s260
    %s277 = sphi 0, %s261
    %s285 = sphi 0, %s287
    %s288 = sphi 0, %s285
    %s289 = sphi 0, %s288
    %s305 = sphi 0, %s289
  $region4: #{compress_forward.3} parent=0 // loop_header_branch
    %19 = sbr.rel (%p17) target = $region8
  $region5: #{compress_forward.3} parent=0 // loop_body
    %s21 = ssub.s32 %s16, 1
    %s22 = ssub.s32 %s16, 2
    %s29 = sadd.s32 1, %s24
    %p30 = scmp.ge.s32.totalorder %s29, 2
    %s31 = scalar_select %p30, 0, %s29
    %s32 = sadd.s32 1, %s23
    %s33 = scalar_select %p30, %s32, %s23
    %p34 = scmp.ge.s32.totalorder %s33, 2
    %s35 = scalar_select %p34, 0, %s33
    %s36 = ssub.s32 %s23, %s35
    %s37 = ssub.s32 %s24, %s31
    %s38 = sor.u32 %s36, %s37
    %p39 = scmp.eq.s32.totalorder %s38, 0
    %s41 = sadd.s32 %s40, 1
    %s42 = scalar_select %p39, %s40, %s41
    %p45 = pneg %p39
    %p46 = scmp.eq.s32.totalorder %s16, 3
    %p47 = por %p45, %p46
    %p48 = scmp.ne.s32.totalorder %s40, %s43
    %p49 = scmp.eq.s32.totalorder %s16, 0
    %p50 = por %p48, %p49
    %p51 = scmp.ne.s32.totalorder %s40, %s43
    %p52 = scmp.eq.s32.totalorder %s21, 3
    %p53 = por %p51, %p52
    %p54 = scmp.ne.s32.totalorder %s43, %s44
    %p55 = scmp.eq.s32.totalorder %s21, 0
    %p56 = por %p54, %p55
    %p57 = scmp.ne.s32.totalorder %s43, %s44
    %p58 = scmp.eq.s32.totalorder %s22, 3
    %p59 = por %p57, %p58
    %p61 = scmp.ne.s32.totalorder %s44, %s60
    %p62 = scmp.eq.s32.totalorder %s22, 0
    %p63 = por %p61, %p62
    %s64 = sadd.s32 %s24, 1
    %s65 = smul.u32 %s64, 8
    %s66 = sadd.s32 %s31, 1
    %s67 = smul.u32 %s66, 8
    %s68 = ssub.s32 %s23, %s35
    %s69 = ssub.s32 %s65, %s67
    %s70 = sor.u32 %s68, %s69
    %p71 = scmp.eq.s32.totalorder %s70, 0
    %s73 = sadd.s32 %s72, 1
    %s74 = scalar_select %p71, %s72, %s73
    %p77 = pneg %p71
    %p78 = scmp.eq.s32.totalorder %s16, 3
    %p79 = por %p77, %p78
    %p80 = scmp.ne.s32.totalorder %s72, %s75
    %p81 = scmp.eq.s32.totalorder %s16, 0
    %p82 = por %p80, %p81
    %p83 = scmp.ne.s32.totalorder %s72, %s75
    %p84 = scmp.eq.s32.totalorder %s21, 3
    %p85 = por %p83, %p84
    %p86 = scmp.ne.s32.totalorder %s75, %s76
    %p87 = scmp.eq.s32.totalorder %s21, 0
    %p88 = por %p86, %p87
    %p89 = scmp.ne.s32.totalorder %s75, %s76
    %p90 = scmp.eq.s32.totalorder %s22, 3
    %p91 = por %p89, %p90
    %p93 = scmp.ne.s32.totalorder %s76, %s92
    %p94 = scmp.eq.s32.totalorder %s22, 0
    %p95 = por %p93, %p94
    %s96 = sadd.s32 %s24, 1
    %s97 = smul.u32 %s96, 8
    %s98 = sadd.s32 %s97, 1
    %s99 = sadd.s32 %s31, 1
    %s100 = smul.u32 %s99, 8
    %s101 = sadd.s32 %s100, 1
    %s102 = ssub.s32 %s23, %s35
    %s103 = ssub.s32 %s98, %s101
    %s104 = sor.u32 %s102, %s103
    %p105 = scmp.eq.s32.totalorder %s104, 0
    %s107 = sadd.s32 %s106, 1
    %s108 = scalar_select %p105, %s106, %s107
    %p111 = pneg %p105
    %p112 = scmp.eq.s32.totalorder %s16, 3
    %p113 = por %p111, %p112
    %p114 = scmp.ne.s32.totalorder %s106, %s109
    %p115 = scmp.eq.s32.totalorder %s16, 0
    %p116 = por %p114, %p115
    %p117 = scmp.ne.s32.totalorder %s106, %s109
    %p118 = scmp.eq.s32.totalorder %s21, 3
    %p119 = por %p117, %p118
    %p120 = scmp.ne.s32.totalorder %s109, %s110
    %p121 = scmp.eq.s32.totalorder %s21, 0
    %p122 = por %p120, %p121
    %p123 = scmp.ne.s32.totalorder %s109, %s110
    %p124 = scmp.eq.s32.totalorder %s22, 3
    %p125 = por %p123, %p124
    %p127 = scmp.ne.s32.totalorder %s110, %s126
    %p128 = scmp.eq.s32.totalorder %s22, 0
    %p129 = por %p127, %p128
    %s130 = sadd.s32 %s24, 1
    %s131 = smul.u32 %s130, 8
    %s132 = sadd.s32 %s131, 2
    %s133 = sadd.s32 %s31, 1
    %s134 = smul.u32 %s133, 8
    %s135 = sadd.s32 %s134, 2
    %s136 = ssub.s32 %s23, %s35
    %s137 = ssub.s32 %s132, %s135
    %s138 = sor.u32 %s136, %s137
    %p139 = scmp.eq.s32.totalorder %s138, 0
    %s141 = sadd.s32 %s140, 1
    %s142 = scalar_select %p139, %s140, %s141
    %p145 = pneg %p139
    %p146 = scmp.eq.s32.totalorder %s16, 3
    %p147 = por %p145, %p146
    %p148 = scmp.ne.s32.totalorder %s140, %s143
    %p149 = scmp.eq.s32.totalorder %s16, 0
    %p150 = por %p148, %p149
    %p151 = scmp.ne.s32.totalorder %s140, %s143
    %p152 = scmp.eq.s32.totalorder %s21, 3
    %p153 = por %p151, %p152
    %p154 = scmp.ne.s32.totalorder %s143, %s144
    %p155 = scmp.eq.s32.totalorder %s21, 0
    %p156 = por %p154, %p155
    %p157 = scmp.ne.s32.totalorder %s143, %s144
    %p158 = scmp.eq.s32.totalorder %s22, 3
    %p159 = por %p157, %p158
    %p161 = scmp.ne.s32.totalorder %s144, %s160
    %p162 = scmp.eq.s32.totalorder %s22, 0
    %p163 = por %p161, %p162
    %s165 = sadd.s32 %s164, 1
    %p168 = scmp.eq.s32.totalorder %s16, 3
    %p169 = scmp.ne.s32.totalorder %s164, %s166
    %p170 = scmp.eq.s32.totalorder %s16, 0
    %p171 = por %p169, %p170
    %p172 = scmp.ne.s32.totalorder %s164, %s166
    %p173 = scmp.eq.s32.totalorder %s21, 3
    %p174 = por %p172, %p173
    %p175 = scmp.ne.s32.totalorder %s166, %s167
    %p176 = scmp.eq.s32.totalorder %s21, 0
    %p177 = por %p175, %p176
    %p178 = scmp.ne.s32.totalorder %s166, %s167
    %p179 = scmp.eq.s32.totalorder %s22, 3
    %p180 = por %p178, %p179
    %p182 = scmp.ne.s32.totalorder %s167, %s181
    %p183 = scmp.eq.s32.totalorder %s22, 0
    %p184 = por %p182, %p183
    %s186 = sadd.s32 %s185, 1
    %p189 = scmp.eq.s32.totalorder %s16, 3
    %p190 = scmp.ne.s32.totalorder %s185, %s187
    %p191 = scmp.eq.s32.totalorder %s16, 0
    %p192 = por %p190, %p191
    %p193 = scmp.ne.s32.totalorder %s185, %s187
    %p194 = scmp.eq.s32.totalorder %s21, 3
    %p195 = por %p193, %p194
    %p196 = scmp.ne.s32.totalorder %s187, %s188
    %p197 = scmp.eq.s32.totalorder %s21, 0
    %p198 = por %p196, %p197
    %p199 = scmp.ne.s32.totalorder %s187, %s188
    %p200 = scmp.eq.s32.totalorder %s22, 3
    %p201 = por %p199, %p200
    %p203 = scmp.ne.s32.totalorder %s188, %s202
    %p204 = scmp.eq.s32.totalorder %s22, 0
    %p205 = por %p203, %p204
    %s207 = sadd.s32 %s206, 1
    %p210 = scmp.eq.s32.totalorder %s16, 3
    %p211 = scmp.ne.s32.totalorder %s206, %s208
    %p212 = scmp.eq.s32.totalorder %s16, 0
    %p213 = por %p211, %p212
    %p214 = scmp.ne.s32.totalorder %s206, %s208
    %p215 = scmp.eq.s32.totalorder %s21, 3
    %p216 = por %p214, %p215
    %p217 = scmp.ne.s32.totalorder %s208, %s209
    %p218 = scmp.eq.s32.totalorder %s21, 0
    %p219 = por %p217, %p218
    %p220 = scmp.ne.s32.totalorder %s208, %s209
    %p221 = scmp.eq.s32.totalorder %s22, 3
    %p222 = por %p220, %p221
    %p224 = scmp.ne.s32.totalorder %s209, %s223
    %p225 = scmp.eq.s32.totalorder %s22, 0
    %p226 = por %p224, %p225
    %s227 = ssub.s32 %s24, %s31
    %p228 = scmp.eq.s32.totalorder %s227, 0
    %s230 = sadd.s32 %s229, 1
    %s231 = scalar_select %p228, %s229, %s230
    %p234 = pneg %p228
    %p235 = scmp.eq.s32.totalorder %s16, 3
    %p236 = por %p234, %p235
    %p237 = scmp.ne.s32.totalorder %s229, %s232
    %p238 = scmp.eq.s32.totalorder %s16, 0
    %p239 = por %p237, %p238
    %p240 = scmp.ne.s32.totalorder %s229, %s232
    %p241 = scmp.eq.s32.totalorder %s21, 3
    %p242 = por %p240, %p241
    %p243 = scmp.ne.s32.totalorder %s232, %s233
    %p244 = scmp.eq.s32.totalorder %s21, 0
    %p245 = por %p243, %p244
    %p246 = scmp.ne.s32.totalorder %s232, %s233
    %p247 = scmp.eq.s32.totalorder %s22, 3
    %p248 = por %p246, %p247
    %p250 = scmp.ne.s32.totalorder %s233, %s249
    %p251 = scmp.eq.s32.totalorder %s22, 0
    %p252 = por %p250, %p251
    %s253 = ssub.s32 %s23, %s35
    %s254 = ssub.s32 %s24, %s31
    %s255 = sor.u32 %s253, %s254
    %p256 = scmp.eq.s32.totalorder %s255, 0
    %s258 = sadd.s32 %s257, 1
    %s259 = scalar_select %p256, %s257, %s258
    %p262 = pneg %p256
    %p263 = scmp.eq.s32.totalorder %s16, 3
    %p264 = por %p262, %p263
    %p265 = scmp.ne.s32.totalorder %s257, %s260
    %p266 = scmp.eq.s32.totalorder %s16, 0
    %p267 = por %p265, %p266
    %p268 = scmp.ne.s32.totalorder %s257, %s260
    %p269 = scmp.eq.s32.totalorder %s21, 3
    %p270 = por %p268, %p269
    %p271 = scmp.ne.s32.totalorder %s260, %s261
    %p272 = scmp.eq.s32.totalorder %s21, 0
    %p273 = por %p271, %p272
    %p274 = scmp.ne.s32.totalorder %s260, %s261
    %p275 = scmp.eq.s32.totalorder %s22, 3
    %p276 = por %p274, %p275
    %p278 = scmp.ne.s32.totalorder %s261, %s277
    %p279 = scmp.eq.s32.totalorder %s22, 0
    %p280 = por %p278, %p279
    %s281 = ssub.s32 %s23, %s35
    %s282 = ssub.s32 %s24, %s31
    %s283 = sor.u32 %s281, %s282
    %p284 = scmp.eq.s32.totalorder %s283, 0
    %s286 = sadd.s32 %s285, 1
    %s287 = scalar_select %p284, %s285, %s286
    %p290 = pneg %p284
    %p291 = scmp.eq.s32.totalorder %s16, 3
    %p292 = por %p290, %p291
    %p293 = scmp.ne.s32.totalorder %s285, %s288
    %p294 = scmp.eq.s32.totalorder %s16, 0
    %p295 = por %p293, %p294
    %p296 = scmp.ne.s32.totalorder %s285, %s288
    %p297 = scmp.eq.s32.totalorder %s21, 3
    %p298 = por %p296, %p297
    %p299 = scmp.ne.s32.totalorder %s288, %s289
    %p300 = scmp.eq.s32.totalorder %s21, 0
    %p301 = por %p299, %p300
    %p302 = scmp.ne.s32.totalorder %s288, %s289
    %p303 = scmp.eq.s32.totalorder %s22, 3
    %p304 = por %p302, %p303
    %p306 = scmp.ne.s32.totalorder %s289, %s305
    %p307 = scmp.eq.s32.totalorder %s22, 0
    %p308 = por %p306, %p307
    %p309 = scmp.le.s32.totalorder 1, %s16
    %p310 = scmp.lt.s32.totalorder %s16, 5
    %p311 = pnand %p309, %p310
    %p312 = pneg %p311
    // Predicated region
    $region9: #{compress_forward.3} parent=5 // pred_check
      _
    $region10: #{compress_forward.3} parent=5 // pred_check_branch
      %314 = sbr.rel (%p311) target = $region12
    $region11: #{compress_forward.3} parent=5 // pred_region
      %s315 = ssub.s32 %s16, 1
      // Predicated region
      $region13: #{compress_forward.3} parent=11 // pred_check
        %p316 = pneg %p177
      $region14: #{compress_forward.3} parent=11 // pred_check_branch
        %318 = sbr.rel (%p316) target = $region16
      $region15: #{compress_forward.3} parent=11 // pred_region
        _
      $region16: #{compress_forward.3} parent=11 // pred_fallthru
        _
      // Predicated region
      $region17: #{compress_forward.3} parent=11 // pred_check
        %p319 = pneg %p198
      $region18: #{compress_forward.3} parent=11 // pred_check_branch
        %321 = sbr.rel (%p319) target = $region20
      $region19: #{compress_forward.3} parent=11 // pred_region
        _
      $region20: #{compress_forward.3} parent=11 // pred_fallthru
        _
      // Predicated region
      $region21: #{compress_forward.3} parent=11 // pred_check
        %p322 = pneg %p219
      $region22: #{compress_forward.3} parent=11 // pred_check_branch
        %324 = sbr.rel (%p322) target = $region24
      $region23: #{compress_forward.3} parent=11 // pred_region
        _
      $region24: #{compress_forward.3} parent=11 // pred_fallthru
        _
    $region12: #{compress_forward.3} parent=5 // pred_fallthru
      _
    %p325 = scmp.lt.s32.totalorder %s16, 4
    // Predicated region
    $region25: #{compress_forward.3} parent=5 // pred_check
      %p326 = pneg %p325
    $region26: #{compress_forward.3} parent=5 // pred_check_branch
      %328 = sbr.rel (%p326) target = $region28
    $region27: #{compress_forward.3} parent=5 // pred_region
      // Predicated region
      $region29: #{compress_forward.3} parent=27 // pred_check
        %p329 = pneg %p50
      $region30: #{compress_forward.3} parent=27 // pred_check_branch
        %331 = sbr.rel (%p329) target = $region32
      $region31: #{compress_forward.3} parent=27 // pred_region
        %s332 = smul.u32 8, %s24
        %s333 = ssub.s32 19, %s332
        %p334 = scmp.lt.s32.totalorder %s333, 8
        %s335 = scalar_select %p334, %s333, 8
        %s336 = smul.u32 128, %s335
        %p337 = scmp.lt.s32.totalorder %s23, 1
        %s338 = scalar_select %p337, %s23, 1
        %p339 = scmp.lt.s32.totalorder %s332, 18
        %s340 = scalar_select %p339, %s332, 18
        %s341 = smul.addr %s338, 19
        %s342 = sadd.s32 %s340, %s341
        %s343 = smul.addr %s342, 8
        %s344 = scalar_lea.vmem %s0, %s343
        %s345 = smul.u32 8, %s24
        %s346 = ssub.s32 19, %s345
        %p347 = scmp.lt.s32.totalorder %s346, 8
        %s348 = scalar_select %p347, %s346, 8
        %s349 = smul.u32 128, %s348
      $region32: #{compress_forward.3} parent=27 // pred_fallthru
        _
      // Predicated region
      $region33: #{compress_forward.3} parent=27 // pred_check
        %p350 = pneg %p82
      $region34: #{compress_forward.3} parent=27 // pred_check_branch
        %352 = sbr.rel (%p350) target = $region36
      $region35: #{compress_forward.3} parent=27 // pred_region
        %s353 = sadd.s32 %s24, 1
        %s354 = smul.u32 %s353, 8
        %p355 = scmp.lt.s32.totalorder %s23, 1
        %s356 = scalar_select %p355, %s23, 1
        %p357 = scmp.lt.s32.totalorder %s354, 18
        %s358 = scalar_select %p357, %s354, 18
        %s359 = smul.addr %s356, 19
        %s360 = sadd.s32 %s358, %s359
        %s361 = smul.addr %s360, 8
        %s362 = scalar_lea.vmem %s1, %s361
        %s363 = sadd.s32 %s24, 1
        %s364 = smul.u32 %s363, 8
      $region36: #{compress_forward.3} parent=27 // pred_fallthru
        _
      // Predicated region
      $region37: #{compress_forward.3} parent=27 // pred_check
        %p365 = pneg %p116
      $region38: #{compress_forward.3} parent=27 // pred_check_branch
        %367 = sbr.rel (%p365) target = $region40
      $region39: #{compress_forward.3} parent=27 // pred_region
        %s368 = sadd.s32 %s24, 1
        %s369 = smul.u32 %s368, 8
        %s370 = sadd.s32 %s369, 1
        %p371 = scmp.lt.s32.totalorder %s23, 1
        %s372 = scalar_select %p371, %s23, 1
        %p373 = scmp.lt.s32.totalorder %s370, 18
        %s374 = scalar_select %p373, %s370, 18
        %s375 = smul.addr %s372, 19
        %s376 = sadd.s32 %s374, %s375
        %s377 = smul.addr %s376, 8
        %s378 = scalar_lea.vmem %s2, %s377
        %s379 = sadd.s32 %s24, 1
        %s380 = smul.u32 %s379, 8
        %s381 = sadd.s32 %s380, 1
      $region40: #{compress_forward.3} parent=27 // pred_fallthru
        _
      // Predicated region
      $region41: #{compress_forward.3} parent=27 // pred_check
        %p382 = pneg %p150
      $region42: #{compress_forward.3} parent=27 // pred_check_branch
        %384 = sbr.rel (%p382) target = $region44
      $region43: #{compress_forward.3} parent=27 // pred_region
        %s385 = sadd.s32 %s24, 1
        %s386 = smul.u32 %s385, 8
        %s387 = sadd.s32 %s386, 2
        %p388 = scmp.lt.s32.totalorder %s23, 1
        %s389 = scalar_select %p388, %s23, 1
        %p390 = scmp.lt.s32.totalorder %s387, 18
        %s391 = scalar_select %p390, %s387, 18
        %s392 = smul.addr %s389, 19
        %s393 = sadd.s32 %s391, %s392
        %s394 = smul.addr %s393, 8
        %s395 = scalar_lea.vmem %s3, %s394
        %s396 = sadd.s32 %s24, 1
        %s397 = smul.u32 %s396, 8
        %s398 = sadd.s32 %s397, 2
      $region44: #{compress_forward.3} parent=27 // pred_fallthru
        _
      // Predicated region
      $region45: #{compress_forward.3} parent=27 // pred_check
        %p399 = pneg %p239
      $region46: #{compress_forward.3} parent=27 // pred_check_branch
        %401 = sbr.rel (%p399) target = $region48
      $region47: #{compress_forward.3} parent=27 // pred_region
        %s402 = smul.u32 8, %s24
        %p403 = scmp.lt.s32.totalorder %s402, 15
        %s404 = scalar_select %p403, %s402, 15
        %s405 = smul.addr %s404, 8
        %s406 = scalar_lea.vmem %s7, %s405
        %s407 = smul.u32 8, %s24
      $region48: #{compress_forward.3} parent=27 // pred_fallthru
        _
    $region28: #{compress_forward.3} parent=5 // pred_fallthru
      _
    %p408 = scmp.le.s32.totalorder 1, %s16
    %p409 = scmp.lt.s32.totalorder %s16, 5
    %p410 = pnand %p408, %p409
    %p411 = pneg %p410
    // Predicated region
    $region49: #{compress_forward.3} parent=5 // pred_check
      _
    $region50: #{compress_forward.3} parent=5 // pred_check_branch
      %413 = sbr.rel (%p410) target = $region52
    $region51: #{compress_forward.3} parent=5 // pred_region
      %s414 = ssub.s32 %s16, 1
      %s415 = smul.u32 8, %s26
      %s416 = ssub.s32 19, %s415
      %p417 = scmp.lt.s32.totalorder %s416, 8
      %s418 = scalar_select %p417, %s416, 8
      %s419 = smul.u32 128, %s418
      %p420 = scmp.lt.s32.totalorder %s25, 1
      %s421 = scalar_select %p420, %s25, 1
      %p422 = scmp.lt.s32.totalorder %s415, 18
      %s423 = scalar_select %p422, %s415, 18
      %s424 = smul.addr %s421, 19
      %s425 = sadd.s32 %s423, %s424
      %s426 = smul.addr %s425, 8
      %s427 = scalar_lea.vmem %s0, %s426
      %p428 = pneg %p56
      %p429 = pneg %p53
      %s430 = sadd.s32 %s26, 1
      %s431 = smul.u32 %s430, 8
      %p432 = scmp.lt.s32.totalorder %s25, 1
      %s433 = scalar_select %p432, %s25, 1
      %p434 = scmp.lt.s32.totalorder %s431, 18
      %s435 = scalar_select %p434, %s431, 18
      %s436 = smul.addr %s433, 19
      %s437 = sadd.s32 %s435, %s436
      %s438 = smul.addr %s437, 8
      %s439 = scalar_lea.vmem %s1, %s438
      %p440 = pneg %p88
      %p441 = pneg %p85
      %s442 = sadd.s32 %s26, 1
      %s443 = smul.u32 %s442, 8
      %s444 = sadd.s32 %s443, 1
      %p445 = scmp.lt.s32.totalorder %s25, 1
      %s446 = scalar_select %p445, %s25, 1
      %p447 = scmp.lt.s32.totalorder %s444, 18
      %s448 = scalar_select %p447, %s444, 18
      %s449 = smul.addr %s446, 19
      %s450 = sadd.s32 %s448, %s449
      %s451 = smul.addr %s450, 8
      %s452 = scalar_lea.vmem %s2, %s451
      %p453 = pneg %p122
      %p454 = pneg %p119
      %s455 = sadd.s32 %s26, 1
      %s456 = smul.u32 %s455, 8
      %s457 = sadd.s32 %s456, 2
      %p458 = scmp.lt.s32.totalorder %s25, 1
      %s459 = scalar_select %p458, %s25, 1
      %p460 = scmp.lt.s32.totalorder %s457, 18
      %s461 = scalar_select %p460, %s457, 18
      %s462 = smul.addr %s459, 19
      %s463 = sadd.s32 %s461, %s462
      %s464 = smul.addr %s463, 8
      %s465 = scalar_lea.vmem %s3, %s464
      %p466 = pneg %p156
      %p467 = pneg %p153
      %p468 = pneg %p177
      %p469 = pneg %p174
      %p470 = pneg %p198
      %p471 = pneg %p195
      %p472 = pneg %p219
      %p473 = pneg %p216
      %s474 = smul.u32 8, %s26
      %p475 = scmp.lt.s32.totalorder %s474, 15
      %s476 = scalar_select %p475, %s474, 15
      %s477 = smul.addr %s476, 8
      %s478 = scalar_lea.vmem %s7, %s477
      %p479 = pneg %p245
      %p480 = pneg %p242
      %p481 = pneg %p273
      %p482 = pneg %p270
      %s483 = smul.u32 8, %s26
      %p484 = scmp.lt.s32.totalorder %s25, 1
      %s485 = scalar_select %p484, %s25, 1
      %p486 = scmp.lt.s32.totalorder %s483, 15
      %s487 = scalar_select %p486, %s483, 15
      %s488 = smul.addr %s485, 16
      %s489 = sadd.s32 %s487, %s488
      %s490 = smul.addr %s489, 8
      %s491 = scalar_lea.vmem %s8, %s490
      %p492 = pneg %p301
      %p493 = pneg %p298
      %p494 = scmp.lt.s32.totalorder %s25, 1
      %s495 = scalar_select %p494, %s25, 1
      %p496 = scmp.lt.s32.totalorder %s26, 1
      %s497 = scalar_select %p496, %s26, 1
      %s498 = smul.addr %s495, 2
      %s499 = sadd.s32 %s497, %s498
      %s500 = smul.addr %s499, 2
      %s501 = scalar_lea.vmem %s9, %s500
      %s502 = smul.u32 8, %s26
      %s503 = ssub.s32 19, %s502
      %p504 = scmp.lt.s32.totalorder %s503, 8
      %s505 = scalar_select %p504, %s503, 8
      %s506 = smul.u32 128, %s505
      %p507 = scmp.lt.s32.totalorder %s25, 1
      %s508 = scalar_select %p507, %s25, 1
      %p509 = scmp.lt.s32.totalorder %s502, 18
      %s510 = scalar_select %p509, %s502, 18
      %s511 = smul.addr %s508, 19
      %s512 = sadd.s32 %s510, %s511
      %s513 = smul.addr %s512, 8
      %s514 = scalar_lea.vmem %s0, %s513
      %s515 = smul.u32 8, %s26
      %s516 = ssub.s32 19, %s515
      %p517 = scmp.lt.s32.totalorder %s516, 8
      %s518 = scalar_select %p517, %s516, 8
      %s519 = smul.u32 128, %s518
      %s520 = sadd.s32 %s26, 1
      %s521 = smul.u32 %s520, 8
      %p522 = scmp.lt.s32.totalorder %s25, 1
      %s523 = scalar_select %p522, %s25, 1
      %p524 = scmp.lt.s32.totalorder %s521, 18
      %s525 = scalar_select %p524, %s521, 18
      %s526 = smul.addr %s523, 19
      %s527 = sadd.s32 %s525, %s526
      %s528 = smul.addr %s527, 8
      %s529 = scalar_lea.vmem %s1, %s528
      %s530 = sadd.s32 %s26, 1
      %s531 = smul.u32 %s530, 8
      %s532 = sadd.s32 %s26, 1
      %s533 = smul.u32 %s532, 8
      %s534 = sadd.s32 %s533, 1
      %p535 = scmp.lt.s32.totalorder %s25, 1
      %s536 = scalar_select %p535, %s25, 1
      %p537 = scmp.lt.s32.totalorder %s534, 18
      %s538 = scalar_select %p537, %s534, 18
      %s539 = smul.addr %s536, 19
      %s540 = sadd.s32 %s538, %s539
      %s541 = smul.addr %s540, 8
      %s542 = scalar_lea.vmem %s2, %s541
      %s543 = sadd.s32 %s26, 1
      %s544 = smul.u32 %s543, 8
      %s545 = sadd.s32 %s544, 1
      %s546 = sadd.s32 %s26, 1
      %s547 = smul.u32 %s546, 8
      %s548 = sadd.s32 %s547, 2
      %p549 = scmp.lt.s32.totalorder %s25, 1
      %s550 = scalar_select %p549, %s25, 1
      %p551 = scmp.lt.s32.totalorder %s548, 18
      %s552 = scalar_select %p551, %s548, 18
      %s553 = smul.addr %s550, 19
      %s554 = sadd.s32 %s552, %s553
      %s555 = smul.addr %s554, 8
      %s556 = scalar_lea.vmem %s3, %s555
      %s557 = sadd.s32 %s26, 1
      %s558 = smul.u32 %s557, 8
      %s559 = sadd.s32 %s558, 2
      %s560 = smul.u32 8, %s26
      %p561 = scmp.lt.s32.totalorder %s560, 15
      %s562 = scalar_select %p561, %s560, 15
      %s563 = smul.addr %s562, 8
      %s564 = scalar_lea.vmem %s7, %s563
      %s565 = smul.u32 8, %s26
      %s566 = smul.u32 8, %s26
      %p567 = scmp.lt.s32.totalorder %s25, 1
      %s568 = scalar_select %p567, %s25, 1
      %p569 = scmp.lt.s32.totalorder %s566, 15
      %s570 = scalar_select %p569, %s566, 15
      %s571 = smul.addr %s568, 16
      %s572 = sadd.s32 %s570, %s571
      %s573 = smul.addr %s572, 8
      %s574 = scalar_lea.vmem %s8, %s573
      %s575 = smul.u32 8, %s26
      %p576 = scmp.lt.s32.totalorder %s25, 1
      %s577 = scalar_select %p576, %s25, 1
      %p578 = scmp.lt.s32.totalorder %s26, 1
      %s579 = scalar_select %p578, %s26, 1
      %s580 = smul.addr %s577, 2
      %s581 = sadd.s32 %s579, %s580
      %s582 = smul.addr %s581, 2
      %s583 = scalar_lea.vmem %s9, %s582
      %v584 = vld [vmem:[%s514] sm:$0xff]
      %v585 = vld [vmem:[%s514 + $0x8] sm:$0xff]
      %v586 = vld [vmem:[%s514 + $0x10] sm:$0xff]
      %v587 = vld [vmem:[%s514 + $0x18] sm:$0xff]
      %v588 = vld [vmem:[%s514 + $0x20] sm:$0xff]
      %v589 = vld [vmem:[%s514 + $0x28] sm:$0xff]
      %v590 = vld [vmem:[%s514 + $0x30] sm:$0xff]
      %v591 = vld [vmem:[%s514 + $0x38] sm:$0xff]
      %v592 = vld [vmem:[%s529] sm:$0xff]
      %v593 = vld [vmem:[%s542] sm:$0xff]
      %v594 = vld [vmem:[%s556] sm:$0xff]
      %v595 = vld [vmem:[%s4] sm:$0xf]
      %s596 = scalar_lea.vmem %s4, 4
      %v597 = vld [vmem:[%s596] sm:$0xf]
      %vm607 = vcmask 1046528
      %v608 = vrot.slane %v584, 1
      %v609 = vrot.slane %v585, 1
      %v610 = vsel %vm607, %v608, %v609
      %v611 = vrot.slane %v586, 1
      %v612 = vsel %vm607, %v609, %v611
      %v613 = vrot.slane %v587, 1
      %v614 = vsel %vm607, %v611, %v613
      %v615 = vrot.slane %v588, 1
      %v616 = vsel %vm607, %v613, %v615
      %v617 = vrot.slane %v589, 1
      %v618 = vsel %vm607, %v615, %v617
      %v619 = vrot.slane %v590, 1
      %v620 = vsel %vm607, %v617, %v619
      %v621 = vrot.slane %v591, 1
      %v622 = vsel %vm607, %v619, %v621
      %v623 = vrot.slane %v592, 1
      %v624 = vsel %vm607, %v621, %v623
      %vm625 = vcmask 31744
      %v626 = vsel %vm625, %v610, 0
      %v628 = vsel %vm625, %v612, 0
      %v630 = vsel %vm625, %v614, 0
      %v632 = vsel %vm625, %v616, 0
      %v634 = vsel %vm625, %v618, 0
      %v636 = vsel %vm625, %v620, 0
      %v638 = vsel %vm625, %v622, 0
      %v640 = vsel %vm625, %v624, 0
      %vm642 = vcmask 1043456
      %v644 = vsel %vm642, %v597, 0
      %646 = vmatprep.subr.mxu0 0.0
      %647 = vmatpush1.msra.mxu0 %v644
      %648 = vmatprep.subr.mxu0 0.0
      %649 = vmatpush1.msra.mxu0 0.0
      %650 = vmatprep.subr.mxu0 0.0
      %651 = vmatpush1.msra.mxu0 0.0
      %652 = vmatprep.subr.mxu0 0.0
      %653 = vmatpush1.msra.mxu0 0.0
      %654 = vmatprep.subr.mxu0 0.0
      %655 = vmatpush1.msra.mxu0 0.0
      %656 = vmatprep.subr.mxu0 0.0
      %657 = vmatpush1.msra.mxu0 0.0
      %658 = vmatprep.subr.mxu0 0.0
      %659 = vmatpush1.msra.mxu0 0.0
      %660 = vmatprep.subr.mxu0 0.0
      %661 = vmatpush1.msra.mxu0 0.0
      %662 = vmatprep.subr.mxu0 0.0
      %663 = vmatpush1.msra.mxu0 0.0
      %664 = vmatprep.subr.mxu0 0.0
      %665 = vmatpush1.msra.mxu0 0.0
      %666 = vmatprep.subr.mxu0 0.0
      %667 = vmatpush1.msra.mxu0 0.0
      %668 = vmatprep.subr.mxu0 0.0
      %669 = vmatpush1.msra.mxu0 0.0
      %670 = vmatprep.subr.mxu0 0.0
      %671 = vmatpush1.msra.mxu0 0.0
      %672 = vmatprep.subr.mxu0 0.0
      %673 = vmatpush1.msra.mxu0 0.0
      %674 = vmatprep.subr.mxu0 0.0
      %675 = vmatpush1.msra.mxu0 0.0
      %676 = vmatprep.subr.mxu0 0.0
      %677 = vmatpush1.msra.mxu0 0.0
      %678 = vmatprep.subr.mxu0 0.0
      %679 = vmatpush1.msra.mxu0 0.0
      %680 = vmatprep.subr.mxu0 0.0
      %681 = vmatpush1.msra.mxu0 0.0
      %682 = vmatprep.subr.mxu0 0.0
      %683 = vmatpush1.msra.mxu0 0.0
      %684 = vmatprep.subr.mxu0 0.0
      %685 = vmatpush1.msra.mxu0 0.0
      %686 = vmatprep.subr.mxu0 0.0
      %687 = vmatpush1.msra.mxu0 0.0
      %688 = vmatprep.subr.mxu0 0.0
      %689 = vmatpush1.msra.mxu0 0.0
      %690 = vmatprep.subr.mxu0 0.0
      %691 = vmatpush1.msra.mxu0 0.0
      %692 = vmatprep.subr.mxu0 0.0
      %693 = vmatpush1.msra.mxu0 0.0
      %694 = vmatprep.subr.mxu0 0.0
      %695 = vmatpush1.msra.mxu0 0.0
      %696 = vmatprep.subr.mxu0 0.0
      %697 = vmatpush1.msra.mxu0 0.0
      %698 = vmatprep.subr.mxu0 0.0
      %699 = vmatpush1.msra.mxu0 0.0
      %700 = vmatprep.subr.mxu0 0.0
      %701 = vmatpush1.msra.mxu0 0.0
      %702 = vmatprep.subr.mxu0 0.0
      %703 = vmatpush1.msra.mxu0 0.0
      %704 = vmatprep.subr.mxu0 0.0
      %705 = vmatpush1.msra.mxu0 0.0
      %706 = vmatprep.subr.mxu0 0.0
      %707 = vmatpush1.msra.mxu0 0.0
      %708 = vmatprep.subr.mxu0 0.0
      %709 = vmatpush1.msra.mxu0 0.0
      %710 = vmatprep.mubr.f32.mxu0 0.0
      %711 = vmatmul.mubr.f32.gmra.mrb[0].mxu0 %v626
      %v712 = vpop.f32.mrb[0].mxu0
      %v713 = vadd.f32 0.0, %v712
      %v714 = vpop.f32.mrb[0].mxu0
      %715 = vmatprep.mubr.f32.mxu0 0.0
      %716 = vmatmul.mubr.f32.gmra.mrb[0].mxu0 %v628
      %v717 = vpop.f32.mrb[0].mxu0
      %v718 = vadd.f32 0.0, %v717
      %v719 = vpop.f32.mrb[0].mxu0
      %720 = vmatprep.mubr.f32.mxu0 0.0
      %721 = vmatmul.mubr.f32.gmra.mrb[0].mxu0 %v630
      %v722 = vpop.f32.mrb[0].mxu0
      %v723 = vadd.f32 0.0, %v722
      %v724 = vpop.f32.mrb[0].mxu0
      %725 = vmatprep.mubr.f32.mxu0 0.0
      %726 = vmatmul.mubr.f32.gmra.mrb[0].mxu0 %v632
      %v727 = vpop.f32.mrb[0].mxu0
      %v728 = vadd.f32 0.0, %v727
      %v729 = vpop.f32.mrb[0].mxu0
      %730 = vmatprep.mubr.f32.mxu0 0.0
      %731 = vmatmul.mubr.f32.gmra.mrb[0].mxu0 %v634
      %v732 = vpop.f32.mrb[0].mxu0
      %v733 = vadd.f32 0.0, %v732
      %v734 = vpop.f32.mrb[0].mxu0
      %735 = vmatprep.mubr.f32.mxu0 0.0
      %736 = vmatmul.mubr.f32.gmra.mrb[0].mxu0 %v636
      %v737 = vpop.f32.mrb[0].mxu0
      %v738 = vadd.f32 0.0, %v737
      %v739 = vpop.f32.mrb[0].mxu0
      %740 = vmatprep.mubr.f32.mxu0 0.0
      %741 = vmatmul.mubr.f32.gmra.mrb[0].mxu0 %v638
      %v742 = vpop.f32.mrb[0].mxu0
      %v743 = vadd.f32 0.0, %v742
      %v744 = vpop.f32.mrb[0].mxu0
      %745 = vmatprep.mubr.f32.mxu0 0.0
      %746 = vmatmul.mubr.f32.gmra.mrb[0].mxu0 %v640
      %v747 = vpop.f32.mrb[0].mxu0
      %v748 = vadd.f32 0.0, %v747
      %v749 = vpop.f32.mrb[0].mxu0
      %750 = vdwg.mxu0
      %v751 = vsel %vm625, %v584, 0
      %v753 = vsel %vm625, %v585, 0
      %v755 = vsel %vm625, %v586, 0
      %v757 = vsel %vm625, %v587, 0
      %v759 = vsel %vm625, %v588, 0
      %v761 = vsel %vm625, %v589, 0
      %v763 = vsel %vm625, %v590, 0
      %v765 = vsel %vm625, %v591, 0
      %v768 = vsel %vm642, %v595, 0
      %770 = vmatprep.subr.mxu0 0.0
      %771 = vmatpush1.msra.mxu0 %v768
      %772 = vmatprep.subr.mxu0 0.0
      %773 = vmatpush1.msra.mxu0 0.0
      %774 = vmatprep.subr.mxu0 0.0
      %775 = vmatpush1.msra.mxu0 0.0
      %776 = vmatprep.subr.mxu0 0.0
      %777 = vmatpush1.msra.mxu0 0.0
      %778 = vmatprep.subr.mxu0 0.0
      %779 = vmatpush1.msra.mxu0 0.0
      %780 = vmatprep.subr.mxu0 0.0
      %781 = vmatpush1.msra.mxu0 0.0
      %782 = vmatprep.subr.mxu0 0.0
      %783 = vmatpush1.msra.mxu0 0.0
      %784 = vmatprep.subr.mxu0 0.0
      %785 = vmatpush1.msra.mxu0 0.0
      %786 = vmatprep.subr.mxu0 0.0
      %787 = vmatpush1.msra.mxu0 0.0
      %788 = vmatprep.subr.mxu0 0.0
      %789 = vmatpush1.msra.mxu0 0.0
      %790 = vmatprep.subr.mxu0 0.0
      %791 = vmatpush1.msra.mxu0 0.0
      %792 = vmatprep.subr.mxu0 0.0
      %793 = vmatpush1.msra.mxu0 0.0
      %794 = vmatprep.subr.mxu0 0.0
      %795 = vmatpush1.msra.mxu0 0.0
      %796 = vmatprep.subr.mxu0 0.0
      %797 = vmatpush1.msra.mxu0 0.0
      %798 = vmatprep.subr.mxu0 0.0
      %799 = vmatpush1.msra.mxu0 0.0
      %800 = vmatprep.subr.mxu0 0.0
      %801 = vmatpush1.msra.mxu0 0.0
      %802 = vmatprep.subr.mxu0 0.0
      %803 = vmatpush1.msra.mxu0 0.0
      %804 = vmatprep.subr.mxu0 0.0
      %805 = vmatpush1.msra.mxu0 0.0
      %806 = vmatprep.subr.mxu0 0.0
      %807 = vmatpush1.msra.mxu0 0.0
      %808 = vmatprep.subr.mxu0 0.0
      %809 = vmatpush1.msra.mxu0 0.0
      %810 = vmatprep.subr.mxu0 0.0
      %811 = vmatpush1.msra.mxu0 0.0
      %812 = vmatprep.subr.mxu0 0.0
      %813 = vmatpush1.msra.mxu0 0.0
      %814 = vmatprep.subr.mxu0 0.0
      %815 = vmatpush1.msra.mxu0 0.0
      %816 = vmatprep.subr.mxu0 0.0
      %817 = vmatpush1.msra.mxu0 0.0
      %818 = vmatprep.subr.mxu0 0.0
      %819 = vmatpush1.msra.mxu0 0.0
      %820 = vmatprep.subr.mxu0 0.0
      %821 = vmatpush1.msra.mxu0 0.0
      %822 = vmatprep.subr.mxu0 0.0
      %823 = vmatpush1.msra.mxu0 0.0
      %824 = vmatprep.subr.mxu0 0.0
      %825 = vmatpush1.msra.mxu0 0.0
      %826 = vmatprep.subr.mxu0 0.0
      %827 = vmatpush1.msra.mxu0 0.0
      %828 = vmatprep.subr.mxu0 0.0
      %829 = vmatpush1.msra.mxu0 0.0
      %830 = vmatprep.subr.mxu0 0.0
      %831 = vmatpush1.msra.mxu0 0.0
      %832 = vmatprep.subr.mxu0 0.0
      %833 = vmatpush1.msra.mxu0 0.0
      %834 = vmatprep.mubr.f32.mxu0 0.0
      %835 = vmatmul.mubr.f32.gmra.mrb[0].mxu0 %v751
      %v836 = vpop.f32.mrb[0].mxu0
      %v837 = vadd.f32 %v713, %v836
      %v838 = vpop.f32.mrb[0].mxu0
      %839 = vmatprep.mubr.f32.mxu0 0.0
      %840 = vmatmul.mubr.f32.gmra.mrb[0].mxu0 %v753
      %v841 = vpop.f32.mrb[0].mxu0
      %v842 = vadd.f32 %v718, %v841
      %v843 = vpop.f32.mrb[0].mxu0
      %844 = vmatprep.mubr.f32.mxu0 0.0
      %845 = vmatmul.mubr.f32.gmra.mrb[0].mxu0 %v755
      %v846 = vpop.f32.mrb[0].mxu0
      %v847 = vadd.f32 %v723, %v846
      %v848 = vpop.f32.mrb[0].mxu0
      %849 = vmatprep.mubr.f32.mxu0 0.0
      %850 = vmatmul.mubr.f32.gmra.mrb[0].mxu0 %v757
      %v851 = vpop.f32.mrb[0].mxu0
      %v852 = vadd.f32 %v728, %v851
      %v853 = vpop.f32.mrb[0].mxu0
      %854 = vmatprep.mubr.f32.mxu0 0.0
      %855 = vmatmul.mubr.f32.gmra.mrb[0].mxu0 %v759
      %v856 = vpop.f32.mrb[0].mxu0
      %v857 = vadd.f32 %v733, %v856
      %v858 = vpop.f32.mrb[0].mxu0
      %859 = vmatprep.mubr.f32.mxu0 0.0
      %860 = vmatmul.mubr.f32.gmra.mrb[0].mxu0 %v761
      %v861 = vpop.f32.mrb[0].mxu0
      %v862 = vadd.f32 %v738, %v861
      %v863 = vpop.f32.mrb[0].mxu0
      %864 = vmatprep.mubr.f32.mxu0 0.0
      %865 = vmatmul.mubr.f32.gmra.mrb[0].mxu0 %v763
      %v866 = vpop.f32.mrb[0].mxu0
      %v867 = vadd.f32 %v743, %v866
      %v868 = vpop.f32.mrb[0].mxu0
      %869 = vmatprep.mubr.f32.mxu0 0.0
      %870 = vmatmul.mubr.f32.gmra.mrb[0].mxu0 %v765
      %v871 = vpop.f32.mrb[0].mxu0
      %v872 = vadd.f32 %v748, %v871
      %v873 = vpop.f32.mrb[0].mxu0
      %874 = vdwg.mxu0
      %s875 = scalar_lea.vmem %s4, 8
      %v876 = vld [vmem:[%s875] sm:$0xf]
      %vm877 = vcmask 1045504
      %v878 = vrot.slane %v584, 2
      %v879 = vrot.slane %v585, 2
      %v880 = vsel %vm877, %v878, %v879
      %v881 = vrot.slane %v586, 2
      %v882 = vsel %vm877, %v879, %v881
      %v883 = vrot.slane %v587, 2
      %v884 = vsel %vm877, %v881, %v883
      %v885 = vrot.slane %v588, 2
      %v886 = vsel %vm877, %v883, %v885
      %v887 = vrot.slane %v589, 2
      %v888 = vsel %vm877, %v885, %v887
      %v889 = vrot.slane %v590, 2
      %v890 = vsel %vm877, %v887, %v889
      %v891 = vrot.slane %v591, 2
      %v892 = vsel %vm877, %v889, %v891
      %v893 = vrot.slane %v592, 2
      %v894 = vsel %vm877, %v891, %v893
      %v895 = vsel %vm625, %v880, 0
      %v897 = vsel %vm625, %v882, 0
      %v899 = vsel %vm625, %v884, 0
      %v901 = vsel %vm625, %v886, 0
      %v903 = vsel %vm625, %v888, 0
      %v905 = vsel %vm625, %v890, 0
      %v907 = vsel %vm625, %v892, 0
      %v909 = vsel %vm625, %v894, 0
      %v912 = vsel %vm642, %v876, 0
      %914 = vmatprep.subr.mxu0 0.0
      %915 = vmatpush1.msra.mxu0 %v912
      %916 = vmatprep.subr.mxu0 0.0
      %917 = vmatpush1.msra.mxu0 0.0
      %918 = vmatprep.subr.mxu0 0.0
      %919 = vmatpush1.msra.mxu0 0.0
      %920 = vmatprep.subr.mxu0 0.0
      %921 = vmatpush1.msra.mxu0 0.0
      %922 = vmatprep.subr.mxu0 0.0
      %923 = vmatpush1.msra.mxu0 0.0
      %924 = vmatprep.subr.mxu0 0.0
      %925 = vmatpush1.msra.mxu0 0.0
      %926 = vmatprep.subr.mxu0 0.0
      %927 = vmatpush1.msra.mxu0 0.0
      %928 = vmatprep.subr.mxu0 0.0
      %929 = vmatpush1.msra.mxu0 0.0
      %930 = vmatprep.subr.mxu0 0.0
      %931 = vmatpush1.msra.mxu0 0.0
      %932 = vmatprep.subr.mxu0 0.0
      %933 = vmatpush1.msra.mxu0 0.0
      %934 = vmatprep.subr.mxu0 0.0
      %935 = vmatpush1.msra.mxu0 0.0
      %936 = vmatprep.subr.mxu0 0.0
      %937 = vmatpush1.msra.mxu0 0.0
      %938 = vmatprep.subr.mxu0 0.0
      %939 = vmatpush1.msra.mxu0 0.0
      %940 = vmatprep.subr.mxu0 0.0
      %941 = vmatpush1.msra.mxu0 0.0
      %942 = vmatprep.subr.mxu0 0.0
      %943 = vmatpush1.msra.mxu0 0.0
      %944 = vmatprep.subr.mxu0 0.0
      %945 = vmatpush1.msra.mxu0 0.0
      %946 = vmatprep.subr.mxu0 0.0
      %947 = vmatpush1.msra.mxu0 0.0
      %948 = vmatprep.subr.mxu0 0.0
      %949 = vmatpush1.msra.mxu0 0.0
      %950 = vmatprep.subr.mxu0 0.0
      %951 = vmatpush1.msra.mxu0 0.0
      %952 = vmatprep.subr.mxu0 0.0
      %953 = vmatpush1.msra.mxu0 0.0
      %954 = vmatprep.subr.mxu0 0.0
      %955 = vmatpush1.msra.mxu0 0.0
      %956 = vmatprep.subr.mxu0 0.0
      %957 = vmatpush1.msra.mxu0 0.0
      %958 = vmatprep.subr.mxu0 0.0
      %959 = vmatpush1.msra.mxu0 0.0
      %960 = vmatprep.subr.mxu0 0.0
      %961 = vmatpush1.msra.mxu0 0.0
      %962 = vmatprep.subr.mxu0 0.0
      %963 = vmatpush1.msra.mxu0 0.0
      %964 = vmatprep.subr.mxu0 0.0
      %965 = vmatpush1.msra.mxu0 0.0
      %966 = vmatprep.subr.mxu0 0.0
      %967 = vmatpush1.msra.mxu0 0.0
      %968 = vmatprep.subr.mxu0 0.0
      %969 = vmatpush1.msra.mxu0 0.0
      %970 = vmatprep.subr.mxu0 0.0
      %971 = vmatpush1.msra.mxu0 0.0
      %972 = vmatprep.subr.mxu0 0.0
      %973 = vmatpush1.msra.mxu0 0.0
      %974 = vmatprep.subr.mxu0 0.0
      %975 = vmatpush1.msra.mxu0 0.0
      %976 = vmatprep.subr.mxu0 0.0
      %977 = vmatpush1.msra.mxu0 0.0
      %978 = vmatprep.mubr.f32.mxu0 0.0
      %979 = vmatmul.mubr.f32.gmra.mrb[0].mxu0 %v895
      %v980 = vpop.f32.mrb[0].mxu0
      %v981 = vadd.f32 0.0, %v980
      %v982 = vpop.f32.mrb[0].mxu0
      %983 = vmatprep.mubr.f32.mxu0 0.0
      %984 = vmatmul.mubr.f32.gmra.mrb[0].mxu0 %v897
      %v985 = vpop.f32.mrb[0].mxu0
      %v986 = vadd.f32 0.0, %v985
      %v987 = vpop.f32.mrb[0].mxu0
      %988 = vmatprep.mubr.f32.mxu0 0.0
      %989 = vmatmul.mubr.f32.gmra.mrb[0].mxu0 %v899
      %v990 = vpop.f32.mrb[0].mxu0
      %v991 = vadd.f32 0.0, %v990
      %v992 = vpop.f32.mrb[0].mxu0
      %993 = vmatprep.mubr.f32.mxu0 0.0
      %994 = vmatmul.mubr.f32.gmra.mrb[0].mxu0 %v901
      %v995 = vpop.f32.mrb[0].mxu0
      %v996 = vadd.f32 0.0, %v995
      %v997 = vpop.f32.mrb[0].mxu0
      %998 = vmatprep.mubr.f32.mxu0 0.0
      %999 = vmatmul.mubr.f32.gmra.mrb[0].mxu0 %v903
      %v1000 = vpop.f32.mrb[0].mxu0
      %v1001 = vadd.f32 0.0, %v1000
      %v1002 = vpop.f32.mrb[0].mxu0
      %1003 = vmatprep.mubr.f32.mxu0 0.0
      %1004 = vmatmul.mubr.f32.gmra.mrb[0].mxu0 %v905
      %v1005 = vpop.f32.mrb[0].mxu0
      %v1006 = vadd.f32 0.0, %v1005
      %v1007 = vpop.f32.mrb[0].mxu0
      %1008 = vmatprep.mubr.f32.mxu0 0.0
      %1009 = vmatmul.mubr.f32.gmra.mrb[0].mxu0 %v907
      %v1010 = vpop.f32.mrb[0].mxu0
      %v1011 = vadd.f32 0.0, %v1010
      %v1012 = vpop.f32.mrb[0].mxu0
      %1013 = vmatprep.mubr.f32.mxu0 0.0
      %1014 = vmatmul.mubr.f32.gmra.mrb[0].mxu0 %v909
      %v1015 = vpop.f32.mrb[0].mxu0
      %v1016 = vadd.f32 0.0, %v1015
      %v1017 = vpop.f32.mrb[0].mxu0
      %1018 = vdwg.mxu0
      %v1019 = vadd.f32 %v837, %v981
      %v1020 = vadd.f32 %v842, %v986
      %v1021 = vadd.f32 %v847, %v991
      %v1022 = vadd.f32 %v852, %v996
      %v1023 = vadd.f32 %v857, %v1001
      %v1024 = vadd.f32 %v862, %v1006
      %v1025 = vadd.f32 %v867, %v1011
      %v1026 = vadd.f32 %v872, %v1016
      %s1027 = scalar_lea.vmem %s4, 12
      %v1028 = vld [vmem:[%s1027] sm:$0xf]
      %v1029 = vsel %vm625, %v592, 0
      %v1032 = vsel %vm642, %v1028, 0
      %1034 = vmatprep.subr.mxu0 0.0
      %1035 = vmatpush1.msra.mxu0 %v1032
      %1036 = vmatprep.subr.mxu0 0.0
      %1037 = vmatpush1.msra.mxu0 0.0
      %1038 = vmatprep.subr.mxu0 0.0
      %1039 = vmatpush1.msra.mxu0 0.0
      %1040 = vmatprep.subr.mxu0 0.0
      %1041 = vmatpush1.msra.mxu0 0.0
      %1042 = vmatprep.subr.mxu0 0.0
      %1043 = vmatpush1.msra.mxu0 0.0
      %1044 = vmatprep.subr.mxu0 0.0
      %1045 = vmatpush1.msra.mxu0 0.0
      %1046 = vmatprep.subr.mxu0 0.0
      %1047 = vmatpush1.msra.mxu0 0.0
      %1048 = vmatprep.subr.mxu0 0.0
      %1049 = vmatpush1.msra.mxu0 0.0
      %1050 = vmatprep.subr.mxu0 0.0
      %1051 = vmatpush1.msra.mxu0 0.0
      %1052 = vmatprep.subr.mxu0 0.0
      %1053 = vmatpush1.msra.mxu0 0.0
      %1054 = vmatprep.subr.mxu0 0.0
      %1055 = vmatpush1.msra.mxu0 0.0
      %1056 = vmatprep.subr.mxu0 0.0
      %1057 = vmatpush1.msra.mxu0 0.0
      %1058 = vmatprep.subr.mxu0 0.0
      %1059 = vmatpush1.msra.mxu0 0.0
      %1060 = vmatprep.subr.mxu0 0.0
      %1061 = vmatpush1.msra.mxu0 0.0
      %1062 = vmatprep.subr.mxu0 0.0
      %1063 = vmatpush1.msra.mxu0 0.0
      %1064 = vmatprep.subr.mxu0 0.0
      %1065 = vmatpush1.msra.mxu0 0.0
      %1066 = vmatprep.subr.mxu0 0.0
      %1067 = vmatpush1.msra.mxu0 0.0
      %1068 = vmatprep.subr.mxu0 0.0
      %1069 = vmatpush1.msra.mxu0 0.0
      %1070 = vmatprep.subr.mxu0 0.0
      %1071 = vmatpush1.msra.mxu0 0.0
      %1072 = vmatprep.subr.mxu0 0.0
      %1073 = vmatpush1.msra.mxu0 0.0
      %1074 = vmatprep.subr.mxu0 0.0
      %1075 = vmatpush1.msra.mxu0 0.0
      %1076 = vmatprep.subr.mxu0 0.0
      %1077 = vmatpush1.msra.mxu0 0.0
      %1078 = vmatprep.subr.mxu0 0.0
      %1079 = vmatpush1.msra.mxu0 0.0
      %1080 = vmatprep.subr.mxu0 0.0
      %1081 = vmatpush1.msra.mxu0 0.0
      %1082 = vmatprep.subr.mxu0 0.0
      %1083 = vmatpush1.msra.mxu0 0.0
      %1084 = vmatprep.subr.mxu0 0.0
      %1085 = vmatpush1.msra.mxu0 0.0
      %1086 = vmatprep.subr.mxu0 0.0
      %1087 = vmatpush1.msra.mxu0 0.0
      %1088 = vmatprep.subr.mxu0 0.0
      %1089 = vmatpush1.msra.mxu0 0.0
      %1090 = vmatprep.subr.mxu0 0.0
      %1091 = vmatpush1.msra.mxu0 0.0
      %1092 = vmatprep.subr.mxu0 0.0
      %1093 = vmatpush1.msra.mxu0 0.0
      %1094 = vmatprep.subr.mxu0 0.0
      %1095 = vmatpush1.msra.mxu0 0.0
      %1096 = vmatprep.subr.mxu0 0.0
      %1097 = vmatpush1.msra.mxu0 0.0
      %1098 = vmatprep.mubr.f32.mxu0 0.0
      %1099 = vmatmul.mubr.f32.gmra.mrb[0].mxu0 %v753
      %v1100 = vpop.f32.mrb[0].mxu0
      %v1101 = vadd.f32 0.0, %v1100
      %v1102 = vpop.f32.mrb[0].mxu0
      %1103 = vmatprep.mubr.f32.mxu0 0.0
      %1104 = vmatmul.mubr.f32.gmra.mrb[0].mxu0 %v755
      %v1105 = vpop.f32.mrb[0].mxu0
      %v1106 = vadd.f32 0.0, %v1105
      %v1107 = vpop.f32.mrb[0].mxu0
      %1108 = vmatprep.mubr.f32.mxu0 0.0
      %1109 = vmatmul.mubr.f32.gmra.mrb[0].mxu0 %v757
      %v1110 = vpop.f32.mrb[0].mxu0
      %v1111 = vadd.f32 0.0, %v1110
      %v1112 = vpop.f32.mrb[0].mxu0
      %1113 = vmatprep.mubr.f32.mxu0 0.0
      %1114 = vmatmul.mubr.f32.gmra.mrb[0].mxu0 %v759
      %v1115 = vpop.f32.mrb[0].mxu0
      %v1116 = vadd.f32 0.0, %v1115
      %v1117 = vpop.f32.mrb[0].mxu0
      %1118 = vmatprep.mubr.f32.mxu0 0.0
      %1119 = vmatmul.mubr.f32.gmra.mrb[0].mxu0 %v761
      %v1120 = vpop.f32.mrb[0].mxu0
      %v1121 = vadd.f32 0.0, %v1120
      %v1122 = vpop.f32.mrb[0].mxu0
      %1123 = vmatprep.mubr.f32.mxu0 0.0
      %1124 = vmatmul.mubr.f32.gmra.mrb[0].mxu0 %v763
      %v1125 = vpop.f32.mrb[0].mxu0
      %v1126 = vadd.f32 0.0, %v1125
      %v1127 = vpop.f32.mrb[0].mxu0
      %1128 = vmatprep.mubr.f32.mxu0 0.0
      %1129 = vmatmul.mubr.f32.gmra.mrb[0].mxu0 %v765
      %v1130 = vpop.f32.mrb[0].mxu0
      %v1131 = vadd.f32 0.0, %v1130
      %v1132 = vpop.f32.mrb[0].mxu0
      %1133 = vmatprep.mubr.f32.mxu0 0.0
      %1134 = vmatmul.mubr.f32.gmra.mrb[0].mxu0 %v1029
      %v1135 = vpop.f32.mrb[0].mxu0
      %v1136 = vadd.f32 0.0, %v1135
      %v1137 = vpop.f32.mrb[0].mxu0
      %1138 = vdwg.mxu0
      %v1139 = vadd.f32 %v1019, %v1101
      %v1140 = vadd.f32 %v1020, %v1106
      %v1141 = vadd.f32 %v1021, %v1111
      %v1142 = vadd.f32 %v1022, %v1116
      %v1143 = vadd.f32 %v1023, %v1121
      %v1144 = vadd.f32 %v1024, %v1126
      %v1145 = vadd.f32 %v1025, %v1131
      %v1146 = vadd.f32 %v1026, %v1136
      %s1147 = scalar_lea.vmem %s4, 16
      %v1148 = vld [vmem:[%s1147] sm:$0xf]
      %v1150 = vrot.slane %v593, 1
      %v1151 = vsel %vm607, %v623, %v1150
      %v1152 = vsel %vm625, %v1151, 0
      %v1155 = vsel %vm642, %v1148, 0
      %1157 = vmatprep.subr.mxu0 0.0
      %1158 = vmatpush1.msra.mxu0 %v1155
      %1159 = vmatprep.subr.mxu0 0.0
      %1160 = vmatpush1.msra.mxu0 0.0
      %1161 = vmatprep.subr.mxu0 0.0
      %1162 = vmatpush1.msra.mxu0 0.0
      %1163 = vmatprep.subr.mxu0 0.0
      %1164 = vmatpush1.msra.mxu0 0.0
      %1165 = vmatprep.subr.mxu0 0.0
      %1166 = vmatpush1.msra.mxu0 0.0
      %1167 = vmatprep.subr.mxu0 0.0
      %1168 = vmatpush1.msra.mxu0 0.0
      %1169 = vmatprep.subr.mxu0 0.0
      %1170 = vmatpush1.msra.mxu0 0.0
      %1171 = vmatprep.subr.mxu0 0.0
      %1172 = vmatpush1.msra.mxu0 0.0
      %1173 = vmatprep.subr.mxu0 0.0
      %1174 = vmatpush1.msra.mxu0 0.0
      %1175 = vmatprep.subr.mxu0 0.0
      %1176 = vmatpush1.msra.mxu0 0.0
      %1177 = vmatprep.subr.mxu0 0.0
      %1178 = vmatpush1.msra.mxu0 0.0
      %1179 = vmatprep.subr.mxu0 0.0
      %1180 = vmatpush1.msra.mxu0 0.0
      %1181 = vmatprep.subr.mxu0 0.0
      %1182 = vmatpush1.msra.mxu0 0.0
      %1183 = vmatprep.subr.mxu0 0.0
      %1184 = vmatpush1.msra.mxu0 0.0
      %1185 = vmatprep.subr.mxu0 0.0
      %1186 = vmatpush1.msra.mxu0 0.0
      %1187 = vmatprep.subr.mxu0 0.0
      %1188 = vmatpush1.msra.mxu0 0.0
      %1189 = vmatprep.subr.mxu0 0.0
      %1190 = vmatpush1.msra.mxu0 0.0
      %1191 = vmatprep.subr.mxu0 0.0
      %1192 = vmatpush1.msra.mxu0 0.0
      %1193 = vmatprep.subr.mxu0 0.0
      %1194 = vmatpush1.msra.mxu0 0.0
      %1195 = vmatprep.subr.mxu0 0.0
      %1196 = vmatpush1.msra.mxu0 0.0
      %1197 = vmatprep.subr.mxu0 0.0
      %1198 = vmatpush1.msra.mxu0 0.0
      %1199 = vmatprep.subr.mxu0 0.0
      %1200 = vmatpush1.msra.mxu0 0.0
      %1201 = vmatprep.subr.mxu0 0.0
      %1202 = vmatpush1.msra.mxu0 0.0
      %1203 = vmatprep.subr.mxu0 0.0
      %1204 = vmatpush1.msra.mxu0 0.0
      %1205 = vmatprep.subr.mxu0 0.0
      %1206 = vmatpush1.msra.mxu0 0.0
      %1207 = vmatprep.subr.mxu0 0.0
      %1208 = vmatpush1.msra.mxu0 0.0
      %1209 = vmatprep.subr.mxu0 0.0
      %1210 = vmatpush1.msra.mxu0 0.0
      %1211 = vmatprep.subr.mxu0 0.0
      %1212 = vmatpush1.msra.mxu0 0.0
      %1213 = vmatprep.subr.mxu0 0.0
      %1214 = vmatpush1.msra.mxu0 0.0
      %1215 = vmatprep.subr.mxu0 0.0
      %1216 = vmatpush1.msra.mxu0 0.0
      %1217 = vmatprep.subr.mxu0 0.0
      %1218 = vmatpush1.msra.mxu0 0.0
      %1219 = vmatprep.subr.mxu0 0.0
      %1220 = vmatpush1.msra.mxu0 0.0
      %1221 = vmatprep.mubr.f32.mxu0 0.0
      %1222 = vmatmul.mubr.f32.gmra.mrb[0].mxu0 %v628
      %v1223 = vpop.f32.mrb[0].mxu0
      %v1224 = vadd.f32 0.0, %v1223
      %v1225 = vpop.f32.mrb[0].mxu0
      %1226 = vmatprep.mubr.f32.mxu0 0.0
      %1227 = vmatmul.mubr.f32.gmra.mrb[0].mxu0 %v630
      %v1228 = vpop.f32.mrb[0].mxu0
      %v1229 = vadd.f32 0.0, %v1228
      %v1230 = vpop.f32.mrb[0].mxu0
      %1231 = vmatprep.mubr.f32.mxu0 0.0
      %1232 = vmatmul.mubr.f32.gmra.mrb[0].mxu0 %v632
      %v1233 = vpop.f32.mrb[0].mxu0
      %v1234 = vadd.f32 0.0, %v1233
      %v1235 = vpop.f32.mrb[0].mxu0
      %1236 = vmatprep.mubr.f32.mxu0 0.0
      %1237 = vmatmul.mubr.f32.gmra.mrb[0].mxu0 %v634
      %v1238 = vpop.f32.mrb[0].mxu0
      %v1239 = vadd.f32 0.0, %v1238
      %v1240 = vpop.f32.mrb[0].mxu0
      %1241 = vmatprep.mubr.f32.mxu0 0.0
      %1242 = vmatmul.mubr.f32.gmra.mrb[0].mxu0 %v636
      %v1243 = vpop.f32.mrb[0].mxu0
      %v1244 = vadd.f32 0.0, %v1243
      %v1245 = vpop.f32.mrb[0].mxu0
      %1246 = vmatprep.mubr.f32.mxu0 0.0
      %1247 = vmatmul.mubr.f32.gmra.mrb[0].mxu0 %v638
      %v1248 = vpop.f32.mrb[0].mxu0
      %v1249 = vadd.f32 0.0, %v1248
      %v1250 = vpop.f32.mrb[0].mxu0
      %1251 = vmatprep.mubr.f32.mxu0 0.0
      %1252 = vmatmul.mubr.f32.gmra.mrb[0].mxu0 %v640
      %v1253 = vpop.f32.mrb[0].mxu0
      %v1254 = vadd.f32 0.0, %v1253
      %v1255 = vpop.f32.mrb[0].mxu0
      %1256 = vmatprep.mubr.f32.mxu0 0.0
      %1257 = vmatmul.mubr.f32.gmra.mrb[0].mxu0 %v1152
      %v1258 = vpop.f32.mrb[0].mxu0
      %v1259 = vadd.f32 0.0, %v1258
      %v1260 = vpop.f32.mrb[0].mxu0
      %1261 = vdwg.mxu0
      %v1262 = vadd.f32 %v1139, %v1224
      %v1263 = vadd.f32 %v1140, %v1229
      %v1264 = vadd.f32 %v1141, %v1234
      %v1265 = vadd.f32 %v1142, %v1239
      %v1266 = vadd.f32 %v1143, %v1244
      %v1267 = vadd.f32 %v1144, %v1249
      %v1268 = vadd.f32 %v1145, %v1254
      %v1269 = vadd.f32 %v1146, %v1259
      %s1270 = scalar_lea.vmem %s4, 20
      %v1271 = vld [vmem:[%s1270] sm:$0xf]
      %v1272 = vrot.slane %v593, 2
      %v1273 = vsel %vm877, %v893, %v1272
      %v1274 = vsel %vm625, %v1273, 0
      %v1277 = vsel %vm642, %v1271, 0
      %1279 = vmatprep.subr.mxu0 0.0
      %1280 = vmatpush1.msra.mxu0 %v1277
      %1281 = vmatprep.subr.mxu0 0.0
      %1282 = vmatpush1.msra.mxu0 0.0
      %1283 = vmatprep.subr.mxu0 0.0
      %1284 = vmatpush1.msra.mxu0 0.0
      %1285 = vmatprep.subr.mxu0 0.0
      %1286 = vmatpush1.msra.mxu0 0.0
      %1287 = vmatprep.subr.mxu0 0.0
      %1288 = vmatpush1.msra.mxu0 0.0
      %1289 = vmatprep.subr.mxu0 0.0
      %1290 = vmatpush1.msra.mxu0 0.0
      %1291 = vmatprep.subr.mxu0 0.0
      %1292 = vmatpush1.msra.mxu0 0.0
      %1293 = vmatprep.subr.mxu0 0.0
      %1294 = vmatpush1.msra.mxu0 0.0
      %1295 = vmatprep.subr.mxu0 0.0
      %1296 = vmatpush1.msra.mxu0 0.0
      %1297 = vmatprep.subr.mxu0 0.0
      %1298 = vmatpush1.msra.mxu0 0.0
      %1299 = vmatprep.subr.mxu0 0.0
      %1300 = vmatpush1.msra.mxu0 0.0
      %1301 = vmatprep.subr.mxu0 0.0
      %1302 = vmatpush1.msra.mxu0 0.0
      %1303 = vmatprep.subr.mxu0 0.0
      %1304 = vmatpush1.msra.mxu0 0.0
      %1305 = vmatprep.subr.mxu0 0.0
      %1306 = vmatpush1.msra.mxu0 0.0
      %1307 = vmatprep.subr.mxu0 0.0
      %1308 = vmatpush1.msra.mxu0 0.0
      %1309 = vmatprep.subr.mxu0 0.0
      %1310 = vmatpush1.msra.mxu0 0.0
      %1311 = vmatprep.subr.mxu0 0.0
      %1312 = vmatpush1.msra.mxu0 0.0
      %1313 = vmatprep.subr.mxu0 0.0
      %1314 = vmatpush1.msra.mxu0 0.0
      %1315 = vmatprep.subr.mxu0 0.0
      %1316 = vmatpush1.msra.mxu0 0.0
      %1317 = vmatprep.subr.mxu0 0.0
      %1318 = vmatpush1.msra.mxu0 0.0
      %1319 = vmatprep.subr.mxu0 0.0
      %1320 = vmatpush1.msra.mxu0 0.0
      %1321 = vmatprep.subr.mxu0 0.0
      %1322 = vmatpush1.msra.mxu0 0.0
      %1323 = vmatprep.subr.mxu0 0.0
      %1324 = vmatpush1.msra.mxu0 0.0
      %1325 = vmatprep.subr.mxu0 0.0
      %1326 = vmatpush1.msra.mxu0 0.0
      %1327 = vmatprep.subr.mxu0 0.0
      %1328 = vmatpush1.msra.mxu0 0.0
      %1329 = vmatprep.subr.mxu0 0.0
      %1330 = vmatpush1.msra.mxu0 0.0
      %1331 = vmatprep.subr.mxu0 0.0
      %1332 = vmatpush1.msra.mxu0 0.0
      %1333 = vmatprep.subr.mxu0 0.0
      %1334 = vmatpush1.msra.mxu0 0.0
      %1335 = vmatprep.subr.mxu0 0.0
      %1336 = vmatpush1.msra.mxu0 0.0
      %1337 = vmatprep.subr.mxu0 0.0
      %1338 = vmatpush1.msra.mxu0 0.0
      %1339 = vmatprep.subr.mxu0 0.0
      %1340 = vmatpush1.msra.mxu0 0.0
      %1341 = vmatprep.subr.mxu0 0.0
      %1342 = vmatpush1.msra.mxu0 0.0
      %1343 = vmatprep.mubr.f32.mxu0 0.0
      %1344 = vmatmul.mubr.f32.gmra.mrb[0].mxu0 %v897
      %v1345 = vpop.f32.mrb[0].mxu0
      %v1346 = vadd.f32 0.0, %v1345
      %v1347 = vpop.f32.mrb[0].mxu0
      %1348 = vmatprep.mubr.f32.mxu0 0.0
      %1349 = vmatmul.mubr.f32.gmra.mrb[0].mxu0 %v899
      %v1350 = vpop.f32.mrb[0].mxu0
      %v1351 = vadd.f32 0.0, %v1350
      %v1352 = vpop.f32.mrb[0].mxu0
      %1353 = vmatprep.mubr.f32.mxu0 0.0
      %1354 = vmatmul.mubr.f32.gmra.mrb[0].mxu0 %v901
      %v1355 = vpop.f32.mrb[0].mxu0
      %v1356 = vadd.f32 0.0, %v1355
      %v1357 = vpop.f32.mrb[0].mxu0
      %1358 = vmatprep.mubr.f32.mxu0 0.0
      %1359 = vmatmul.mubr.f32.gmra.mrb[0].mxu0 %v903
      %v1360 = vpop.f32.mrb[0].mxu0
      %v1361 = vadd.f32 0.0, %v1360
      %v1362 = vpop.f32.mrb[0].mxu0
      %1363 = vmatprep.mubr.f32.mxu0 0.0
      %1364 = vmatmul.mubr.f32.gmra.mrb[0].mxu0 %v905
      %v1365 = vpop.f32.mrb[0].mxu0
      %v1366 = vadd.f32 0.0, %v1365
      %v1367 = vpop.f32.mrb[0].mxu0
      %1368 = vmatprep.mubr.f32.mxu0 0.0
      %1369 = vmatmul.mubr.f32.gmra.mrb[0].mxu0 %v907
      %v1370 = vpop.f32.mrb[0].mxu0
      %v1371 = vadd.f32 0.0, %v1370
      %v1372 = vpop.f32.mrb[0].mxu0
      %1373 = vmatprep.mubr.f32.mxu0 0.0
      %1374 = vmatmul.mubr.f32.gmra.mrb[0].mxu0 %v909
      %v1375 = vpop.f32.mrb[0].mxu0
      %v1376 = vadd.f32 0.0, %v1375
      %v1377 = vpop.f32.mrb[0].mxu0
      %1378 = vmatprep.mubr.f32.mxu0 0.0
      %1379 = vmatmul.mubr.f32.gmra.mrb[0].mxu0 %v1274
      %v1380 = vpop.f32.mrb[0].mxu0
      %v1381 = vadd.f32 0.0, %v1380
      %v1382 = vpop.f32.mrb[0].mxu0
      %1383 = vdwg.mxu0
      %v1384 = vadd.f32 %v1262, %v1346
      %v1385 = vadd.f32 %v1263, %v1351
      %v1386 = vadd.f32 %v1264, %v1356
      %v1387 = vadd.f32 %v1265, %v1361
      %v1388 = vadd.f32 %v1266, %v1366
      %v1389 = vadd.f32 %v1267, %v1371
      %v1390 = vadd.f32 %v1268, %v1376
      %v1391 = vadd.f32 %v1269, %v1381
      %s1392 = scalar_lea.vmem %s4, 24
      %v1393 = vld [vmem:[%s1392] sm:$0xf]
      %v1394 = vsel %vm625, %v593, 0
      %v1397 = vsel %vm642, %v1393, 0
      %1399 = vmatprep.subr.mxu0 0.0
      %1400 = vmatpush1.msra.mxu0 %v1397
      %1401 = vmatprep.subr.mxu0 0.0
      %1402 = vmatpush1.msra.mxu0 0.0
      %1403 = vmatprep.subr.mxu0 0.0
      %1404 = vmatpush1.msra.mxu0 0.0
      %1405 = vmatprep.subr.mxu0 0.0
      %1406 = vmatpush1.msra.mxu0 0.0
      %1407 = vmatprep.subr.mxu0 0.0
      %1408 = vmatpush1.msra.mxu0 0.0
      %1409 = vmatprep.subr.mxu0 0.0
      %1410 = vmatpush1.msra.mxu0 0.0
      %1411 = vmatprep.subr.mxu0 0.0
      %1412 = vmatpush1.msra.mxu0 0.0
      %1413 = vmatprep.subr.mxu0 0.0
      %1414 = vmatpush1.msra.mxu0 0.0
      %1415 = vmatprep.subr.mxu0 0.0
      %1416 = vmatpush1.msra.mxu0 0.0
      %1417 = vmatprep.subr.mxu0 0.0
      %1418 = vmatpush1.msra.mxu0 0.0
      %1419 = vmatprep.subr.mxu0 0.0
      %1420 = vmatpush1.msra.mxu0 0.0
      %1421 = vmatprep.subr.mxu0 0.0
      %1422 = vmatpush1.msra.mxu0 0.0
      %1423 = vmatprep.subr.mxu0 0.0
      %1424 = vmatpush1.msra.mxu0 0.0
      %1425 = vmatprep.subr.mxu0 0.0
      %1426 = vmatpush1.msra.mxu0 0.0
      %1427 = vmatprep.subr.mxu0 0.0
      %1428 = vmatpush1.msra.mxu0 0.0
      %1429 = vmatprep.subr.mxu0 0.0
      %1430 = vmatpush1.msra.mxu0 0.0
      %1431 = vmatprep.subr.mxu0 0.0
      %1432 = vmatpush1.msra.mxu0 0.0
      %1433 = vmatprep.subr.mxu0 0.0
      %1434 = vmatpush1.msra.mxu0 0.0
      %1435 = vmatprep.subr.mxu0 0.0
      %1436 = vmatpush1.msra.mxu0 0.0
      %1437 = vmatprep.subr.mxu0 0.0
      %1438 = vmatpush1.msra.mxu0 0.0
      %1439 = vmatprep.subr.mxu0 0.0
      %1440 = vmatpush1.msra.mxu0 0.0
      %1441 = vmatprep.subr.mxu0 0.0
      %1442 = vmatpush1.msra.mxu0 0.0
      %1443 = vmatprep.subr.mxu0 0.0
      %1444 = vmatpush1.msra.mxu0 0.0
      %1445 = vmatprep.subr.mxu0 0.0
      %1446 = vmatpush1.msra.mxu0 0.0
      %1447 = vmatprep.subr.mxu0 0.0
      %1448 = vmatpush1.msra.mxu0 0.0
      %1449 = vmatprep.subr.mxu0 0.0
      %1450 = vmatpush1.msra.mxu0 0.0
      %1451 = vmatprep.subr.mxu0 0.0
      %1452 = vmatpush1.msra.mxu0 0.0
      %1453 = vmatprep.subr.mxu0 0.0
      %1454 = vmatpush1.msra.mxu0 0.0
      %1455 = vmatprep.subr.mxu0 0.0
      %1456 = vmatpush1.msra.mxu0 0.0
      %1457 = vmatprep.subr.mxu0 0.0
      %1458 = vmatpush1.msra.mxu0 0.0
      %1459 = vmatprep.subr.mxu0 0.0
      %1460 = vmatpush1.msra.mxu0 0.0
      %1461 = vmatprep.subr.mxu0 0.0
      %1462 = vmatpush1.msra.mxu0 0.0
      %1463 = vmatprep.mubr.f32.mxu0 0.0
      %1464 = vmatmul.mubr.f32.gmra.mrb[0].mxu0 %v755
      %v1465 = vpop.f32.mrb[0].mxu0
      %v1466 = vadd.f32 0.0, %v1465
      %v1467 = vpop.f32.mrb[0].mxu0
      %1468 = vmatprep.mubr.f32.mxu0 0.0
      %1469 = vmatmul.mubr.f32.gmra.mrb[0].mxu0 %v757
      %v1470 = vpop.f32.mrb[0].mxu0
      %v1471 = vadd.f32 0.0, %v1470
      %v1472 = vpop.f32.mrb[0].mxu0
      %1473 = vmatprep.mubr.f32.mxu0 0.0
      %1474 = vmatmul.mubr.f32.gmra.mrb[0].mxu0 %v759
      %v1475 = vpop.f32.mrb[0].mxu0
      %v1476 = vadd.f32 0.0, %v1475
      %v1477 = vpop.f32.mrb[0].mxu0
      %1478 = vmatprep.mubr.f32.mxu0 0.0
      %1479 = vmatmul.mubr.f32.gmra.mrb[0].mxu0 %v761
      %v1480 = vpop.f32.mrb[0].mxu0
      %v1481 = vadd.f32 0.0, %v1480
      %v1482 = vpop.f32.mrb[0].mxu0
      %1483 = vmatprep.mubr.f32.mxu0 0.0
      %1484 = vmatmul.mubr.f32.gmra.mrb[0].mxu0 %v763
      %v1485 = vpop.f32.mrb[0].mxu0
      %v1486 = vadd.f32 0.0, %v1485
      %v1487 = vpop.f32.mrb[0].mxu0
      %1488 = vmatprep.mubr.f32.mxu0 0.0
      %1489 = vmatmul.mubr.f32.gmra.mrb[0].mxu0 %v765
      %v1490 = vpop.f32.mrb[0].mxu0
      %v1491 = vadd.f32 0.0, %v1490
      %v1492 = vpop.f32.mrb[0].mxu0
      %1493 = vmatprep.mubr.f32.mxu0 0.0
      %1494 = vmatmul.mubr.f32.gmra.mrb[0].mxu0 %v1029
      %v1495 = vpop.f32.mrb[0].mxu0
      %v1496 = vadd.f32 0.0, %v1495
      %v1497 = vpop.f32.mrb[0].mxu0
      %1498 = vmatprep.mubr.f32.mxu0 0.0
      %1499 = vmatmul.mubr.f32.gmra.mrb[0].mxu0 %v1394
      %v1500 = vpop.f32.mrb[0].mxu0
      %v1501 = vadd.f32 0.0, %v1500
      %v1502 = vpop.f32.mrb[0].mxu0
      %1503 = vdwg.mxu0
      %v1504 = vadd.f32 %v1384, %v1466
      %v1505 = vadd.f32 %v1385, %v1471
      %v1506 = vadd.f32 %v1386, %v1476
      %v1507 = vadd.f32 %v1387, %v1481
      %v1508 = vadd.f32 %v1388, %v1486
      %v1509 = vadd.f32 %v1389, %v1491
      %v1510 = vadd.f32 %v1390, %v1496
      %v1511 = vadd.f32 %v1391, %v1501
      %s1512 = scalar_lea.vmem %s4, 28
      %v1513 = vld [vmem:[%s1512] sm:$0xf]
      %v1515 = vrot.slane %v594, 1
      %v1516 = vsel %vm607, %v1150, %v1515
      %v1517 = vsel %vm625, %v1516, 0
      %v1520 = vsel %vm642, %v1513, 0
      %1522 = vmatprep.subr.mxu0 0.0
      %1523 = vmatpush1.msra.mxu0 %v1520
      %1524 = vmatprep.subr.mxu0 0.0
      %1525 = vmatpush1.msra.mxu0 0.0
      %1526 = vmatprep.subr.mxu0 0.0
      %1527 = vmatpush1.msra.mxu0 0.0
      %1528 = vmatprep.subr.mxu0 0.0
      %1529 = vmatpush1.msra.mxu0 0.0
      %1530 = vmatprep.subr.mxu0 0.0
      %1531 = vmatpush1.msra.mxu0 0.0
      %1532 = vmatprep.subr.mxu0 0.0
      %1533 = vmatpush1.msra.mxu0 0.0
      %1534 = vmatprep.subr.mxu0 0.0
      %1535 = vmatpush1.msra.mxu0 0.0
      %1536 = vmatprep.subr.mxu0 0.0
      %1537 = vmatpush1.msra.mxu0 0.0
      %1538 = vmatprep.subr.mxu0 0.0
      %1539 = vmatpush1.msra.mxu0 0.0
      %1540 = vmatprep.subr.mxu0 0.0
      %1541 = vmatpush1.msra.mxu0 0.0
      %1542 = vmatprep.subr.mxu0 0.0
      %1543 = vmatpush1.msra.mxu0 0.0
      %1544 = vmatprep.subr.mxu0 0.0
      %1545 = vmatpush1.msra.mxu0 0.0
      %1546 = vmatprep.subr.mxu0 0.0
      %1547 = vmatpush1.msra.mxu0 0.0
      %1548 = vmatprep.subr.mxu0 0.0
      %1549 = vmatpush1.msra.mxu0 0.0
      %1550 = vmatprep.subr.mxu0 0.0
      %1551 = vmatpush1.msra.mxu0 0.0
      %1552 = vmatprep.subr.mxu0 0.0
      %1553 = vmatpush1.msra.mxu0 0.0
      %1554 = vmatprep.subr.mxu0 0.0
      %1555 = vmatpush1.msra.mxu0 0.0
      %1556 = vmatprep.subr.mxu0 0.0
      %1557 = vmatpush1.msra.mxu0 0.0
      %1558 = vmatprep.subr.mxu0 0.0
      %1559 = vmatpush1.msra.mxu0 0.0
      %1560 = vmatprep.subr.mxu0 0.0
      %1561 = vmatpush1.msra.mxu0 0.0
      %1562 = vmatprep.subr.mxu0 0.0
      %1563 = vmatpush1.msra.mxu0 0.0
      %1564 = vmatprep.subr.mxu0 0.0
      %1565 = vmatpush1.msra.mxu0 0.0
      %1566 = vmatprep.subr.mxu0 0.0
      %1567 = vmatpush1.msra.mxu0 0.0
      %1568 = vmatprep.subr.mxu0 0.0
      %1569 = vmatpush1.msra.mxu0 0.0
      %1570 = vmatprep.subr.mxu0 0.0
      %1571 = vmatpush1.msra.mxu0 0.0
      %1572 = vmatprep.subr.mxu0 0.0
      %1573 = vmatpush1.msra.mxu0 0.0
      %1574 = vmatprep.subr.mxu0 0.0
      %1575 = vmatpush1.msra.mxu0 0.0
      %1576 = vmatprep.subr.mxu0 0.0
      %1577 = vmatpush1.msra.mxu0 0.0
      %1578 = vmatprep.subr.mxu0 0.0
      %1579 = vmatpush1.msra.mxu0 0.0
      %1580 = vmatprep.subr.mxu0 0.0
      %1581 = vmatpush1.msra.mxu0 0.0
      %1582 = vmatprep.subr.mxu0 0.0
      %1583 = vmatpush1.msra.mxu0 0.0
      %1584 = vmatprep.subr.mxu0 0.0
      %1585 = vmatpush1.msra.mxu0 0.0
      %1586 = vmatprep.mubr.f32.mxu0 0.0
      %1587 = vmatmul.mubr.f32.gmra.mrb[0].mxu0 %v630
      %v1588 = vpop.f32.mrb[0].mxu0
      %v1589 = vadd.f32 0.0, %v1588
      %v1590 = vpop.f32.mrb[0].mxu0
      %1591 = vmatprep.mubr.f32.mxu0 0.0
      %1592 = vmatmul.mubr.f32.gmra.mrb[0].mxu0 %v632
      %v1593 = vpop.f32.mrb[0].mxu0
      %v1594 = vadd.f32 0.0, %v1593
      %v1595 = vpop.f32.mrb[0].mxu0
      %1596 = vmatprep.mubr.f32.mxu0 0.0
      %1597 = vmatmul.mubr.f32.gmra.mrb[0].mxu0 %v634
      %v1598 = vpop.f32.mrb[0].mxu0
      %v1599 = vadd.f32 0.0, %v1598
      %v1600 = vpop.f32.mrb[0].mxu0
      %1601 = vmatprep.mubr.f32.mxu0 0.0
      %1602 = vmatmul.mubr.f32.gmra.mrb[0].mxu0 %v636
      %v1603 = vpop.f32.mrb[0].mxu0
      %v1604 = vadd.f32 0.0, %v1603
      %v1605 = vpop.f32.mrb[0].mxu0
      %1606 = vmatprep.mubr.f32.mxu0 0.0
      %1607 = vmatmul.mubr.f32.gmra.mrb[0].mxu0 %v638
      %v1608 = vpop.f32.mrb[0].mxu0
      %v1609 = vadd.f32 0.0, %v1608
      %v1610 = vpop.f32.mrb[0].mxu0
      %1611 = vmatprep.mubr.f32.mxu0 0.0
      %1612 = vmatmul.mubr.f32.gmra.mrb[0].mxu0 %v640
      %v1613 = vpop.f32.mrb[0].mxu0
      %v1614 = vadd.f32 0.0, %v1613
      %v1615 = vpop.f32.mrb[0].mxu0
      %1616 = vmatprep.mubr.f32.mxu0 0.0
      %1617 = vmatmul.mubr.f32.gmra.mrb[0].mxu0 %v1152
      %v1618 = vpop.f32.mrb[0].mxu0
      %v1619 = vadd.f32 0.0, %v1618
      %v1620 = vpop.f32.mrb[0].mxu0
      %1621 = vmatprep.mubr.f32.mxu0 0.0
      %1622 = vmatmul.mubr.f32.gmra.mrb[0].mxu0 %v1517
      %v1623 = vpop.f32.mrb[0].mxu0
      %v1624 = vadd.f32 0.0, %v1623
      %v1625 = vpop.f32.mrb[0].mxu0
      %1626 = vdwg.mxu0
      %v1627 = vadd.f32 %v1504, %v1589
      %v1628 = vadd.f32 %v1505, %v1594
      %v1629 = vadd.f32 %v1506, %v1599
      %v1630 = vadd.f32 %v1507, %v1604
      %v1631 = vadd.f32 %v1508, %v1609
      %v1632 = vadd.f32 %v1509, %v1614
      %v1633 = vadd.f32 %v1510, %v1619
      %v1634 = vadd.f32 %v1511, %v1624
      %s1635 = scalar_lea.vmem %s4, 32
      %v1636 = vld [vmem:[%s1635] sm:$0xf]
      %v1637 = vrot.slane %v594, 2
      %v1638 = vsel %vm877, %v1272, %v1637
      %v1639 = vsel %vm625, %v1638, 0
      %v1642 = vsel %vm642, %v1636, 0
      %1644 = vmatprep.subr.mxu0 0.0
      %1645 = vmatpush1.msra.mxu0 %v1642
      %1646 = vmatprep.subr.mxu0 0.0
      %1647 = vmatpush1.msra.mxu0 0.0
      %1648 = vmatprep.subr.mxu0 0.0
      %1649 = vmatpush1.msra.mxu0 0.0
      %1650 = vmatprep.subr.mxu0 0.0
      %1651 = vmatpush1.msra.mxu0 0.0
      %1652 = vmatprep.subr.mxu0 0.0
      %1653 = vmatpush1.msra.mxu0 0.0
      %1654 = vmatprep.subr.mxu0 0.0
      %1655 = vmatpush1.msra.mxu0 0.0
      %1656 = vmatprep.subr.mxu0 0.0
      %1657 = vmatpush1.msra.mxu0 0.0
      %1658 = vmatprep.subr.mxu0 0.0
      %1659 = vmatpush1.msra.mxu0 0.0
      %1660 = vmatprep.subr.mxu0 0.0
      %1661 = vmatpush1.msra.mxu0 0.0
      %1662 = vmatprep.subr.mxu0 0.0
      %1663 = vmatpush1.msra.mxu0 0.0
      %1664 = vmatprep.subr.mxu0 0.0
      %1665 = vmatpush1.msra.mxu0 0.0
      %1666 = vmatprep.subr.mxu0 0.0
      %1667 = vmatpush1.msra.mxu0 0.0
      %1668 = vmatprep.subr.mxu0 0.0
      %1669 = vmatpush1.msra.mxu0 0.0
      %1670 = vmatprep.subr.mxu0 0.0
      %1671 = vmatpush1.msra.mxu0 0.0
      %1672 = vmatprep.subr.mxu0 0.0
      %1673 = vmatpush1.msra.mxu0 0.0
      %1674 = vmatprep.subr.mxu0 0.0
      %1675 = vmatpush1.msra.mxu0 0.0
      %1676 = vmatprep.subr.mxu0 0.0
      %1677 = vmatpush1.msra.mxu0 0.0
      %1678 = vmatprep.subr.mxu0 0.0
      %1679 = vmatpush1.msra.mxu0 0.0
      %1680 = vmatprep.subr.mxu0 0.0
      %1681 = vmatpush1.msra.mxu0 0.0
      %1682 = vmatprep.subr.mxu0 0.0
      %1683 = vmatpush1.msra.mxu0 0.0
      %1684 = vmatprep.subr.mxu0 0.0
      %1685 = vmatpush1.msra.mxu0 0.0
      %1686 = vmatprep.subr.mxu0 0.0
      %1687 = vmatpush1.msra.mxu0 0.0
      %1688 = vmatprep.subr.mxu0 0.0
      %1689 = vmatpush1.msra.mxu0 0.0
      %1690 = vmatprep.subr.mxu0 0.0
      %1691 = vmatpush1.msra.mxu0 0.0
      %1692 = vmatprep.subr.mxu0 0.0
      %1693 = vmatpush1.msra.mxu0 0.0
      %1694 = vmatprep.subr.mxu0 0.0
      %1695 = vmatpush1.msra.mxu0 0.0
      %1696 = vmatprep.subr.mxu0 0.0
      %1697 = vmatpush1.msra.mxu0 0.0
      %1698 = vmatprep.subr.mxu0 0.0
      %1699 = vmatpush1.msra.mxu0 0.0
      %1700 = vmatprep.subr.mxu0 0.0
      %1701 = vmatpush1.msra.mxu0 0.0
      %1702 = vmatprep.subr.mxu0 0.0
      %1703 = vmatpush1.msra.mxu0 0.0
      %1704 = vmatprep.subr.mxu0 0.0
      %1705 = vmatpush1.msra.mxu0 0.0
      %1706 = vmatprep.subr.mxu0 0.0
      %1707 = vmatpush1.msra.mxu0 0.0
      %1708 = vmatprep.mubr.f32.mxu0 0.0
      %1709 = vmatmul.mubr.f32.gmra.mrb[0].mxu0 %v899
      %v1710 = vpop.f32.mrb[0].mxu0
      %v1711 = vadd.f32 0.0, %v1710
      %v1712 = vpop.f32.mrb[0].mxu0
      %1713 = vmatprep.mubr.f32.mxu0 0.0
      %1714 = vmatmul.mubr.f32.gmra.mrb[0].mxu0 %v901
      %v1715 = vpop.f32.mrb[0].mxu0
      %v1716 = vadd.f32 0.0, %v1715
      %v1717 = vpop.f32.mrb[0].mxu0
      %1718 = vmatprep.mubr.f32.mxu0 0.0
      %1719 = vmatmul.mubr.f32.gmra.mrb[0].mxu0 %v903
      %v1720 = vpop.f32.mrb[0].mxu0
      %v1721 = vadd.f32 0.0, %v1720
      %v1722 = vpop.f32.mrb[0].mxu0
      %1723 = vmatprep.mubr.f32.mxu0 0.0
      %1724 = vmatmul.mubr.f32.gmra.mrb[0].mxu0 %v905
      %v1725 = vpop.f32.mrb[0].mxu0
      %v1726 = vadd.f32 0.0, %v1725
      %v1727 = vpop.f32.mrb[0].mxu0
      %1728 = vmatprep.mubr.f32.mxu0 0.0
      %1729 = vmatmul.mubr.f32.gmra.mrb[0].mxu0 %v907
      %v1730 = vpop.f32.mrb[0].mxu0
      %v1731 = vadd.f32 0.0, %v1730
      %v1732 = vpop.f32.mrb[0].mxu0
      %1733 = vmatprep.mubr.f32.mxu0 0.0
      %1734 = vmatmul.mubr.f32.gmra.mrb[0].mxu0 %v909
      %v1735 = vpop.f32.mrb[0].mxu0
      %v1736 = vadd.f32 0.0, %v1735
      %v1737 = vpop.f32.mrb[0].mxu0
      %1738 = vmatprep.mubr.f32.mxu0 0.0
      %1739 = vmatmul.mubr.f32.gmra.mrb[0].mxu0 %v1274
      %v1740 = vpop.f32.mrb[0].mxu0
      %v1741 = vadd.f32 0.0, %v1740
      %v1742 = vpop.f32.mrb[0].mxu0
      %1743 = vmatprep.mubr.f32.mxu0 0.0
      %1744 = vmatmul.mubr.f32.gmra.mrb[0].mxu0 %v1639
      %v1745 = vpop.f32.mrb[0].mxu0
      %v1746 = vadd.f32 0.0, %v1745
      %v1747 = vpop.f32.mrb[0].mxu0
      %1748 = vdwg.mxu0
      %v1749 = vadd.f32 %v1627, %v1711
      %v1750 = vadd.f32 %v1628, %v1716
      %v1751 = vadd.f32 %v1629, %v1721
      %v1752 = vadd.f32 %v1630, %v1726
      %v1753 = vadd.f32 %v1631, %v1731
      %v1754 = vadd.f32 %v1632, %v1736
      %v1755 = vadd.f32 %v1633, %v1741
      %v1756 = vadd.f32 %v1634, %v1746
      %1757 = vst [vmem:[%s574] sm:$0xff] %v1749
      %1758 = vst [vmem:[%s574 + $0x8] sm:$0xff] %v1750
      %1759 = vst [vmem:[%s574 + $0x10] sm:$0xff] %v1751
      %1760 = vst [vmem:[%s574 + $0x18] sm:$0xff] %v1752
      %1761 = vst [vmem:[%s574 + $0x20] sm:$0xff] %v1753
      %1762 = vst [vmem:[%s574 + $0x28] sm:$0xff] %v1754
      %1763 = vst [vmem:[%s574 + $0x30] sm:$0xff] %v1755
      %1764 = vst [vmem:[%s574 + $0x38] sm:$0xff] %v1756
      %v1765 = vld [vmem:[%s564] sm:$0xff]
      %v1766 = vld [vmem:[%s564 + $0x8] sm:$0xff]
      %v1767 = vld [vmem:[%s564 + $0x10] sm:$0xff]
      %v1768 = vld [vmem:[%s564 + $0x18] sm:$0xff]
      %v1769 = vld [vmem:[%s564 + $0x20] sm:$0xff]
      %v1770 = vld [vmem:[%s564 + $0x28] sm:$0xff]
      %v1771 = vld [vmem:[%s564 + $0x30] sm:$0xff]
      %v1772 = vld [vmem:[%s564 + $0x38] sm:$0xff]
      %1774 = vset.pattern.permute.xlu0 0
      %1775 = vperm.xlu0 %1774, %v1765
      %v1776 = vpop.permute.xlu0 %1775
      %1779 = vset.pattern.permute.xlu0 0
      %1780 = vperm.xlu0 %1779, %v1766
      %v1781 = vpop.permute.xlu0 %1780
      %1784 = vset.pattern.permute.xlu0 0
      %1785 = vperm.xlu0 %1784, %v1767
      %v1786 = vpop.permute.xlu0 %1785
      %1789 = vset.pattern.permute.xlu0 0
      %1790 = vperm.xlu0 %1789, %v1768
      %v1791 = vpop.permute.xlu0 %1790
      %1794 = vset.pattern.permute.xlu0 0
      %1795 = vperm.xlu0 %1794, %v1769
      %v1796 = vpop.permute.xlu0 %1795
      %1799 = vset.pattern.permute.xlu0 0
      %1800 = vperm.xlu0 %1799, %v1770
      %v1801 = vpop.permute.xlu0 %1800
      %1804 = vset.pattern.permute.xlu0 0
      %1805 = vperm.xlu0 %1804, %v1771
      %v1806 = vpop.permute.xlu0 %1805
      %1809 = vset.pattern.permute.xlu0 0
      %1810 = vperm.xlu0 %1809, %v1772
      %v1811 = vpop.permute.xlu0 %1810
      %v1813 = vmul.f32 %v1749, %v1776
      %v1814 = vmul.f32 %v1750, %v1781
      %v1815 = vmul.f32 %v1751, %v1786
      %v1816 = vmul.f32 %v1752, %v1791
      %v1817 = vmul.f32 %v1753, %v1796
      %v1818 = vmul.f32 %v1754, %v1801
      %v1819 = vmul.f32 %v1755, %v1806
      %v1820 = vmul.f32 %v1756, %v1811
      %v1821 = vadd.f32 %v1813, %v1814
      %v1822 = vadd.f32 %v1821, %v1815
      %v1823 = vadd.f32 %v1822, %v1816
      %v1824 = vadd.f32 %v1823, %v1817
      %v1825 = vadd.f32 %v1824, %v1818
      %v1826 = vadd.f32 %v1825, %v1819
      %v1827 = vadd.f32 %v1826, %v1820
      %v1828 = vrot.slane %v1827, 4
      %v1829 = vadd.f32 %v1827, %v1828
      %v1830 = vrot.slane %v1829, 2
      %v1831 = vadd.f32 %v1829, %v1830
      %v1832 = vrot.slane %v1831, 1
      %v1833 = vadd.f32 %v1831, %v1832
      %v1834 = vmul.f32 %v1813, %v1813
      %v1835 = vmul.f32 %v1814, %v1814
      %v1836 = vmul.f32 %v1815, %v1815
      %v1837 = vmul.f32 %v1816, %v1816
      %v1838 = vmul.f32 %v1817, %v1817
      %v1839 = vmul.f32 %v1818, %v1818
      %v1840 = vmul.f32 %v1819, %v1819
      %v1841 = vmul.f32 %v1820, %v1820
      %v1842 = vadd.f32 %v1834, %v1835
      %v1843 = vadd.f32 %v1842, %v1836
      %v1844 = vadd.f32 %v1843, %v1837
      %v1845 = vadd.f32 %v1844, %v1838
      %v1846 = vadd.f32 %v1845, %v1839
      %v1847 = vadd.f32 %v1846, %v1840
      %v1848 = vadd.f32 %v1847, %v1841
      %v1849 = vrot.slane %v1848, 4
      %v1850 = vadd.f32 %v1848, %v1849
      %v1851 = vrot.slane %v1850, 2
      %v1852 = vadd.f32 %v1850, %v1851
      %v1853 = vrot.slane %v1852, 1
      %v1854 = vadd.f32 %v1852, %v1853
      %vm1855 = vcmask 1040384
      %v1856 = vsel %vm1855, %v1833, %v1854
      %1857 = vst [vmem:[%s583] sm:$0x3] %v1856
      %s1858 = smul.u32 8, %s26
      %p1859 = scmp.lt.s32.totalorder %s25, 1
      %s1860 = scalar_select %p1859, %s25, 1
      %p1861 = scmp.lt.s32.totalorder %s1858, 15
      %s1862 = scalar_select %p1861, %s1858, 15
      %s1863 = smul.addr %s1860, 16
      %s1864 = sadd.s32 %s1862, %s1863
      %s1865 = smul.addr %s1864, 8
      %s1866 = scalar_lea.vmem %s8, %s1865
      %p1867 = scmp.lt.s32.totalorder %s25, 1
      %s1868 = scalar_select %p1867, %s25, 1
      %p1869 = scmp.lt.s32.totalorder %s26, 1
      %s1870 = scalar_select %p1869, %s26, 1
      %s1871 = smul.addr %s1868, 2
      %s1872 = sadd.s32 %s1870, %s1871
      %s1873 = smul.addr %s1872, 2
      %s1874 = scalar_lea.vmem %s9, %s1873
      // Predicated region
      $region53: #{compress_forward.3} parent=51 // pred_check
        %p1875 = pneg %p270
      $region54: #{compress_forward.3} parent=51 // pred_check_branch
        %1877 = sbr.rel (%p1875) target = $region56
      $region55: #{compress_forward.3} parent=51 // pred_region
        %s1878 = smul.u32 8, %s26
      $region56: #{compress_forward.3} parent=51 // pred_fallthru
        _
      // Predicated region
      $region57: #{compress_forward.3} parent=51 // pred_check
        %p1879 = pneg %p298
      $region58: #{compress_forward.3} parent=51 // pred_check_branch
        %1881 = sbr.rel (%p1879) target = $region60
      $region59: #{compress_forward.3} parent=51 // pred_region
        _
      $region60: #{compress_forward.3} parent=51 // pred_fallthru
        _
    $region52: #{compress_forward.3} parent=5 // pred_fallthru
      _
    %p1882 = scmp.le.s32.totalorder 2, %s16
    // Predicated region
    $region61: #{compress_forward.3} parent=5 // pred_check
      %p1883 = pneg %p1882
    $region62: #{compress_forward.3} parent=5 // pred_check_branch
      %1885 = sbr.rel (%p1883) target = $region64
    $region63: #{compress_forward.3} parent=5 // pred_region
      %s1886 = ssub.s32 %s16, 2
      // Predicated region
      $region65: #{compress_forward.3} parent=63 // pred_check
        %p1887 = pneg %p276
      $region66: #{compress_forward.3} parent=63 // pred_check_branch
        %1889 = sbr.rel (%p1887) target = $region68
      $region67: #{compress_forward.3} parent=63 // pred_region
        %s1890 = smul.u32 8, %s28
        %p1891 = scmp.lt.s32.totalorder %s27, 1
        %s1892 = scalar_select %p1891, %s27, 1
        %p1893 = scmp.lt.s32.totalorder %s1890, 15
        %s1894 = scalar_select %p1893, %s1890, 15
        %s1895 = smul.addr %s1892, 16
        %s1896 = sadd.s32 %s1894, %s1895
        %s1897 = smul.addr %s1896, 8
        %s1898 = scalar_lea.vmem %s8, %s1897
      $region68: #{compress_forward.3} parent=63 // pred_fallthru
        _
      // Predicated region
      $region69: #{compress_forward.3} parent=63 // pred_check
        %p1899 = pneg %p304
      $region70: #{compress_forward.3} parent=63 // pred_check_branch
        %1901 = sbr.rel (%p1899) target = $region72
      $region71: #{compress_forward.3} parent=63 // pred_region
        %p1902 = scmp.lt.s32.totalorder %s27, 1
        %s1903 = scalar_select %p1902, %s27, 1
        %p1904 = scmp.lt.s32.totalorder %s28, 1
        %s1905 = scalar_select %p1904, %s28, 1
        %s1906 = smul.addr %s1903, 2
        %s1907 = sadd.s32 %s1905, %s1906
        %s1908 = smul.addr %s1907, 2
        %s1909 = scalar_lea.vmem %s9, %s1908
      $region72: #{compress_forward.3} parent=63 // pred_fallthru
        _
    $region64: #{compress_forward.3} parent=5 // pred_fallthru
      _
  $region6: #{compress_forward.3} parent=0 // loop_footer
    %s20 = sadd.s32 1, %s16
  $region7: #{compress_forward.3} parent=0 // loop_footer_branch
    %15 = sbr.rel target = $region3
  $region8: #{compress_forward.3} parent=0 // loop_exit
    _

// kernel: compress_forward.4
$region0: #{compress_forward.4}
  #allocation0 [shape = 'u32[]', space=smem, size = 0x4, offset = 0x4, fixed_abs, tag = 'smem constant byte address 0x4 - core index']
  #allocation1 [shape = 'u32[144,128]{1,0:T(1,128)}', space=vmem, size = 0x12000, scoped, tag = 'internal scratch']
  %s0 = inlined_call_operand.vmem [shape: f32[2,128,128], index: 0, kind: input, shape index: {}, may-alias: {0,1,2,3}]
  %s1 = inlined_call_operand.vmem [shape: f32[2,128,128], index: 1, kind: input, shape index: {}, may-alias: {0,1,2,3}]
  %s2 = inlined_call_operand.vmem [shape: f32[2,128,128], index: 2, kind: input, shape index: {}, may-alias: {0,1,2,3}]
  %s3 = inlined_call_operand.vmem [shape: f32[2,128,128], index: 3, kind: input, shape index: {}, may-alias: {0,1,2,3}]
  %s4 = inlined_call_operand.vmem [shape: f32[9,128,128], index: 4, kind: input, shape index: {}]
  %s5 = inlined_call_operand.vmem [shape: f32[1,128], index: 5, kind: input, shape index: {}]
  %s6 = inlined_call_operand.vmem [shape: f32[1,128], index: 6, kind: input, shape index: {}]
  %s7 = inlined_call_operand.vmem [shape: f32[1,64,1], index: 7, kind: input, shape index: {}]
  %s8 = inlined_call_operand.vmem [shape: f32[2,64,128], index: 8, kind: output, shape index: {0}]
  %s9 = inlined_call_operand.vmem [shape: f32[2,1,2,128], index: 9, kind: output, shape index: {1}]
  %10 = xla_tuple %s8, %s9
  %s11 = sld [smem:[#allocation0]]
  $region73: #{compress_forward.4} parent=0
    _
  %s13 = ssub.s32 1, %s11
  %s14 = scalar_select 0, %s13, %s11
  loop: start=0, step=1, limit=4
  $region2: #{compress_forward.4} parent=0 // loop_pre_header
    _
  $region3: #{compress_forward.4} parent=0 // loop_header
    %s16 = sphi 0, %s20
    %p17 = scmp.ge.s32.totalorder %s16, 4
    %s23 = sphi 0, %s35
    %s24 = sphi 0, %s31
    %s25 = sphi 0, %s23
    %s26 = sphi 0, %s24
    %s27 = sphi 0, %s25
    %s28 = sphi 0, %s26
    %s40 = sphi 0, %s42
    %s43 = sphi 0, %s40
    %s44 = sphi 0, %s43
    %s60 = sphi 0, %s44
    %s72 = sphi 0, %s74
    %s75 = sphi 0, %s72
    %s76 = sphi 0, %s75
    %s92 = sphi 0, %s76
    %s106 = sphi 0, %s108
    %s109 = sphi 0, %s106
    %s110 = sphi 0, %s109
    %s126 = sphi 0, %s110
    %s140 = sphi 0, %s142
    %s143 = sphi 0, %s140
    %s144 = sphi 0, %s143
    %s160 = sphi 0, %s144
    %s164 = sphi 0, %s164
    %s166 = sphi 0, %s164
    %s167 = sphi 0, %s166
    %s181 = sphi 0, %s167
    %s185 = sphi 0, %s185
    %s187 = sphi 0, %s185
    %s188 = sphi 0, %s187
    %s202 = sphi 0, %s188
    %s206 = sphi 0, %s206
    %s208 = sphi 0, %s206
    %s209 = sphi 0, %s208
    %s223 = sphi 0, %s209
    %s229 = sphi 0, %s231
    %s232 = sphi 0, %s229
    %s233 = sphi 0, %s232
    %s249 = sphi 0, %s233
    %s257 = sphi 0, %s259
    %s260 = sphi 0, %s257
    %s261 = sphi 0, %s260
    %s277 = sphi 0, %s261
    %s285 = sphi 0, %s287
    %s288 = sphi 0, %s285
    %s289 = sphi 0, %s288
    %s305 = sphi 0, %s289
  $region4: #{compress_forward.4} parent=0 // loop_header_branch
    %19 = sbr.rel (%p17) target = $region8
  $region5: #{compress_forward.4} parent=0 // loop_body
    %s21 = ssub.s32 %s16, 1
    %s22 = ssub.s32 %s16, 2
    %s29 = sadd.s32 1, %s24
    %p30 = scmp.ge.s32.totalorder %s29, 1
    %s31 = scalar_select %p30, 0, %s29
    %s32 = sadd.s32 1, %s23
    %s33 = scalar_select %p30, %s32, %s23
    %p34 = scmp.ge.s32.totalorder %s33, 2
    %s35 = scalar_select %p34, 0, %s33
    %s36 = ssub.s32 %s23, %s35
    %s37 = ssub.s32 %s24, %s31
    %s38 = sor.u32 %s36, %s37
    %p39 = scmp.eq.s32.totalorder %s38, 0
    %s41 = sadd.s32 %s40, 1
    %s42 = scalar_select %p39, %s40, %s41
    %p45 = pneg %p39
    %p46 = scmp.eq.s32.totalorder %s16, 1
    %p47 = por %p45, %p46
    %p48 = scmp.ne.s32.totalorder %s40, %s43
    %p49 = scmp.eq.s32.totalorder %s16, 0
    %p50 = por %p48, %p49
    %p51 = scmp.ne.s32.totalorder %s40, %s43
    %p52 = scmp.eq.s32.totalorder %s21, 1
    %p53 = por %p51, %p52
    %p54 = scmp.ne.s32.totalorder %s43, %s44
    %p55 = scmp.eq.s32.totalorder %s21, 0
    %p56 = por %p54, %p55
    %p57 = scmp.ne.s32.totalorder %s43, %s44
    %p58 = scmp.eq.s32.totalorder %s22, 1
    %p59 = por %p57, %p58
    %p61 = scmp.ne.s32.totalorder %s44, %s60
    %p62 = scmp.eq.s32.totalorder %s22, 0
    %p63 = por %p61, %p62
    %s64 = sadd.s32 %s24, 1
    %s65 = smul.u32 %s64, 8
    %s66 = sadd.s32 %s31, 1
    %s67 = smul.u32 %s66, 8
    %s68 = ssub.s32 %s23, %s35
    %s69 = ssub.s32 %s65, %s67
    %s70 = sor.u32 %s68, %s69
    %p71 = scmp.eq.s32.totalorder %s70, 0
    %s73 = sadd.s32 %s72, 1
    %s74 = scalar_select %p71, %s72, %s73
    %p77 = pneg %p71
    %p78 = scmp.eq.s32.totalorder %s16, 1
    %p79 = por %p77, %p78
    %p80 = scmp.ne.s32.totalorder %s72, %s75
    %p81 = scmp.eq.s32.totalorder %s16, 0
    %p82 = por %p80, %p81
    %p83 = scmp.ne.s32.totalorder %s72, %s75
    %p84 = scmp.eq.s32.totalorder %s21, 1
    %p85 = por %p83, %p84
    %p86 = scmp.ne.s32.totalorder %s75, %s76
    %p87 = scmp.eq.s32.totalorder %s21, 0
    %p88 = por %p86, %p87
    %p89 = scmp.ne.s32.totalorder %s75, %s76
    %p90 = scmp.eq.s32.totalorder %s22, 1
    %p91 = por %p89, %p90
    %p93 = scmp.ne.s32.totalorder %s76, %s92
    %p94 = scmp.eq.s32.totalorder %s22, 0
    %p95 = por %p93, %p94
    %s96 = sadd.s32 %s24, 1
    %s97 = smul.u32 %s96, 8
    %s98 = sadd.s32 %s97, 1
    %s99 = sadd.s32 %s31, 1
    %s100 = smul.u32 %s99, 8
    %s101 = sadd.s32 %s100, 1
    %s102 = ssub.s32 %s23, %s35
    %s103 = ssub.s32 %s98, %s101
    %s104 = sor.u32 %s102, %s103
    %p105 = scmp.eq.s32.totalorder %s104, 0
    %s107 = sadd.s32 %s106, 1
    %s108 = scalar_select %p105, %s106, %s107
    %p111 = pneg %p105
    %p112 = scmp.eq.s32.totalorder %s16, 1
    %p113 = por %p111, %p112
    %p114 = scmp.ne.s32.totalorder %s106, %s109
    %p115 = scmp.eq.s32.totalorder %s16, 0
    %p116 = por %p114, %p115
    %p117 = scmp.ne.s32.totalorder %s106, %s109
    %p118 = scmp.eq.s32.totalorder %s21, 1
    %p119 = por %p117, %p118
    %p120 = scmp.ne.s32.totalorder %s109, %s110
    %p121 = scmp.eq.s32.totalorder %s21, 0
    %p122 = por %p120, %p121
    %p123 = scmp.ne.s32.totalorder %s109, %s110
    %p124 = scmp.eq.s32.totalorder %s22, 1
    %p125 = por %p123, %p124
    %p127 = scmp.ne.s32.totalorder %s110, %s126
    %p128 = scmp.eq.s32.totalorder %s22, 0
    %p129 = por %p127, %p128
    %s130 = sadd.s32 %s24, 1
    %s131 = smul.u32 %s130, 8
    %s132 = sadd.s32 %s131, 2
    %s133 = sadd.s32 %s31, 1
    %s134 = smul.u32 %s133, 8
    %s135 = sadd.s32 %s134, 2
    %s136 = ssub.s32 %s23, %s35
    %s137 = ssub.s32 %s132, %s135
    %s138 = sor.u32 %s136, %s137
    %p139 = scmp.eq.s32.totalorder %s138, 0
    %s141 = sadd.s32 %s140, 1
    %s142 = scalar_select %p139, %s140, %s141
    %p145 = pneg %p139
    %p146 = scmp.eq.s32.totalorder %s16, 1
    %p147 = por %p145, %p146
    %p148 = scmp.ne.s32.totalorder %s140, %s143
    %p149 = scmp.eq.s32.totalorder %s16, 0
    %p150 = por %p148, %p149
    %p151 = scmp.ne.s32.totalorder %s140, %s143
    %p152 = scmp.eq.s32.totalorder %s21, 1
    %p153 = por %p151, %p152
    %p154 = scmp.ne.s32.totalorder %s143, %s144
    %p155 = scmp.eq.s32.totalorder %s21, 0
    %p156 = por %p154, %p155
    %p157 = scmp.ne.s32.totalorder %s143, %s144
    %p158 = scmp.eq.s32.totalorder %s22, 1
    %p159 = por %p157, %p158
    %p161 = scmp.ne.s32.totalorder %s144, %s160
    %p162 = scmp.eq.s32.totalorder %s22, 0
    %p163 = por %p161, %p162
    %s165 = sadd.s32 %s164, 1
    %p168 = scmp.eq.s32.totalorder %s16, 1
    %p169 = scmp.ne.s32.totalorder %s164, %s166
    %p170 = scmp.eq.s32.totalorder %s16, 0
    %p171 = por %p169, %p170
    %p172 = scmp.ne.s32.totalorder %s164, %s166
    %p173 = scmp.eq.s32.totalorder %s21, 1
    %p174 = por %p172, %p173
    %p175 = scmp.ne.s32.totalorder %s166, %s167
    %p176 = scmp.eq.s32.totalorder %s21, 0
    %p177 = por %p175, %p176
    %p178 = scmp.ne.s32.totalorder %s166, %s167
    %p179 = scmp.eq.s32.totalorder %s22, 1
    %p180 = por %p178, %p179
    %p182 = scmp.ne.s32.totalorder %s167, %s181
    %p183 = scmp.eq.s32.totalorder %s22, 0
    %p184 = por %p182, %p183
    %s186 = sadd.s32 %s185, 1
    %p189 = scmp.eq.s32.totalorder %s16, 1
    %p190 = scmp.ne.s32.totalorder %s185, %s187
    %p191 = scmp.eq.s32.totalorder %s16, 0
    %p192 = por %p190, %p191
    %p193 = scmp.ne.s32.totalorder %s185, %s187
    %p194 = scmp.eq.s32.totalorder %s21, 1
    %p195 = por %p193, %p194
    %p196 = scmp.ne.s32.totalorder %s187, %s188
    %p197 = scmp.eq.s32.totalorder %s21, 0
    %p198 = por %p196, %p197
    %p199 = scmp.ne.s32.totalorder %s187, %s188
    %p200 = scmp.eq.s32.totalorder %s22, 1
    %p201 = por %p199, %p200
    %p203 = scmp.ne.s32.totalorder %s188, %s202
    %p204 = scmp.eq.s32.totalorder %s22, 0
    %p205 = por %p203, %p204
    %s207 = sadd.s32 %s206, 1
    %p210 = scmp.eq.s32.totalorder %s16, 1
    %p211 = scmp.ne.s32.totalorder %s206, %s208
    %p212 = scmp.eq.s32.totalorder %s16, 0
    %p213 = por %p211, %p212
    %p214 = scmp.ne.s32.totalorder %s206, %s208
    %p215 = scmp.eq.s32.totalorder %s21, 1
    %p216 = por %p214, %p215
    %p217 = scmp.ne.s32.totalorder %s208, %s209
    %p218 = scmp.eq.s32.totalorder %s21, 0
    %p219 = por %p217, %p218
    %p220 = scmp.ne.s32.totalorder %s208, %s209
    %p221 = scmp.eq.s32.totalorder %s22, 1
    %p222 = por %p220, %p221
    %p224 = scmp.ne.s32.totalorder %s209, %s223
    %p225 = scmp.eq.s32.totalorder %s22, 0
    %p226 = por %p224, %p225
    %s227 = ssub.s32 %s24, %s31
    %p228 = scmp.eq.s32.totalorder %s227, 0
    %s230 = sadd.s32 %s229, 1
    %s231 = scalar_select %p228, %s229, %s230
    %p234 = pneg %p228
    %p235 = scmp.eq.s32.totalorder %s16, 1
    %p236 = por %p234, %p235
    %p237 = scmp.ne.s32.totalorder %s229, %s232
    %p238 = scmp.eq.s32.totalorder %s16, 0
    %p239 = por %p237, %p238
    %p240 = scmp.ne.s32.totalorder %s229, %s232
    %p241 = scmp.eq.s32.totalorder %s21, 1
    %p242 = por %p240, %p241
    %p243 = scmp.ne.s32.totalorder %s232, %s233
    %p244 = scmp.eq.s32.totalorder %s21, 0
    %p245 = por %p243, %p244
    %p246 = scmp.ne.s32.totalorder %s232, %s233
    %p247 = scmp.eq.s32.totalorder %s22, 1
    %p248 = por %p246, %p247
    %p250 = scmp.ne.s32.totalorder %s233, %s249
    %p251 = scmp.eq.s32.totalorder %s22, 0
    %p252 = por %p250, %p251
    %s253 = ssub.s32 %s23, %s35
    %s254 = ssub.s32 %s24, %s31
    %s255 = sor.u32 %s253, %s254
    %p256 = scmp.eq.s32.totalorder %s255, 0
    %s258 = sadd.s32 %s257, 1
    %s259 = scalar_select %p256, %s257, %s258
    %p262 = pneg %p256
    %p263 = scmp.eq.s32.totalorder %s16, 1
    %p264 = por %p262, %p263
    %p265 = scmp.ne.s32.totalorder %s257, %s260
    %p266 = scmp.eq.s32.totalorder %s16, 0
    %p267 = por %p265, %p266
    %p268 = scmp.ne.s32.totalorder %s257, %s260
    %p269 = scmp.eq.s32.totalorder %s21, 1
    %p270 = por %p268, %p269
    %p271 = scmp.ne.s32.totalorder %s260, %s261
    %p272 = scmp.eq.s32.totalorder %s21, 0
    %p273 = por %p271, %p272
    %p274 = scmp.ne.s32.totalorder %s260, %s261
    %p275 = scmp.eq.s32.totalorder %s22, 1
    %p276 = por %p274, %p275
    %p278 = scmp.ne.s32.totalorder %s261, %s277
    %p279 = scmp.eq.s32.totalorder %s22, 0
    %p280 = por %p278, %p279
    %s281 = ssub.s32 %s23, %s35
    %s282 = ssub.s32 %s24, %s31
    %s283 = sor.u32 %s281, %s282
    %p284 = scmp.eq.s32.totalorder %s283, 0
    %s286 = sadd.s32 %s285, 1
    %s287 = scalar_select %p284, %s285, %s286
    %p290 = pneg %p284
    %p291 = scmp.eq.s32.totalorder %s16, 1
    %p292 = por %p290, %p291
    %p293 = scmp.ne.s32.totalorder %s285, %s288
    %p294 = scmp.eq.s32.totalorder %s16, 0
    %p295 = por %p293, %p294
    %p296 = scmp.ne.s32.totalorder %s285, %s288
    %p297 = scmp.eq.s32.totalorder %s21, 1
    %p298 = por %p296, %p297
    %p299 = scmp.ne.s32.totalorder %s288, %s289
    %p300 = scmp.eq.s32.totalorder %s21, 0
    %p301 = por %p299, %p300
    %p302 = scmp.ne.s32.totalorder %s288, %s289
    %p303 = scmp.eq.s32.totalorder %s22, 1
    %p304 = por %p302, %p303
    %p306 = scmp.ne.s32.totalorder %s289, %s305
    %p307 = scmp.eq.s32.totalorder %s22, 0
    %p308 = por %p306, %p307
    %p309 = scmp.le.s32.totalorder 1, %s16
    %p310 = scmp.lt.s32.totalorder %s16, 3
    %p311 = pnand %p309, %p310
    %p312 = pneg %p311
    // Predicated region
    $region9: #{compress_forward.4} parent=5 // pred_check
      _
    $region10: #{compress_forward.4} parent=5 // pred_check_branch
      %314 = sbr.rel (%p311) target = $region12
    $region11: #{compress_forward.4} parent=5 // pred_region
      %s315 = ssub.s32 %s16, 1
      // Predicated region
      $region13: #{compress_forward.4} parent=11 // pred_check
        %p316 = pneg %p177
      $region14: #{compress_forward.4} parent=11 // pred_check_branch
        %318 = sbr.rel (%p316) target = $region16
      $region15: #{compress_forward.4} parent=11 // pred_region
        _
      $region16: #{compress_forward.4} parent=11 // pred_fallthru
        _
      // Predicated region
      $region17: #{compress_forward.4} parent=11 // pred_check
        %p319 = pneg %p198
      $region18: #{compress_forward.4} parent=11 // pred_check_branch
        %321 = sbr.rel (%p319) target = $region20
      $region19: #{compress_forward.4} parent=11 // pred_region
        _
      $region20: #{compress_forward.4} parent=11 // pred_fallthru
        _
      // Predicated region
      $region21: #{compress_forward.4} parent=11 // pred_check
        %p322 = pneg %p219
      $region22: #{compress_forward.4} parent=11 // pred_check_branch
        %324 = sbr.rel (%p322) target = $region24
      $region23: #{compress_forward.4} parent=11 // pred_region
        _
      $region24: #{compress_forward.4} parent=11 // pred_fallthru
        _
      // Predicated region
      $region25: #{compress_forward.4} parent=11 // pred_check
        %p325 = pneg %p245
      $region26: #{compress_forward.4} parent=11 // pred_check_branch
        %327 = sbr.rel (%p325) target = $region28
      $region27: #{compress_forward.4} parent=11 // pred_region
        %s328 = smul.u32 8, %s26
        %p329 = scmp.lt.s32.totalorder %s328, 7
        %s330 = scalar_select %p329, %s328, 7
        %s331 = smul.addr %s330, 8
        %s332 = scalar_lea.vmem %s7, %s331
        %s333 = smul.u32 8, %s26
      $region28: #{compress_forward.4} parent=11 // pred_fallthru
        _
    $region12: #{compress_forward.4} parent=5 // pred_fallthru
      _
    %p334 = scmp.lt.s32.totalorder %s16, 2
    // Predicated region
    $region29: #{compress_forward.4} parent=5 // pred_check
      %p335 = pneg %p334
    $region30: #{compress_forward.4} parent=5 // pred_check_branch
      %337 = sbr.rel (%p335) target = $region32
    $region31: #{compress_forward.4} parent=5 // pred_region
      // Predicated region
      $region33: #{compress_forward.4} parent=31 // pred_check
        %p338 = pneg %p50
      $region34: #{compress_forward.4} parent=31 // pred_check_branch
        %340 = sbr.rel (%p338) target = $region36
      $region35: #{compress_forward.4} parent=31 // pred_region
        %s341 = smul.u32 8, %s24
        %p342 = scmp.lt.s32.totalorder %s23, 1
        %s343 = scalar_select %p342, %s23, 1
        %p344 = scmp.lt.s32.totalorder %s341, 15
        %s345 = scalar_select %p344, %s341, 15
        %s346 = smul.addr %s343, 16
        %s347 = sadd.s32 %s345, %s346
        %s348 = smul.addr %s347, 8
        %s349 = scalar_lea.vmem %s0, %s348
        %s350 = smul.u32 8, %s24
      $region36: #{compress_forward.4} parent=31 // pred_fallthru
        _
      // Predicated region
      $region37: #{compress_forward.4} parent=31 // pred_check
        %p351 = pneg %p82
      $region38: #{compress_forward.4} parent=31 // pred_check_branch
        %353 = sbr.rel (%p351) target = $region40
      $region39: #{compress_forward.4} parent=31 // pred_region
        %s354 = sadd.s32 %s24, 1
        %s355 = smul.u32 %s354, 8
        %p356 = scmp.lt.s32.totalorder %s23, 1
        %s357 = scalar_select %p356, %s23, 1
        %p358 = scmp.lt.s32.totalorder %s355, 15
        %s359 = scalar_select %p358, %s355, 15
        %s360 = smul.addr %s357, 16
        %s361 = sadd.s32 %s359, %s360
        %s362 = smul.addr %s361, 8
        %s363 = scalar_lea.vmem %s1, %s362
        %s364 = sadd.s32 %s24, 1
        %s365 = smul.u32 %s364, 8
      $region40: #{compress_forward.4} parent=31 // pred_fallthru
        _
      // Predicated region
      $region41: #{compress_forward.4} parent=31 // pred_check
        %p366 = pneg %p116
      $region42: #{compress_forward.4} parent=31 // pred_check_branch
        %368 = sbr.rel (%p366) target = $region44
      $region43: #{compress_forward.4} parent=31 // pred_region
        %s369 = sadd.s32 %s24, 1
        %s370 = smul.u32 %s369, 8
        %s371 = sadd.s32 %s370, 1
        %p372 = scmp.lt.s32.totalorder %s23, 1
        %s373 = scalar_select %p372, %s23, 1
        %p374 = scmp.lt.s32.totalorder %s371, 15
        %s375 = scalar_select %p374, %s371, 15
        %s376 = smul.addr %s373, 16
        %s377 = sadd.s32 %s375, %s376
        %s378 = smul.addr %s377, 8
        %s379 = scalar_lea.vmem %s2, %s378
        %s380 = sadd.s32 %s24, 1
        %s381 = smul.u32 %s380, 8
        %s382 = sadd.s32 %s381, 1
      $region44: #{compress_forward.4} parent=31 // pred_fallthru
        _
      // Predicated region
      $region45: #{compress_forward.4} parent=31 // pred_check
        %p383 = pneg %p150
      $region46: #{compress_forward.4} parent=31 // pred_check_branch
        %385 = sbr.rel (%p383) target = $region48
      $region47: #{compress_forward.4} parent=31 // pred_region
        %s386 = sadd.s32 %s24, 1
        %s387 = smul.u32 %s386, 8
        %s388 = sadd.s32 %s387, 2
        %p389 = scmp.lt.s32.totalorder %s23, 1
        %s390 = scalar_select %p389, %s23, 1
        %p391 = scmp.lt.s32.totalorder %s388, 15
        %s392 = scalar_select %p391, %s388, 15
        %s393 = smul.addr %s390, 16
        %s394 = sadd.s32 %s392, %s393
        %s395 = smul.addr %s394, 8
        %s396 = scalar_lea.vmem %s3, %s395
        %s397 = sadd.s32 %s24, 1
        %s398 = smul.u32 %s397, 8
        %s399 = sadd.s32 %s398, 2
      $region48: #{compress_forward.4} parent=31 // pred_fallthru
        _
    $region32: #{compress_forward.4} parent=5 // pred_fallthru
      _
    %p400 = scmp.le.s32.totalorder 1, %s16
    %p401 = scmp.lt.s32.totalorder %s16, 3
    %p402 = pnand %p400, %p401
    %p403 = pneg %p402
    // Predicated region
    $region49: #{compress_forward.4} parent=5 // pred_check
      _
    $region50: #{compress_forward.4} parent=5 // pred_check_branch
      %405 = sbr.rel (%p402) target = $region52
    $region51: #{compress_forward.4} parent=5 // pred_region
      %s406 = ssub.s32 %s16, 1
      %s407 = smul.u32 8, %s26
      %p408 = scmp.lt.s32.totalorder %s25, 1
      %s409 = scalar_select %p408, %s25, 1
      %p410 = scmp.lt.s32.totalorder %s407, 15
      %s411 = scalar_select %p410, %s407, 15
      %s412 = smul.addr %s409, 16
      %s413 = sadd.s32 %s411, %s412
      %s414 = smul.addr %s413, 8
      %s415 = scalar_lea.vmem %s0, %s414
      %p416 = pneg %p56
      %p417 = pneg %p53
      %s418 = sadd.s32 %s26, 1
      %s419 = smul.u32 %s418, 8
      %p420 = scmp.lt.s32.totalorder %s25, 1
      %s421 = scalar_select %p420, %s25, 1
      %p422 = scmp.lt.s32.totalorder %s419, 15
      %s423 = scalar_select %p422, %s419, 15
      %s424 = smul.addr %s421, 16
      %s425 = sadd.s32 %s423, %s424
      %s426 = smul.addr %s425, 8
      %s427 = scalar_lea.vmem %s1, %s426
      %p428 = pneg %p88
      %p429 = pneg %p85
      %s430 = sadd.s32 %s26, 1
      %s431 = smul.u32 %s430, 8
      %s432 = sadd.s32 %s431, 1
      %p433 = scmp.lt.s32.totalorder %s25, 1
      %s434 = scalar_select %p433, %s25, 1
      %p435 = scmp.lt.s32.totalorder %s432, 15
      %s436 = scalar_select %p435, %s432, 15
      %s437 = smul.addr %s434, 16
      %s438 = sadd.s32 %s436, %s437
      %s439 = smul.addr %s438, 8
      %s440 = scalar_lea.vmem %s2, %s439
      %p441 = pneg %p122
      %p442 = pneg %p119
      %s443 = sadd.s32 %s26, 1
      %s444 = smul.u32 %s443, 8
      %s445 = sadd.s32 %s444, 2
      %p446 = scmp.lt.s32.totalorder %s25, 1
      %s447 = scalar_select %p446, %s25, 1
      %p448 = scmp.lt.s32.totalorder %s445, 15
      %s449 = scalar_select %p448, %s445, 15
      %s450 = smul.addr %s447, 16
      %s451 = sadd.s32 %s449, %s450
      %s452 = smul.addr %s451, 8
      %s453 = scalar_lea.vmem %s3, %s452
      %p454 = pneg %p156
      %p455 = pneg %p153
      %p456 = pneg %p177
      %p457 = pneg %p174
      %p458 = pneg %p198
      %p459 = pneg %p195
      %p460 = pneg %p219
      %p461 = pneg %p216
      %s462 = smul.u32 8, %s26
      %p463 = scmp.lt.s32.totalorder %s462, 7
      %s464 = scalar_select %p463, %s462, 7
      %s465 = smul.addr %s464, 8
      %s466 = scalar_lea.vmem %s7, %s465
      %p467 = pneg %p245
      %p468 = pneg %p242
      %p469 = pneg %p273
      %p470 = pneg %p270
      %s471 = smul.u32 8, %s26
      %p472 = scmp.lt.s32.totalorder %s25, 1
      %s473 = scalar_select %p472, %s25, 1
      %p474 = scmp.lt.s32.totalorder %s471, 7
      %s475 = scalar_select %p474, %s471, 7
      %s476 = smul.addr %s473, 8
      %s477 = sadd.s32 %s475, %s476
      %s478 = smul.addr %s477, 8
      %s479 = scalar_lea.vmem %s8, %s478
      %p480 = pneg %p301
      %p481 = pneg %p298
      %p482 = scmp.lt.s32.totalorder %s25, 1
      %s483 = scalar_select %p482, %s25, 1
      %p484 = scmp.lt.s32.totalorder %s26, 0
      %s485 = scalar_select %p484, %s26, 0
      %s486 = sadd.s32 %s485, %s483
      %s487 = smul.addr %s486, 2
      %s488 = scalar_lea.vmem %s9, %s487
      %s489 = smul.u32 8, %s26
      %p490 = scmp.lt.s32.totalorder %s25, 1
      %s491 = scalar_select %p490, %s25, 1
      %p492 = scmp.lt.s32.totalorder %s489, 15
      %s493 = scalar_select %p492, %s489, 15
      %s494 = smul.addr %s491, 16
      %s495 = sadd.s32 %s493, %s494
      %s496 = smul.addr %s495, 8
      %s497 = scalar_lea.vmem %s0, %s496
      %s498 = smul.u32 8, %s26
      %s499 = sadd.s32 %s26, 1
      %s500 = smul.u32 %s499, 8
      %p501 = scmp.lt.s32.totalorder %s25, 1
      %s502 = scalar_select %p501, %s25, 1
      %p503 = scmp.lt.s32.totalorder %s500, 15
      %s504 = scalar_select %p503, %s500, 15
      %s505 = smul.addr %s502, 16
      %s506 = sadd.s32 %s504, %s505
      %s507 = smul.addr %s506, 8
      %s508 = scalar_lea.vmem %s1, %s507
      %s509 = sadd.s32 %s26, 1
      %s510 = smul.u32 %s509, 8
      %s511 = sadd.s32 %s26, 1
      %s512 = smul.u32 %s511, 8
      %s513 = sadd.s32 %s512, 1
      %p514 = scmp.lt.s32.totalorder %s25, 1
      %s515 = scalar_select %p514, %s25, 1
      %p516 = scmp.lt.s32.totalorder %s513, 15
      %s517 = scalar_select %p516, %s513, 15
      %s518 = smul.addr %s515, 16
      %s519 = sadd.s32 %s517, %s518
      %s520 = smul.addr %s519, 8
      %s521 = scalar_lea.vmem %s2, %s520
      %s522 = sadd.s32 %s26, 1
      %s523 = smul.u32 %s522, 8
      %s524 = sadd.s32 %s523, 1
      %s525 = sadd.s32 %s26, 1
      %s526 = smul.u32 %s525, 8
      %s527 = sadd.s32 %s526, 2
      %p528 = scmp.lt.s32.totalorder %s25, 1
      %s529 = scalar_select %p528, %s25, 1
      %p530 = scmp.lt.s32.totalorder %s527, 15
      %s531 = scalar_select %p530, %s527, 15
      %s532 = smul.addr %s529, 16
      %s533 = sadd.s32 %s531, %s532
      %s534 = smul.addr %s533, 8
      %s535 = scalar_lea.vmem %s3, %s534
      %s536 = sadd.s32 %s26, 1
      %s537 = smul.u32 %s536, 8
      %s538 = sadd.s32 %s537, 2
      %s539 = smul.u32 8, %s26
      %p540 = scmp.lt.s32.totalorder %s539, 7
      %s541 = scalar_select %p540, %s539, 7
      %s542 = smul.addr %s541, 8
      %s543 = scalar_lea.vmem %s7, %s542
      %s544 = smul.u32 8, %s26
      %s545 = smul.u32 8, %s26
      %p546 = scmp.lt.s32.totalorder %s25, 1
      %s547 = scalar_select %p546, %s25, 1
      %p548 = scmp.lt.s32.totalorder %s545, 7
      %s549 = scalar_select %p548, %s545, 7
      %s550 = smul.addr %s547, 8
      %s551 = sadd.s32 %s549, %s550
      %s552 = smul.addr %s551, 8
      %s553 = scalar_lea.vmem %s8, %s552
      %s554 = smul.u32 8, %s26
      %p555 = scmp.lt.s32.totalorder %s25, 1
      %s556 = scalar_select %p555, %s25, 1
      %p557 = scmp.lt.s32.totalorder %s26, 0
      %s558 = scalar_select %p557, %s26, 0
      %s559 = sadd.s32 %s558, %s556
      %s560 = smul.addr %s559, 2
      %s561 = scalar_lea.vmem %s9, %s560
      %v562 = vld [vmem:[%s497] sm:$0xff]
      %v563 = vld [vmem:[%s497 + $0x8] sm:$0xff]
      %v564 = vld [vmem:[%s497 + $0x10] sm:$0xff]
      %v565 = vld [vmem:[%s497 + $0x18] sm:$0xff]
      %v566 = vld [vmem:[%s497 + $0x20] sm:$0xff]
      %v567 = vld [vmem:[%s497 + $0x28] sm:$0xff]
      %v568 = vld [vmem:[%s497 + $0x30] sm:$0xff]
      %v569 = vld [vmem:[%s497 + $0x38] sm:$0xff]
      %v570 = vld [vmem:[%s508] sm:$0xff]
      %v571 = vld [vmem:[%s521] sm:$0xff]
      %v572 = vld [vmem:[%s535] sm:$0xff]
      %v573 = vld [vmem:[%s5] sm:$0x1]
      %v575 = vlaneseq
      %v576 = vshrl.u32 %v575, 7
      %v577 = vsub.s32 0, %v576
      %v578 = vrot.slane %v573, %v577
      %v580 = vmul.f32 %v562, %v578
      %v581 = vmul.f32 %v563, %v578
      %v582 = vmul.f32 %v564, %v578
      %v583 = vmul.f32 %v565, %v578
      %v584 = vmul.f32 %v566, %v578
      %v585 = vmul.f32 %v567, %v578
      %v586 = vmul.f32 %v568, %v578
      %v587 = vmul.f32 %v569, %v578
      %v588 = vmul.f32 %v570, %v578
      %v589 = vmul.f32 %v571, %v578
      %v590 = vmul.f32 %v572, %v578
      %v591 = vld [vmem:[%s6] sm:$0x1]
      %v593 = vlaneseq
      %v594 = vshrl.u32 %v593, 7
      %v595 = vsub.s32 0, %v594
      %v596 = vrot.slane %v591, %v595
      %v598 = vadd.f32 %v580, %v596
      %v599 = vadd.f32 %v581, %v596
      %v600 = vadd.f32 %v582, %v596
      %v601 = vadd.f32 %v583, %v596
      %v602 = vadd.f32 %v584, %v596
      %v603 = vadd.f32 %v585, %v596
      %v604 = vadd.f32 %v586, %v596
      %v605 = vadd.f32 %v587, %v596
      %v606 = vadd.f32 %v588, %v596
      %v607 = vadd.f32 %v589, %v596
      %v608 = vadd.f32 %v590, %v596
      %v609 = vmax.f32 %v598, 0.0
      %v610 = vmax.f32 %v599, 0.0
      %v611 = vmax.f32 %v600, 0.0
      %v612 = vmax.f32 %v601, 0.0
      %v613 = vmax.f32 %v602, 0.0
      %v614 = vmax.f32 %v603, 0.0
      %v615 = vmax.f32 %v604, 0.0
      %v616 = vmax.f32 %v605, 0.0
      %v617 = vmax.f32 %v606, 0.0
      %v618 = vmax.f32 %v607, 0.0
      %v619 = vmax.f32 %v608, 0.0
      %v620 = vld [vmem:[%s4] sm:$0xff]
      %v621 = vld [vmem:[%s4 + $0x8] sm:$0xff]
      %v622 = vld [vmem:[%s4 + $0x10] sm:$0xff]
      %v623 = vld [vmem:[%s4 + $0x18] sm:$0xff]
      %v624 = vld [vmem:[%s4 + $0x20] sm:$0xff]
      %v625 = vld [vmem:[%s4 + $0x28] sm:$0xff]
      %v626 = vld [vmem:[%s4 + $0x30] sm:$0xff]
      %v627 = vld [vmem:[%s4 + $0x38] sm:$0xff]
      %v628 = vld [vmem:[%s4 + $0x40] sm:$0xff]
      %v629 = vld [vmem:[%s4 + $0x48] sm:$0xff]
      %v630 = vld [vmem:[%s4 + $0x50] sm:$0xff]
      %v631 = vld [vmem:[%s4 + $0x58] sm:$0xff]
      %v632 = vld [vmem:[%s4 + $0x60] sm:$0xff]
      %v633 = vld [vmem:[%s4 + $0x68] sm:$0xff]
      %v634 = vld [vmem:[%s4 + $0x70] sm:$0xff]
      %v635 = vld [vmem:[%s4 + $0x78] sm:$0xff]
      %s636 = scalar_lea.vmem %s4, 128
      %v637 = vld [vmem:[%s636] sm:$0xff]
      %v638 = vld [vmem:[%s636 + $0x8] sm:$0xff]
      %v639 = vld [vmem:[%s636 + $0x10] sm:$0xff]
      %v640 = vld [vmem:[%s636 + $0x18] sm:$0xff]
      %v641 = vld [vmem:[%s636 + $0x20] sm:$0xff]
      %v642 = vld [vmem:[%s636 + $0x28] sm:$0xff]
      %v643 = vld [vmem:[%s636 + $0x30] sm:$0xff]
      %v644 = vld [vmem:[%s636 + $0x38] sm:$0xff]
      %v645 = vld [vmem:[%s636 + $0x40] sm:$0xff]
      %v646 = vld [vmem:[%s636 + $0x48] sm:$0xff]
      %v647 = vld [vmem:[%s636 + $0x50] sm:$0xff]
      %v648 = vld [vmem:[%s636 + $0x58] sm:$0xff]
      %v649 = vld [vmem:[%s636 + $0x60] sm:$0xff]
      %v650 = vld [vmem:[%s636 + $0x68] sm:$0xff]
      %v651 = vld [vmem:[%s636 + $0x70] sm:$0xff]
      %v652 = vld [vmem:[%s636 + $0x78] sm:$0xff]
      %vm662 = vcmask 1046528
      %v663 = vrot.slane %v609, 1
      %v664 = vrot.slane %v610, 1
      %v665 = vsel %vm662, %v663, %v664
      %v666 = vrot.slane %v611, 1
      %v667 = vsel %vm662, %v664, %v666
      %v668 = vrot.slane %v612, 1
      %v669 = vsel %vm662, %v666, %v668
      %v670 = vrot.slane %v613, 1
      %v671 = vsel %vm662, %v668, %v670
      %v672 = vrot.slane %v614, 1
      %v673 = vsel %vm662, %v670, %v672
      %v674 = vrot.slane %v615, 1
      %v675 = vsel %vm662, %v672, %v674
      %v676 = vrot.slane %v616, 1
      %v677 = vsel %vm662, %v674, %v676
      %v678 = vrot.slane %v617, 1
      %v679 = vsel %vm662, %v676, %v678
      %688 = vmatprep.subr.mxu0 0.0
      %689 = vmatpush1.msra.mxu0 %v637
      %690 = vmatprep.subr.mxu0 0.0
      %691 = vmatpush1.msra.mxu0 %v638
      %692 = vmatprep.subr.mxu0 0.0
      %693 = vmatpush1.msra.mxu0 %v639
      %694 = vmatprep.subr.mxu0 0.0
      %695 = vmatpush1.msra.mxu0 %v640
      %696 = vmatprep.subr.mxu0 0.0
      %697 = vmatpush1.msra.mxu0 %v641
      %698 = vmatprep.subr.mxu0 0.0
      %699 = vmatpush1.msra.mxu0 %v642
      %700 = vmatprep.subr.mxu0 0.0
      %701 = vmatpush1.msra.mxu0 %v643
      %702 = vmatprep.subr.mxu0 0.0
      %703 = vmatpush1.msra.mxu0 %v644
      %704 = vmatprep.subr.mxu0 0.0
      %705 = vmatpush1.msra.mxu0 %v645
      %706 = vmatprep.subr.mxu0 0.0
      %707 = vmatpush1.msra.mxu0 %v646
      %708 = vmatprep.subr.mxu0 0.0
      %709 = vmatpush1.msra.mxu0 %v647
      %710 = vmatprep.subr.mxu0 0.0
      %711 = vmatpush1.msra.mxu0 %v648
      %712 = vmatprep.subr.mxu0 0.0
      %713 = vmatpush1.msra.mxu0 %v649
      %714 = vmatprep.subr.mxu0 0.0
      %715 = vmatpush1.msra.mxu0 %v650
      %716 = vmatprep.subr.mxu0 0.0
      %717 = vmatpush1.msra.mxu0 %v651
      %718 = vmatprep.subr.mxu0 0.0
      %719 = vmatpush1.msra.mxu0 %v652
      %720 = vmatprep.subr.mxu0 0.0
      %721 = vmatpush1.msra.mxu0 0.0
      %722 = vmatprep.subr.mxu0 0.0
      %723 = vmatpush1.msra.mxu0 0.0
      %724 = vmatprep.subr.mxu0 0.0
      %725 = vmatpush1.msra.mxu0 0.0
      %726 = vmatprep.subr.mxu0 0.0
      %727 = vmatpush1.msra.mxu0 0.0
      %728 = vmatprep.subr.mxu0 0.0
      %729 = vmatpush1.msra.mxu0 0.0
      %730 = vmatprep.subr.mxu0 0.0
      %731 = vmatpush1.msra.mxu0 0.0
      %732 = vmatprep.subr.mxu0 0.0
      %733 = vmatpush1.msra.mxu0 0.0
      %734 = vmatprep.subr.mxu0 0.0
      %735 = vmatpush1.msra.mxu0 0.0
      %736 = vmatprep.subr.mxu0 0.0
      %737 = vmatpush1.msra.mxu0 0.0
      %738 = vmatprep.subr.mxu0 0.0
      %739 = vmatpush1.msra.mxu0 0.0
      %740 = vmatprep.subr.mxu0 0.0
      %741 = vmatpush1.msra.mxu0 0.0
      %742 = vmatprep.subr.mxu0 0.0
      %743 = vmatpush1.msra.mxu0 0.0
      %744 = vmatprep.subr.mxu0 0.0
      %745 = vmatpush1.msra.mxu0 0.0
      %746 = vmatprep.subr.mxu0 0.0
      %747 = vmatpush1.msra.mxu0 0.0
      %748 = vmatprep.subr.mxu0 0.0
      %749 = vmatpush1.msra.mxu0 0.0
      %750 = vmatprep.subr.mxu0 0.0
      %751 = vmatpush1.msra.mxu0 0.0
      %752 = vmatprep.mubr.f32.mxu0 0.0
      %753 = vmatmul.mubr.f32.gmra.mrb[0].mxu0 %v665
      %v754 = vpop.f32.mrb[0].mxu0
      %v755 = vadd.f32 0.0, %v754
      %v756 = vpop.f32.mrb[0].mxu0
      %757 = vmatprep.mubr.f32.mxu0 0.0
      %758 = vmatmul.mubr.f32.gmra.mrb[0].mxu0 %v667
      %v759 = vpop.f32.mrb[0].mxu0
      %v760 = vadd.f32 0.0, %v759
      %v761 = vpop.f32.mrb[0].mxu0
      %762 = vmatprep.mubr.f32.mxu0 0.0
      %763 = vmatmul.mubr.f32.gmra.mrb[0].mxu0 %v669
      %v764 = vpop.f32.mrb[0].mxu0
      %v765 = vadd.f32 0.0, %v764
      %v766 = vpop.f32.mrb[0].mxu0
      %767 = vmatprep.mubr.f32.mxu0 0.0
      %768 = vmatmul.mubr.f32.gmra.mrb[0].mxu0 %v671
      %v769 = vpop.f32.mrb[0].mxu0
      %v770 = vadd.f32 0.0, %v769
      %v771 = vpop.f32.mrb[0].mxu0
      %772 = vmatprep.mubr.f32.mxu0 0.0
      %773 = vmatmul.mubr.f32.gmra.mrb[0].mxu0 %v673
      %v774 = vpop.f32.mrb[0].mxu0
      %v775 = vadd.f32 0.0, %v774
      %v776 = vpop.f32.mrb[0].mxu0
      %777 = vmatprep.mubr.f32.mxu0 0.0
      %778 = vmatmul.mubr.f32.gmra.mrb[0].mxu0 %v675
      %v779 = vpop.f32.mrb[0].mxu0
      %v780 = vadd.f32 0.0, %v779
      %v781 = vpop.f32.mrb[0].mxu0
      %782 = vmatprep.mubr.f32.mxu0 0.0
      %783 = vmatmul.mubr.f32.gmra.mrb[0].mxu0 %v677
      %v784 = vpop.f32.mrb[0].mxu0
      %v785 = vadd.f32 0.0, %v784
      %v786 = vpop.f32.mrb[0].mxu0
      %787 = vmatprep.mubr.f32.mxu0 0.0
      %788 = vmatmul.mubr.f32.gmra.mrb[0].mxu0 %v679
      %v789 = vpop.f32.mrb[0].mxu0
      %v790 = vadd.f32 0.0, %v789
      %v791 = vpop.f32.mrb[0].mxu0
      %792 = vdwg.mxu0
      %793 = vmatprep.subr.mxu0 0.0
      %794 = vmatpush1.msra.mxu0 %v620
      %795 = vmatprep.subr.mxu0 0.0
      %796 = vmatpush1.msra.mxu0 %v621
      %797 = vmatprep.subr.mxu0 0.0
      %798 = vmatpush1.msra.mxu0 %v622
      %799 = vmatprep.subr.mxu0 0.0
      %800 = vmatpush1.msra.mxu0 %v623
      %801 = vmatprep.subr.mxu0 0.0
      %802 = vmatpush1.msra.mxu0 %v624
      %803 = vmatprep.subr.mxu0 0.0
      %804 = vmatpush1.msra.mxu0 %v625
      %805 = vmatprep.subr.mxu0 0.0
      %806 = vmatpush1.msra.mxu0 %v626
      %807 = vmatprep.subr.mxu0 0.0
      %808 = vmatpush1.msra.mxu0 %v627
      %809 = vmatprep.subr.mxu0 0.0
      %810 = vmatpush1.msra.mxu0 %v628
      %811 = vmatprep.subr.mxu0 0.0
      %812 = vmatpush1.msra.mxu0 %v629
      %813 = vmatprep.subr.mxu0 0.0
      %814 = vmatpush1.msra.mxu0 %v630
      %815 = vmatprep.subr.mxu0 0.0
      %816 = vmatpush1.msra.mxu0 %v631
      %817 = vmatprep.subr.mxu0 0.0
      %818 = vmatpush1.msra.mxu0 %v632
      %819 = vmatprep.subr.mxu0 0.0
      %820 = vmatpush1.msra.mxu0 %v633
      %821 = vmatprep.subr.mxu0 0.0
      %822 = vmatpush1.msra.mxu0 %v634
      %823 = vmatprep.subr.mxu0 0.0
      %824 = vmatpush1.msra.mxu0 %v635
      %825 = vmatprep.subr.mxu0 0.0
      %826 = vmatpush1.msra.mxu0 0.0
      %827 = vmatprep.subr.mxu0 0.0
      %828 = vmatpush1.msra.mxu0 0.0
      %829 = vmatprep.subr.mxu0 0.0
      %830 = vmatpush1.msra.mxu0 0.0
      %831 = vmatprep.subr.mxu0 0.0
      %832 = vmatpush1.msra.mxu0 0.0
      %833 = vmatprep.subr.mxu0 0.0
      %834 = vmatpush1.msra.mxu0 0.0
      %835 = vmatprep.subr.mxu0 0.0
      %836 = vmatpush1.msra.mxu0 0.0
      %837 = vmatprep.subr.mxu0 0.0
      %838 = vmatpush1.msra.mxu0 0.0
      %839 = vmatprep.subr.mxu0 0.0
      %840 = vmatpush1.msra.mxu0 0.0
      %841 = vmatprep.subr.mxu0 0.0
      %842 = vmatpush1.msra.mxu0 0.0
      %843 = vmatprep.subr.mxu0 0.0
      %844 = vmatpush1.msra.mxu0 0.0
      %845 = vmatprep.subr.mxu0 0.0
      %846 = vmatpush1.msra.mxu0 0.0
      %847 = vmatprep.subr.mxu0 0.0
      %848 = vmatpush1.msra.mxu0 0.0
      %849 = vmatprep.subr.mxu0 0.0
      %850 = vmatpush1.msra.mxu0 0.0
      %851 = vmatprep.subr.mxu0 0.0
      %852 = vmatpush1.msra.mxu0 0.0
      %853 = vmatprep.subr.mxu0 0.0
      %854 = vmatpush1.msra.mxu0 0.0
      %855 = vmatprep.subr.mxu0 0.0
      %856 = vmatpush1.msra.mxu0 0.0
      %857 = vmatprep.mubr.f32.mxu0 0.0
      %858 = vmatmul.mubr.f32.gmra.mrb[0].mxu0 %v609
      %v859 = vpop.f32.mrb[0].mxu0
      %v860 = vadd.f32 %v755, %v859
      %v861 = vpop.f32.mrb[0].mxu0
      %862 = vmatprep.mubr.f32.mxu0 0.0
      %863 = vmatmul.mubr.f32.gmra.mrb[0].mxu0 %v610
      %v864 = vpop.f32.mrb[0].mxu0
      %v865 = vadd.f32 %v760, %v864
      %v866 = vpop.f32.mrb[0].mxu0
      %867 = vmatprep.mubr.f32.mxu0 0.0
      %868 = vmatmul.mubr.f32.gmra.mrb[0].mxu0 %v611
      %v869 = vpop.f32.mrb[0].mxu0
      %v870 = vadd.f32 %v765, %v869
      %v871 = vpop.f32.mrb[0].mxu0
      %872 = vmatprep.mubr.f32.mxu0 0.0
      %873 = vmatmul.mubr.f32.gmra.mrb[0].mxu0 %v612
      %v874 = vpop.f32.mrb[0].mxu0
      %v875 = vadd.f32 %v770, %v874
      %v876 = vpop.f32.mrb[0].mxu0
      %877 = vmatprep.mubr.f32.mxu0 0.0
      %878 = vmatmul.mubr.f32.gmra.mrb[0].mxu0 %v613
      %v879 = vpop.f32.mrb[0].mxu0
      %v880 = vadd.f32 %v775, %v879
      %v881 = vpop.f32.mrb[0].mxu0
      %882 = vmatprep.mubr.f32.mxu0 0.0
      %883 = vmatmul.mubr.f32.gmra.mrb[0].mxu0 %v614
      %v884 = vpop.f32.mrb[0].mxu0
      %v885 = vadd.f32 %v780, %v884
      %v886 = vpop.f32.mrb[0].mxu0
      %887 = vmatprep.mubr.f32.mxu0 0.0
      %888 = vmatmul.mubr.f32.gmra.mrb[0].mxu0 %v615
      %v889 = vpop.f32.mrb[0].mxu0
      %v890 = vadd.f32 %v785, %v889
      %v891 = vpop.f32.mrb[0].mxu0
      %892 = vmatprep.mubr.f32.mxu0 0.0
      %893 = vmatmul.mubr.f32.gmra.mrb[0].mxu0 %v616
      %v894 = vpop.f32.mrb[0].mxu0
      %v895 = vadd.f32 %v790, %v894
      %v896 = vpop.f32.mrb[0].mxu0
      %897 = vdwg.mxu0
      %s898 = scalar_lea.vmem %s4, 256
      %v899 = vld [vmem:[%s898] sm:$0xff]
      %v900 = vld [vmem:[%s898 + $0x8] sm:$0xff]
      %v901 = vld [vmem:[%s898 + $0x10] sm:$0xff]
      %v902 = vld [vmem:[%s898 + $0x18] sm:$0xff]
      %v903 = vld [vmem:[%s898 + $0x20] sm:$0xff]
      %v904 = vld [vmem:[%s898 + $0x28] sm:$0xff]
      %v905 = vld [vmem:[%s898 + $0x30] sm:$0xff]
      %v906 = vld [vmem:[%s898 + $0x38] sm:$0xff]
      %v907 = vld [vmem:[%s898 + $0x40] sm:$0xff]
      %v908 = vld [vmem:[%s898 + $0x48] sm:$0xff]
      %v909 = vld [vmem:[%s898 + $0x50] sm:$0xff]
      %v910 = vld [vmem:[%s898 + $0x58] sm:$0xff]
      %v911 = vld [vmem:[%s898 + $0x60] sm:$0xff]
      %v912 = vld [vmem:[%s898 + $0x68] sm:$0xff]
      %v913 = vld [vmem:[%s898 + $0x70] sm:$0xff]
      %v914 = vld [vmem:[%s898 + $0x78] sm:$0xff]
      %vm915 = vcmask 1045504
      %v916 = vrot.slane %v609, 2
      %v917 = vrot.slane %v610, 2
      %v918 = vsel %vm915, %v916, %v917
      %v919 = vrot.slane %v611, 2
      %v920 = vsel %vm915, %v917, %v919
      %v921 = vrot.slane %v612, 2
      %v922 = vsel %vm915, %v919, %v921
      %v923 = vrot.slane %v613, 2
      %v924 = vsel %vm915, %v921, %v923
      %v925 = vrot.slane %v614, 2
      %v926 = vsel %vm915, %v923, %v925
      %v927 = vrot.slane %v615, 2
      %v928 = vsel %vm915, %v925, %v927
      %v929 = vrot.slane %v616, 2
      %v930 = vsel %vm915, %v927, %v929
      %v931 = vrot.slane %v617, 2
      %v932 = vsel %vm915, %v929, %v931
      %941 = vmatprep.subr.mxu0 0.0
      %942 = vmatpush1.msra.mxu0 %v899
      %943 = vmatprep.subr.mxu0 0.0
      %944 = vmatpush1.msra.mxu0 %v900
      %945 = vmatprep.subr.mxu0 0.0
      %946 = vmatpush1.msra.mxu0 %v901
      %947 = vmatprep.subr.mxu0 0.0
      %948 = vmatpush1.msra.mxu0 %v902
      %949 = vmatprep.subr.mxu0 0.0
      %950 = vmatpush1.msra.mxu0 %v903
      %951 = vmatprep.subr.mxu0 0.0
      %952 = vmatpush1.msra.mxu0 %v904
      %953 = vmatprep.subr.mxu0 0.0
      %954 = vmatpush1.msra.mxu0 %v905
      %955 = vmatprep.subr.mxu0 0.0
      %956 = vmatpush1.msra.mxu0 %v906
      %957 = vmatprep.subr.mxu0 0.0
      %958 = vmatpush1.msra.mxu0 %v907
      %959 = vmatprep.subr.mxu0 0.0
      %960 = vmatpush1.msra.mxu0 %v908
      %961 = vmatprep.subr.mxu0 0.0
      %962 = vmatpush1.msra.mxu0 %v909
      %963 = vmatprep.subr.mxu0 0.0
      %964 = vmatpush1.msra.mxu0 %v910
      %965 = vmatprep.subr.mxu0 0.0
      %966 = vmatpush1.msra.mxu0 %v911
      %967 = vmatprep.subr.mxu0 0.0
      %968 = vmatpush1.msra.mxu0 %v912
      %969 = vmatprep.subr.mxu0 0.0
      %970 = vmatpush1.msra.mxu0 %v913
      %971 = vmatprep.subr.mxu0 0.0
      %972 = vmatpush1.msra.mxu0 %v914
      %973 = vmatprep.subr.mxu0 0.0
      %974 = vmatpush1.msra.mxu0 0.0
      %975 = vmatprep.subr.mxu0 0.0
      %976 = vmatpush1.msra.mxu0 0.0
      %977 = vmatprep.subr.mxu0 0.0
      %978 = vmatpush1.msra.mxu0 0.0
      %979 = vmatprep.subr.mxu0 0.0
      %980 = vmatpush1.msra.mxu0 0.0
      %981 = vmatprep.subr.mxu0 0.0
      %982 = vmatpush1.msra.mxu0 0.0
      %983 = vmatprep.subr.mxu0 0.0
      %984 = vmatpush1.msra.mxu0 0.0
      %985 = vmatprep.subr.mxu0 0.0
      %986 = vmatpush1.msra.mxu0 0.0
      %987 = vmatprep.subr.mxu0 0.0
      %988 = vmatpush1.msra.mxu0 0.0
      %989 = vmatprep.subr.mxu0 0.0
      %990 = vmatpush1.msra.mxu0 0.0
      %991 = vmatprep.subr.mxu0 0.0
      %992 = vmatpush1.msra.mxu0 0.0
      %993 = vmatprep.subr.mxu0 0.0
      %994 = vmatpush1.msra.mxu0 0.0
      %995 = vmatprep.subr.mxu0 0.0
      %996 = vmatpush1.msra.mxu0 0.0
      %997 = vmatprep.subr.mxu0 0.0
      %998 = vmatpush1.msra.mxu0 0.0
      %999 = vmatprep.subr.mxu0 0.0
      %1000 = vmatpush1.msra.mxu0 0.0
      %1001 = vmatprep.subr.mxu0 0.0
      %1002 = vmatpush1.msra.mxu0 0.0
      %1003 = vmatprep.subr.mxu0 0.0
      %1004 = vmatpush1.msra.mxu0 0.0
      %1005 = vmatprep.mubr.f32.mxu0 0.0
      %1006 = vmatmul.mubr.f32.gmra.mrb[0].mxu0 %v918
      %v1007 = vpop.f32.mrb[0].mxu0
      %v1008 = vadd.f32 0.0, %v1007
      %v1009 = vpop.f32.mrb[0].mxu0
      %1010 = vmatprep.mubr.f32.mxu0 0.0
      %1011 = vmatmul.mubr.f32.gmra.mrb[0].mxu0 %v920
      %v1012 = vpop.f32.mrb[0].mxu0
      %v1013 = vadd.f32 0.0, %v1012
      %v1014 = vpop.f32.mrb[0].mxu0
      %1015 = vmatprep.mubr.f32.mxu0 0.0
      %1016 = vmatmul.mubr.f32.gmra.mrb[0].mxu0 %v922
      %v1017 = vpop.f32.mrb[0].mxu0
      %v1018 = vadd.f32 0.0, %v1017
      %v1019 = vpop.f32.mrb[0].mxu0
      %1020 = vmatprep.mubr.f32.mxu0 0.0
      %1021 = vmatmul.mubr.f32.gmra.mrb[0].mxu0 %v924
      %v1022 = vpop.f32.mrb[0].mxu0
      %v1023 = vadd.f32 0.0, %v1022
      %v1024 = vpop.f32.mrb[0].mxu0
      %1025 = vmatprep.mubr.f32.mxu0 0.0
      %1026 = vmatmul.mubr.f32.gmra.mrb[0].mxu0 %v926
      %v1027 = vpop.f32.mrb[0].mxu0
      %v1028 = vadd.f32 0.0, %v1027
      %v1029 = vpop.f32.mrb[0].mxu0
      %1030 = vmatprep.mubr.f32.mxu0 0.0
      %1031 = vmatmul.mubr.f32.gmra.mrb[0].mxu0 %v928
      %v1032 = vpop.f32.mrb[0].mxu0
      %v1033 = vadd.f32 0.0, %v1032
      %v1034 = vpop.f32.mrb[0].mxu0
      %1035 = vmatprep.mubr.f32.mxu0 0.0
      %1036 = vmatmul.mubr.f32.gmra.mrb[0].mxu0 %v930
      %v1037 = vpop.f32.mrb[0].mxu0
      %v1038 = vadd.f32 0.0, %v1037
      %v1039 = vpop.f32.mrb[0].mxu0
      %1040 = vmatprep.mubr.f32.mxu0 0.0
      %1041 = vmatmul.mubr.f32.gmra.mrb[0].mxu0 %v932
      %v1042 = vpop.f32.mrb[0].mxu0
      %v1043 = vadd.f32 0.0, %v1042
      %v1044 = vpop.f32.mrb[0].mxu0
      %1045 = vdwg.mxu0
      %v1046 = vadd.f32 %v860, %v1008
      %v1047 = vadd.f32 %v865, %v1013
      %v1048 = vadd.f32 %v870, %v1018
      %v1049 = vadd.f32 %v875, %v1023
      %v1050 = vadd.f32 %v880, %v1028
      %v1051 = vadd.f32 %v885, %v1033
      %v1052 = vadd.f32 %v890, %v1038
      %v1053 = vadd.f32 %v895, %v1043
      %s1054 = scalar_lea.vmem %s4, 384
      %v1055 = vld [vmem:[%s1054] sm:$0xff]
      %v1056 = vld [vmem:[%s1054 + $0x8] sm:$0xff]
      %v1057 = vld [vmem:[%s1054 + $0x10] sm:$0xff]
      %v1058 = vld [vmem:[%s1054 + $0x18] sm:$0xff]
      %v1059 = vld [vmem:[%s1054 + $0x20] sm:$0xff]
      %v1060 = vld [vmem:[%s1054 + $0x28] sm:$0xff]
      %v1061 = vld [vmem:[%s1054 + $0x30] sm:$0xff]
      %v1062 = vld [vmem:[%s1054 + $0x38] sm:$0xff]
      %v1063 = vld [vmem:[%s1054 + $0x40] sm:$0xff]
      %v1064 = vld [vmem:[%s1054 + $0x48] sm:$0xff]
      %v1065 = vld [vmem:[%s1054 + $0x50] sm:$0xff]
      %v1066 = vld [vmem:[%s1054 + $0x58] sm:$0xff]
      %v1067 = vld [vmem:[%s1054 + $0x60] sm:$0xff]
      %v1068 = vld [vmem:[%s1054 + $0x68] sm:$0xff]
      %v1069 = vld [vmem:[%s1054 + $0x70] sm:$0xff]
      %v1070 = vld [vmem:[%s1054 + $0x78] sm:$0xff]
      %1071 = vmatprep.subr.mxu0 0.0
      %1072 = vmatpush1.msra.mxu0 %v1055
      %1073 = vmatprep.subr.mxu0 0.0
      %1074 = vmatpush1.msra.mxu0 %v1056
      %1075 = vmatprep.subr.mxu0 0.0
      %1076 = vmatpush1.msra.mxu0 %v1057
      %1077 = vmatprep.subr.mxu0 0.0
      %1078 = vmatpush1.msra.mxu0 %v1058
      %1079 = vmatprep.subr.mxu0 0.0
      %1080 = vmatpush1.msra.mxu0 %v1059
      %1081 = vmatprep.subr.mxu0 0.0
      %1082 = vmatpush1.msra.mxu0 %v1060
      %1083 = vmatprep.subr.mxu0 0.0
      %1084 = vmatpush1.msra.mxu0 %v1061
      %1085 = vmatprep.subr.mxu0 0.0
      %1086 = vmatpush1.msra.mxu0 %v1062
      %1087 = vmatprep.subr.mxu0 0.0
      %1088 = vmatpush1.msra.mxu0 %v1063
      %1089 = vmatprep.subr.mxu0 0.0
      %1090 = vmatpush1.msra.mxu0 %v1064
      %1091 = vmatprep.subr.mxu0 0.0
      %1092 = vmatpush1.msra.mxu0 %v1065
      %1093 = vmatprep.subr.mxu0 0.0
      %1094 = vmatpush1.msra.mxu0 %v1066
      %1095 = vmatprep.subr.mxu0 0.0
      %1096 = vmatpush1.msra.mxu0 %v1067
      %1097 = vmatprep.subr.mxu0 0.0
      %1098 = vmatpush1.msra.mxu0 %v1068
      %1099 = vmatprep.subr.mxu0 0.0
      %1100 = vmatpush1.msra.mxu0 %v1069
      %1101 = vmatprep.subr.mxu0 0.0
      %1102 = vmatpush1.msra.mxu0 %v1070
      %1103 = vmatprep.subr.mxu0 0.0
      %1104 = vmatpush1.msra.mxu0 0.0
      %1105 = vmatprep.subr.mxu0 0.0
      %1106 = vmatpush1.msra.mxu0 0.0
      %1107 = vmatprep.subr.mxu0 0.0
      %1108 = vmatpush1.msra.mxu0 0.0
      %1109 = vmatprep.subr.mxu0 0.0
      %1110 = vmatpush1.msra.mxu0 0.0
      %1111 = vmatprep.subr.mxu0 0.0
      %1112 = vmatpush1.msra.mxu0 0.0
      %1113 = vmatprep.subr.mxu0 0.0
      %1114 = vmatpush1.msra.mxu0 0.0
      %1115 = vmatprep.subr.mxu0 0.0
      %1116 = vmatpush1.msra.mxu0 0.0
      %1117 = vmatprep.subr.mxu0 0.0
      %1118 = vmatpush1.msra.mxu0 0.0
      %1119 = vmatprep.subr.mxu0 0.0
      %1120 = vmatpush1.msra.mxu0 0.0
      %1121 = vmatprep.subr.mxu0 0.0
      %1122 = vmatpush1.msra.mxu0 0.0
      %1123 = vmatprep.subr.mxu0 0.0
      %1124 = vmatpush1.msra.mxu0 0.0
      %1125 = vmatprep.subr.mxu0 0.0
      %1126 = vmatpush1.msra.mxu0 0.0
      %1127 = vmatprep.subr.mxu0 0.0
      %1128 = vmatpush1.msra.mxu0 0.0
      %1129 = vmatprep.subr.mxu0 0.0
      %1130 = vmatpush1.msra.mxu0 0.0
      %1131 = vmatprep.subr.mxu0 0.0
      %1132 = vmatpush1.msra.mxu0 0.0
      %1133 = vmatprep.subr.mxu0 0.0
      %1134 = vmatpush1.msra.mxu0 0.0
      %1135 = vmatprep.mubr.f32.mxu0 0.0
      %1136 = vmatmul.mubr.f32.gmra.mrb[0].mxu0 %v610
      %v1137 = vpop.f32.mrb[0].mxu0
      %v1138 = vadd.f32 0.0, %v1137
      %v1139 = vpop.f32.mrb[0].mxu0
      %1140 = vmatprep.mubr.f32.mxu0 0.0
      %1141 = vmatmul.mubr.f32.gmra.mrb[0].mxu0 %v611
      %v1142 = vpop.f32.mrb[0].mxu0
      %v1143 = vadd.f32 0.0, %v1142
      %v1144 = vpop.f32.mrb[0].mxu0
      %1145 = vmatprep.mubr.f32.mxu0 0.0
      %1146 = vmatmul.mubr.f32.gmra.mrb[0].mxu0 %v612
      %v1147 = vpop.f32.mrb[0].mxu0
      %v1148 = vadd.f32 0.0, %v1147
      %v1149 = vpop.f32.mrb[0].mxu0
      %1150 = vmatprep.mubr.f32.mxu0 0.0
      %1151 = vmatmul.mubr.f32.gmra.mrb[0].mxu0 %v613
      %v1152 = vpop.f32.mrb[0].mxu0
      %v1153 = vadd.f32 0.0, %v1152
      %v1154 = vpop.f32.mrb[0].mxu0
      %1155 = vmatprep.mubr.f32.mxu0 0.0
      %1156 = vmatmul.mubr.f32.gmra.mrb[0].mxu0 %v614
      %v1157 = vpop.f32.mrb[0].mxu0
      %v1158 = vadd.f32 0.0, %v1157
      %v1159 = vpop.f32.mrb[0].mxu0
      %1160 = vmatprep.mubr.f32.mxu0 0.0
      %1161 = vmatmul.mubr.f32.gmra.mrb[0].mxu0 %v615
      %v1162 = vpop.f32.mrb[0].mxu0
      %v1163 = vadd.f32 0.0, %v1162
      %v1164 = vpop.f32.mrb[0].mxu0
      %1165 = vmatprep.mubr.f32.mxu0 0.0
      %1166 = vmatmul.mubr.f32.gmra.mrb[0].mxu0 %v616
      %v1167 = vpop.f32.mrb[0].mxu0
      %v1168 = vadd.f32 0.0, %v1167
      %v1169 = vpop.f32.mrb[0].mxu0
      %1170 = vmatprep.mubr.f32.mxu0 0.0
      %1171 = vmatmul.mubr.f32.gmra.mrb[0].mxu0 %v617
      %v1172 = vpop.f32.mrb[0].mxu0
      %v1173 = vadd.f32 0.0, %v1172
      %v1174 = vpop.f32.mrb[0].mxu0
      %1175 = vdwg.mxu0
      %v1176 = vadd.f32 %v1046, %v1138
      %v1177 = vadd.f32 %v1047, %v1143
      %v1178 = vadd.f32 %v1048, %v1148
      %v1179 = vadd.f32 %v1049, %v1153
      %v1180 = vadd.f32 %v1050, %v1158
      %v1181 = vadd.f32 %v1051, %v1163
      %v1182 = vadd.f32 %v1052, %v1168
      %v1183 = vadd.f32 %v1053, %v1173
      %s1184 = scalar_lea.vmem %s4, 512
      %v1185 = vld [vmem:[%s1184] sm:$0xff]
      %v1186 = vld [vmem:[%s1184 + $0x8] sm:$0xff]
      %v1187 = vld [vmem:[%s1184 + $0x10] sm:$0xff]
      %v1188 = vld [vmem:[%s1184 + $0x18] sm:$0xff]
      %v1189 = vld [vmem:[%s1184 + $0x20] sm:$0xff]
      %v1190 = vld [vmem:[%s1184 + $0x28] sm:$0xff]
      %v1191 = vld [vmem:[%s1184 + $0x30] sm:$0xff]
      %v1192 = vld [vmem:[%s1184 + $0x38] sm:$0xff]
      %v1193 = vld [vmem:[%s1184 + $0x40] sm:$0xff]
      %v1194 = vld [vmem:[%s1184 + $0x48] sm:$0xff]
      %v1195 = vld [vmem:[%s1184 + $0x50] sm:$0xff]
      %v1196 = vld [vmem:[%s1184 + $0x58] sm:$0xff]
      %v1197 = vld [vmem:[%s1184 + $0x60] sm:$0xff]
      %v1198 = vld [vmem:[%s1184 + $0x68] sm:$0xff]
      %v1199 = vld [vmem:[%s1184 + $0x70] sm:$0xff]
      %v1200 = vld [vmem:[%s1184 + $0x78] sm:$0xff]
      %v1202 = vrot.slane %v618, 1
      %v1203 = vsel %vm662, %v678, %v1202
      %1205 = vmatprep.subr.mxu0 0.0
      %1206 = vmatpush1.msra.mxu0 %v1185
      %1207 = vmatprep.subr.mxu0 0.0
      %1208 = vmatpush1.msra.mxu0 %v1186
      %1209 = vmatprep.subr.mxu0 0.0
      %1210 = vmatpush1.msra.mxu0 %v1187
      %1211 = vmatprep.subr.mxu0 0.0
      %1212 = vmatpush1.msra.mxu0 %v1188
      %1213 = vmatprep.subr.mxu0 0.0
      %1214 = vmatpush1.msra.mxu0 %v1189
      %1215 = vmatprep.subr.mxu0 0.0
      %1216 = vmatpush1.msra.mxu0 %v1190
      %1217 = vmatprep.subr.mxu0 0.0
      %1218 = vmatpush1.msra.mxu0 %v1191
      %1219 = vmatprep.subr.mxu0 0.0
      %1220 = vmatpush1.msra.mxu0 %v1192
      %1221 = vmatprep.subr.mxu0 0.0
      %1222 = vmatpush1.msra.mxu0 %v1193
      %1223 = vmatprep.subr.mxu0 0.0
      %1224 = vmatpush1.msra.mxu0 %v1194
      %1225 = vmatprep.subr.mxu0 0.0
      %1226 = vmatpush1.msra.mxu0 %v1195
      %1227 = vmatprep.subr.mxu0 0.0
      %1228 = vmatpush1.msra.mxu0 %v1196
      %1229 = vmatprep.subr.mxu0 0.0
      %1230 = vmatpush1.msra.mxu0 %v1197
      %1231 = vmatprep.subr.mxu0 0.0
      %1232 = vmatpush1.msra.mxu0 %v1198
      %1233 = vmatprep.subr.mxu0 0.0
      %1234 = vmatpush1.msra.mxu0 %v1199
      %1235 = vmatprep.subr.mxu0 0.0
      %1236 = vmatpush1.msra.mxu0 %v1200
      %1237 = vmatprep.subr.mxu0 0.0
      %1238 = vmatpush1.msra.mxu0 0.0
      %1239 = vmatprep.subr.mxu0 0.0
      %1240 = vmatpush1.msra.mxu0 0.0
      %1241 = vmatprep.subr.mxu0 0.0
      %1242 = vmatpush1.msra.mxu0 0.0
      %1243 = vmatprep.subr.mxu0 0.0
      %1244 = vmatpush1.msra.mxu0 0.0
      %1245 = vmatprep.subr.mxu0 0.0
      %1246 = vmatpush1.msra.mxu0 0.0
      %1247 = vmatprep.subr.mxu0 0.0
      %1248 = vmatpush1.msra.mxu0 0.0
      %1249 = vmatprep.subr.mxu0 0.0
      %1250 = vmatpush1.msra.mxu0 0.0
      %1251 = vmatprep.subr.mxu0 0.0
      %1252 = vmatpush1.msra.mxu0 0.0
      %1253 = vmatprep.subr.mxu0 0.0
      %1254 = vmatpush1.msra.mxu0 0.0
      %1255 = vmatprep.subr.mxu0 0.0
      %1256 = vmatpush1.msra.mxu0 0.0
      %1257 = vmatprep.subr.mxu0 0.0
      %1258 = vmatpush1.msra.mxu0 0.0
      %1259 = vmatprep.subr.mxu0 0.0
      %1260 = vmatpush1.msra.mxu0 0.0
      %1261 = vmatprep.subr.mxu0 0.0
      %1262 = vmatpush1.msra.mxu0 0.0
      %1263 = vmatprep.subr.mxu0 0.0
      %1264 = vmatpush1.msra.mxu0 0.0
      %1265 = vmatprep.subr.mxu0 0.0
      %1266 = vmatpush1.msra.mxu0 0.0
      %1267 = vmatprep.subr.mxu0 0.0
      %1268 = vmatpush1.msra.mxu0 0.0
      %1269 = vmatprep.mubr.f32.mxu0 0.0
      %1270 = vmatmul.mubr.f32.gmra.mrb[0].mxu0 %v667
      %v1271 = vpop.f32.mrb[0].mxu0
      %v1272 = vadd.f32 0.0, %v1271
      %v1273 = vpop.f32.mrb[0].mxu0
      %1274 = vmatprep.mubr.f32.mxu0 0.0
      %1275 = vmatmul.mubr.f32.gmra.mrb[0].mxu0 %v669
      %v1276 = vpop.f32.mrb[0].mxu0
      %v1277 = vadd.f32 0.0, %v1276
      %v1278 = vpop.f32.mrb[0].mxu0
      %1279 = vmatprep.mubr.f32.mxu0 0.0
      %1280 = vmatmul.mubr.f32.gmra.mrb[0].mxu0 %v671
      %v1281 = vpop.f32.mrb[0].mxu0
      %v1282 = vadd.f32 0.0, %v1281
      %v1283 = vpop.f32.mrb[0].mxu0
      %1284 = vmatprep.mubr.f32.mxu0 0.0
      %1285 = vmatmul.mubr.f32.gmra.mrb[0].mxu0 %v673
      %v1286 = vpop.f32.mrb[0].mxu0
      %v1287 = vadd.f32 0.0, %v1286
      %v1288 = vpop.f32.mrb[0].mxu0
      %1289 = vmatprep.mubr.f32.mxu0 0.0
      %1290 = vmatmul.mubr.f32.gmra.mrb[0].mxu0 %v675
      %v1291 = vpop.f32.mrb[0].mxu0
      %v1292 = vadd.f32 0.0, %v1291
      %v1293 = vpop.f32.mrb[0].mxu0
      %1294 = vmatprep.mubr.f32.mxu0 0.0
      %1295 = vmatmul.mubr.f32.gmra.mrb[0].mxu0 %v677
      %v1296 = vpop.f32.mrb[0].mxu0
      %v1297 = vadd.f32 0.0, %v1296
      %v1298 = vpop.f32.mrb[0].mxu0
      %1299 = vmatprep.mubr.f32.mxu0 0.0
      %1300 = vmatmul.mubr.f32.gmra.mrb[0].mxu0 %v679
      %v1301 = vpop.f32.mrb[0].mxu0
      %v1302 = vadd.f32 0.0, %v1301
      %v1303 = vpop.f32.mrb[0].mxu0
      %1304 = vmatprep.mubr.f32.mxu0 0.0
      %1305 = vmatmul.mubr.f32.gmra.mrb[0].mxu0 %v1203
      %v1306 = vpop.f32.mrb[0].mxu0
      %v1307 = vadd.f32 0.0, %v1306
      %v1308 = vpop.f32.mrb[0].mxu0
      %1309 = vdwg.mxu0
      %v1310 = vadd.f32 %v1176, %v1272
      %v1311 = vadd.f32 %v1177, %v1277
      %v1312 = vadd.f32 %v1178, %v1282
      %v1313 = vadd.f32 %v1179, %v1287
      %v1314 = vadd.f32 %v1180, %v1292
      %v1315 = vadd.f32 %v1181, %v1297
      %v1316 = vadd.f32 %v1182, %v1302
      %v1317 = vadd.f32 %v1183, %v1307
      %s1318 = scalar_lea.vmem %s4, 640
      %v1319 = vld [vmem:[%s1318] sm:$0xff]
      %v1320 = vld [vmem:[%s1318 + $0x8] sm:$0xff]
      %v1321 = vld [vmem:[%s1318 + $0x10] sm:$0xff]
      %v1322 = vld [vmem:[%s1318 + $0x18] sm:$0xff]
      %v1323 = vld [vmem:[%s1318 + $0x20] sm:$0xff]
      %v1324 = vld [vmem:[%s1318 + $0x28] sm:$0xff]
      %v1325 = vld [vmem:[%s1318 + $0x30] sm:$0xff]
      %v1326 = vld [vmem:[%s1318 + $0x38] sm:$0xff]
      %v1327 = vld [vmem:[%s1318 + $0x40] sm:$0xff]
      %v1328 = vld [vmem:[%s1318 + $0x48] sm:$0xff]
      %v1329 = vld [vmem:[%s1318 + $0x50] sm:$0xff]
      %v1330 = vld [vmem:[%s1318 + $0x58] sm:$0xff]
      %v1331 = vld [vmem:[%s1318 + $0x60] sm:$0xff]
      %v1332 = vld [vmem:[%s1318 + $0x68] sm:$0xff]
      %v1333 = vld [vmem:[%s1318 + $0x70] sm:$0xff]
      %v1334 = vld [vmem:[%s1318 + $0x78] sm:$0xff]
      %v1335 = vrot.slane %v618, 2
      %v1336 = vsel %vm915, %v931, %v1335
      %1338 = vmatprep.subr.mxu0 0.0
      %1339 = vmatpush1.msra.mxu0 %v1319
      %1340 = vmatprep.subr.mxu0 0.0
      %1341 = vmatpush1.msra.mxu0 %v1320
      %1342 = vmatprep.subr.mxu0 0.0
      %1343 = vmatpush1.msra.mxu0 %v1321
      %1344 = vmatprep.subr.mxu0 0.0
      %1345 = vmatpush1.msra.mxu0 %v1322
      %1346 = vmatprep.subr.mxu0 0.0
      %1347 = vmatpush1.msra.mxu0 %v1323
      %1348 = vmatprep.subr.mxu0 0.0
      %1349 = vmatpush1.msra.mxu0 %v1324
      %1350 = vmatprep.subr.mxu0 0.0
      %1351 = vmatpush1.msra.mxu0 %v1325
      %1352 = vmatprep.subr.mxu0 0.0
      %1353 = vmatpush1.msra.mxu0 %v1326
      %1354 = vmatprep.subr.mxu0 0.0
      %1355 = vmatpush1.msra.mxu0 %v1327
      %1356 = vmatprep.subr.mxu0 0.0
      %1357 = vmatpush1.msra.mxu0 %v1328
      %1358 = vmatprep.subr.mxu0 0.0
      %1359 = vmatpush1.msra.mxu0 %v1329
      %1360 = vmatprep.subr.mxu0 0.0
      %1361 = vmatpush1.msra.mxu0 %v1330
      %1362 = vmatprep.subr.mxu0 0.0
      %1363 = vmatpush1.msra.mxu0 %v1331
      %1364 = vmatprep.subr.mxu0 0.0
      %1365 = vmatpush1.msra.mxu0 %v1332
      %1366 = vmatprep.subr.mxu0 0.0
      %1367 = vmatpush1.msra.mxu0 %v1333
      %1368 = vmatprep.subr.mxu0 0.0
      %1369 = vmatpush1.msra.mxu0 %v1334
      %1370 = vmatprep.subr.mxu0 0.0
      %1371 = vmatpush1.msra.mxu0 0.0
      %1372 = vmatprep.subr.mxu0 0.0
      %1373 = vmatpush1.msra.mxu0 0.0
      %1374 = vmatprep.subr.mxu0 0.0
      %1375 = vmatpush1.msra.mxu0 0.0
      %1376 = vmatprep.subr.mxu0 0.0
      %1377 = vmatpush1.msra.mxu0 0.0
      %1378 = vmatprep.subr.mxu0 0.0
      %1379 = vmatpush1.msra.mxu0 0.0
      %1380 = vmatprep.subr.mxu0 0.0
      %1381 = vmatpush1.msra.mxu0 0.0
      %1382 = vmatprep.subr.mxu0 0.0
      %1383 = vmatpush1.msra.mxu0 0.0
      %1384 = vmatprep.subr.mxu0 0.0
      %1385 = vmatpush1.msra.mxu0 0.0
      %1386 = vmatprep.subr.mxu0 0.0
      %1387 = vmatpush1.msra.mxu0 0.0
      %1388 = vmatprep.subr.mxu0 0.0
      %1389 = vmatpush1.msra.mxu0 0.0
      %1390 = vmatprep.subr.mxu0 0.0
      %1391 = vmatpush1.msra.mxu0 0.0
      %1392 = vmatprep.subr.mxu0 0.0
      %1393 = vmatpush1.msra.mxu0 0.0
      %1394 = vmatprep.subr.mxu0 0.0
      %1395 = vmatpush1.msra.mxu0 0.0
      %1396 = vmatprep.subr.mxu0 0.0
      %1397 = vmatpush1.msra.mxu0 0.0
      %1398 = vmatprep.subr.mxu0 0.0
      %1399 = vmatpush1.msra.mxu0 0.0
      %1400 = vmatprep.subr.mxu0 0.0
      %1401 = vmatpush1.msra.mxu0 0.0
      %1402 = vmatprep.mubr.f32.mxu0 0.0
      %1403 = vmatmul.mubr.f32.gmra.mrb[0].mxu0 %v920
      %v1404 = vpop.f32.mrb[0].mxu0
      %v1405 = vadd.f32 0.0, %v1404
      %v1406 = vpop.f32.mrb[0].mxu0
      %1407 = vmatprep.mubr.f32.mxu0 0.0
      %1408 = vmatmul.mubr.f32.gmra.mrb[0].mxu0 %v922
      %v1409 = vpop.f32.mrb[0].mxu0
      %v1410 = vadd.f32 0.0, %v1409
      %v1411 = vpop.f32.mrb[0].mxu0
      %1412 = vmatprep.mubr.f32.mxu0 0.0
      %1413 = vmatmul.mubr.f32.gmra.mrb[0].mxu0 %v924
      %v1414 = vpop.f32.mrb[0].mxu0
      %v1415 = vadd.f32 0.0, %v1414
      %v1416 = vpop.f32.mrb[0].mxu0
      %1417 = vmatprep.mubr.f32.mxu0 0.0
      %1418 = vmatmul.mubr.f32.gmra.mrb[0].mxu0 %v926
      %v1419 = vpop.f32.mrb[0].mxu0
      %v1420 = vadd.f32 0.0, %v1419
      %v1421 = vpop.f32.mrb[0].mxu0
      %1422 = vmatprep.mubr.f32.mxu0 0.0
      %1423 = vmatmul.mubr.f32.gmra.mrb[0].mxu0 %v928
      %v1424 = vpop.f32.mrb[0].mxu0
      %v1425 = vadd.f32 0.0, %v1424
      %v1426 = vpop.f32.mrb[0].mxu0
      %1427 = vmatprep.mubr.f32.mxu0 0.0
      %1428 = vmatmul.mubr.f32.gmra.mrb[0].mxu0 %v930
      %v1429 = vpop.f32.mrb[0].mxu0
      %v1430 = vadd.f32 0.0, %v1429
      %v1431 = vpop.f32.mrb[0].mxu0
      %1432 = vmatprep.mubr.f32.mxu0 0.0
      %1433 = vmatmul.mubr.f32.gmra.mrb[0].mxu0 %v932
      %v1434 = vpop.f32.mrb[0].mxu0
      %v1435 = vadd.f32 0.0, %v1434
      %v1436 = vpop.f32.mrb[0].mxu0
      %1437 = vmatprep.mubr.f32.mxu0 0.0
      %1438 = vmatmul.mubr.f32.gmra.mrb[0].mxu0 %v1336
      %v1439 = vpop.f32.mrb[0].mxu0
      %v1440 = vadd.f32 0.0, %v1439
      %v1441 = vpop.f32.mrb[0].mxu0
      %1442 = vdwg.mxu0
      %v1443 = vadd.f32 %v1310, %v1405
      %v1444 = vadd.f32 %v1311, %v1410
      %v1445 = vadd.f32 %v1312, %v1415
      %v1446 = vadd.f32 %v1313, %v1420
      %v1447 = vadd.f32 %v1314, %v1425
      %v1448 = vadd.f32 %v1315, %v1430
      %v1449 = vadd.f32 %v1316, %v1435
      %v1450 = vadd.f32 %v1317, %v1440
      %s1451 = scalar_lea.vmem %s4, 768
      %v1452 = vld [vmem:[%s1451] sm:$0xff]
      %v1453 = vld [vmem:[%s1451 + $0x8] sm:$0xff]
      %v1454 = vld [vmem:[%s1451 + $0x10] sm:$0xff]
      %v1455 = vld [vmem:[%s1451 + $0x18] sm:$0xff]
      %v1456 = vld [vmem:[%s1451 + $0x20] sm:$0xff]
      %v1457 = vld [vmem:[%s1451 + $0x28] sm:$0xff]
      %v1458 = vld [vmem:[%s1451 + $0x30] sm:$0xff]
      %v1459 = vld [vmem:[%s1451 + $0x38] sm:$0xff]
      %v1460 = vld [vmem:[%s1451 + $0x40] sm:$0xff]
      %v1461 = vld [vmem:[%s1451 + $0x48] sm:$0xff]
      %v1462 = vld [vmem:[%s1451 + $0x50] sm:$0xff]
      %v1463 = vld [vmem:[%s1451 + $0x58] sm:$0xff]
      %v1464 = vld [vmem:[%s1451 + $0x60] sm:$0xff]
      %v1465 = vld [vmem:[%s1451 + $0x68] sm:$0xff]
      %v1466 = vld [vmem:[%s1451 + $0x70] sm:$0xff]
      %v1467 = vld [vmem:[%s1451 + $0x78] sm:$0xff]
      %1468 = vmatprep.subr.mxu0 0.0
      %1469 = vmatpush1.msra.mxu0 %v1452
      %1470 = vmatprep.subr.mxu0 0.0
      %1471 = vmatpush1.msra.mxu0 %v1453
      %1472 = vmatprep.subr.mxu0 0.0
      %1473 = vmatpush1.msra.mxu0 %v1454
      %1474 = vmatprep.subr.mxu0 0.0
      %1475 = vmatpush1.msra.mxu0 %v1455
      %1476 = vmatprep.subr.mxu0 0.0
      %1477 = vmatpush1.msra.mxu0 %v1456
      %1478 = vmatprep.subr.mxu0 0.0
      %1479 = vmatpush1.msra.mxu0 %v1457
      %1480 = vmatprep.subr.mxu0 0.0
      %1481 = vmatpush1.msra.mxu0 %v1458
      %1482 = vmatprep.subr.mxu0 0.0
      %1483 = vmatpush1.msra.mxu0 %v1459
      %1484 = vmatprep.subr.mxu0 0.0
      %1485 = vmatpush1.msra.mxu0 %v1460
      %1486 = vmatprep.subr.mxu0 0.0
      %1487 = vmatpush1.msra.mxu0 %v1461
      %1488 = vmatprep.subr.mxu0 0.0
      %1489 = vmatpush1.msra.mxu0 %v1462
      %1490 = vmatprep.subr.mxu0 0.0
      %1491 = vmatpush1.msra.mxu0 %v1463
      %1492 = vmatprep.subr.mxu0 0.0
      %1493 = vmatpush1.msra.mxu0 %v1464
      %1494 = vmatprep.subr.mxu0 0.0
      %1495 = vmatpush1.msra.mxu0 %v1465
      %1496 = vmatprep.subr.mxu0 0.0
      %1497 = vmatpush1.msra.mxu0 %v1466
      %1498 = vmatprep.subr.mxu0 0.0
      %1499 = vmatpush1.msra.mxu0 %v1467
      %1500 = vmatprep.subr.mxu0 0.0
      %1501 = vmatpush1.msra.mxu0 0.0
      %1502 = vmatprep.subr.mxu0 0.0
      %1503 = vmatpush1.msra.mxu0 0.0
      %1504 = vmatprep.subr.mxu0 0.0
      %1505 = vmatpush1.msra.mxu0 0.0
      %1506 = vmatprep.subr.mxu0 0.0
      %1507 = vmatpush1.msra.mxu0 0.0
      %1508 = vmatprep.subr.mxu0 0.0
      %1509 = vmatpush1.msra.mxu0 0.0
      %1510 = vmatprep.subr.mxu0 0.0
      %1511 = vmatpush1.msra.mxu0 0.0
      %1512 = vmatprep.subr.mxu0 0.0
      %1513 = vmatpush1.msra.mxu0 0.0
      %1514 = vmatprep.subr.mxu0 0.0
      %1515 = vmatpush1.msra.mxu0 0.0
      %1516 = vmatprep.subr.mxu0 0.0
      %1517 = vmatpush1.msra.mxu0 0.0
      %1518 = vmatprep.subr.mxu0 0.0
      %1519 = vmatpush1.msra.mxu0 0.0
      %1520 = vmatprep.subr.mxu0 0.0
      %1521 = vmatpush1.msra.mxu0 0.0
      %1522 = vmatprep.subr.mxu0 0.0
      %1523 = vmatpush1.msra.mxu0 0.0
      %1524 = vmatprep.subr.mxu0 0.0
      %1525 = vmatpush1.msra.mxu0 0.0
      %1526 = vmatprep.subr.mxu0 0.0
      %1527 = vmatpush1.msra.mxu0 0.0
      %1528 = vmatprep.subr.mxu0 0.0
      %1529 = vmatpush1.msra.mxu0 0.0
      %1530 = vmatprep.subr.mxu0 0.0
      %1531 = vmatpush1.msra.mxu0 0.0
      %1532 = vmatprep.mubr.f32.mxu0 0.0
      %1533 = vmatmul.mubr.f32.gmra.mrb[0].mxu0 %v611
      %v1534 = vpop.f32.mrb[0].mxu0
      %v1535 = vadd.f32 0.0, %v1534
      %v1536 = vpop.f32.mrb[0].mxu0
      %1537 = vmatprep.mubr.f32.mxu0 0.0
      %1538 = vmatmul.mubr.f32.gmra.mrb[0].mxu0 %v612
      %v1539 = vpop.f32.mrb[0].mxu0
      %v1540 = vadd.f32 0.0, %v1539
      %v1541 = vpop.f32.mrb[0].mxu0
      %1542 = vmatprep.mubr.f32.mxu0 0.0
      %1543 = vmatmul.mubr.f32.gmra.mrb[0].mxu0 %v613
      %v1544 = vpop.f32.mrb[0].mxu0
      %v1545 = vadd.f32 0.0, %v1544
      %v1546 = vpop.f32.mrb[0].mxu0
      %1547 = vmatprep.mubr.f32.mxu0 0.0
      %1548 = vmatmul.mubr.f32.gmra.mrb[0].mxu0 %v614
      %v1549 = vpop.f32.mrb[0].mxu0
      %v1550 = vadd.f32 0.0, %v1549
      %v1551 = vpop.f32.mrb[0].mxu0
      %1552 = vmatprep.mubr.f32.mxu0 0.0
      %1553 = vmatmul.mubr.f32.gmra.mrb[0].mxu0 %v615
      %v1554 = vpop.f32.mrb[0].mxu0
      %v1555 = vadd.f32 0.0, %v1554
      %v1556 = vpop.f32.mrb[0].mxu0
      %1557 = vmatprep.mubr.f32.mxu0 0.0
      %1558 = vmatmul.mubr.f32.gmra.mrb[0].mxu0 %v616
      %v1559 = vpop.f32.mrb[0].mxu0
      %v1560 = vadd.f32 0.0, %v1559
      %v1561 = vpop.f32.mrb[0].mxu0
      %1562 = vmatprep.mubr.f32.mxu0 0.0
      %1563 = vmatmul.mubr.f32.gmra.mrb[0].mxu0 %v617
      %v1564 = vpop.f32.mrb[0].mxu0
      %v1565 = vadd.f32 0.0, %v1564
      %v1566 = vpop.f32.mrb[0].mxu0
      %1567 = vmatprep.mubr.f32.mxu0 0.0
      %1568 = vmatmul.mubr.f32.gmra.mrb[0].mxu0 %v618
      %v1569 = vpop.f32.mrb[0].mxu0
      %v1570 = vadd.f32 0.0, %v1569
      %v1571 = vpop.f32.mrb[0].mxu0
      %1572 = vdwg.mxu0
      %v1573 = vadd.f32 %v1443, %v1535
      %v1574 = vadd.f32 %v1444, %v1540
      %v1575 = vadd.f32 %v1445, %v1545
      %v1576 = vadd.f32 %v1446, %v1550
      %v1577 = vadd.f32 %v1447, %v1555
      %v1578 = vadd.f32 %v1448, %v1560
      %v1579 = vadd.f32 %v1449, %v1565
      %v1580 = vadd.f32 %v1450, %v1570
      %s1581 = scalar_lea.vmem %s4, 896
      %v1582 = vld [vmem:[%s1581] sm:$0xff]
      %v1583 = vld [vmem:[%s1581 + $0x8] sm:$0xff]
      %v1584 = vld [vmem:[%s1581 + $0x10] sm:$0xff]
      %v1585 = vld [vmem:[%s1581 + $0x18] sm:$0xff]
      %v1586 = vld [vmem:[%s1581 + $0x20] sm:$0xff]
      %v1587 = vld [vmem:[%s1581 + $0x28] sm:$0xff]
      %v1588 = vld [vmem:[%s1581 + $0x30] sm:$0xff]
      %v1589 = vld [vmem:[%s1581 + $0x38] sm:$0xff]
      %v1590 = vld [vmem:[%s1581 + $0x40] sm:$0xff]
      %v1591 = vld [vmem:[%s1581 + $0x48] sm:$0xff]
      %v1592 = vld [vmem:[%s1581 + $0x50] sm:$0xff]
      %v1593 = vld [vmem:[%s1581 + $0x58] sm:$0xff]
      %v1594 = vld [vmem:[%s1581 + $0x60] sm:$0xff]
      %v1595 = vld [vmem:[%s1581 + $0x68] sm:$0xff]
      %v1596 = vld [vmem:[%s1581 + $0x70] sm:$0xff]
      %v1597 = vld [vmem:[%s1581 + $0x78] sm:$0xff]
      %v1599 = vrot.slane %v619, 1
      %v1600 = vsel %vm662, %v1202, %v1599
      %1602 = vmatprep.subr.mxu0 0.0
      %1603 = vmatpush1.msra.mxu0 %v1582
      %1604 = vmatprep.subr.mxu0 0.0
      %1605 = vmatpush1.msra.mxu0 %v1583
      %1606 = vmatprep.subr.mxu0 0.0
      %1607 = vmatpush1.msra.mxu0 %v1584
      %1608 = vmatprep.subr.mxu0 0.0
      %1609 = vmatpush1.msra.mxu0 %v1585
      %1610 = vmatprep.subr.mxu0 0.0
      %1611 = vmatpush1.msra.mxu0 %v1586
      %1612 = vmatprep.subr.mxu0 0.0
      %1613 = vmatpush1.msra.mxu0 %v1587
      %1614 = vmatprep.subr.mxu0 0.0
      %1615 = vmatpush1.msra.mxu0 %v1588
      %1616 = vmatprep.subr.mxu0 0.0
      %1617 = vmatpush1.msra.mxu0 %v1589
      %1618 = vmatprep.subr.mxu0 0.0
      %1619 = vmatpush1.msra.mxu0 %v1590
      %1620 = vmatprep.subr.mxu0 0.0
      %1621 = vmatpush1.msra.mxu0 %v1591
      %1622 = vmatprep.subr.mxu0 0.0
      %1623 = vmatpush1.msra.mxu0 %v1592
      %1624 = vmatprep.subr.mxu0 0.0
      %1625 = vmatpush1.msra.mxu0 %v1593
      %1626 = vmatprep.subr.mxu0 0.0
      %1627 = vmatpush1.msra.mxu0 %v1594
      %1628 = vmatprep.subr.mxu0 0.0
      %1629 = vmatpush1.msra.mxu0 %v1595
      %1630 = vmatprep.subr.mxu0 0.0
      %1631 = vmatpush1.msra.mxu0 %v1596
      %1632 = vmatprep.subr.mxu0 0.0
      %1633 = vmatpush1.msra.mxu0 %v1597
      %1634 = vmatprep.subr.mxu0 0.0
      %1635 = vmatpush1.msra.mxu0 0.0
      %1636 = vmatprep.subr.mxu0 0.0
      %1637 = vmatpush1.msra.mxu0 0.0
      %1638 = vmatprep.subr.mxu0 0.0
      %1639 = vmatpush1.msra.mxu0 0.0
      %1640 = vmatprep.subr.mxu0 0.0
      %1641 = vmatpush1.msra.mxu0 0.0
      %1642 = vmatprep.subr.mxu0 0.0
      %1643 = vmatpush1.msra.mxu0 0.0
      %1644 = vmatprep.subr.mxu0 0.0
      %1645 = vmatpush1.msra.mxu0 0.0
      %1646 = vmatprep.subr.mxu0 0.0
      %1647 = vmatpush1.msra.mxu0 0.0
      %1648 = vmatprep.subr.mxu0 0.0
      %1649 = vmatpush1.msra.mxu0 0.0
      %1650 = vmatprep.subr.mxu0 0.0
      %1651 = vmatpush1.msra.mxu0 0.0
      %1652 = vmatprep.subr.mxu0 0.0
      %1653 = vmatpush1.msra.mxu0 0.0
      %1654 = vmatprep.subr.mxu0 0.0
      %1655 = vmatpush1.msra.mxu0 0.0
      %1656 = vmatprep.subr.mxu0 0.0
      %1657 = vmatpush1.msra.mxu0 0.0
      %1658 = vmatprep.subr.mxu0 0.0
      %1659 = vmatpush1.msra.mxu0 0.0
      %1660 = vmatprep.subr.mxu0 0.0
      %1661 = vmatpush1.msra.mxu0 0.0
      %1662 = vmatprep.subr.mxu0 0.0
      %1663 = vmatpush1.msra.mxu0 0.0
      %1664 = vmatprep.subr.mxu0 0.0
      %1665 = vmatpush1.msra.mxu0 0.0
      %1666 = vmatprep.mubr.f32.mxu0 0.0
      %1667 = vmatmul.mubr.f32.gmra.mrb[0].mxu0 %v669
      %v1668 = vpop.f32.mrb[0].mxu0
      %v1669 = vadd.f32 0.0, %v1668
      %v1670 = vpop.f32.mrb[0].mxu0
      %1671 = vmatprep.mubr.f32.mxu0 0.0
      %1672 = vmatmul.mubr.f32.gmra.mrb[0].mxu0 %v671
      %v1673 = vpop.f32.mrb[0].mxu0
      %v1674 = vadd.f32 0.0, %v1673
      %v1675 = vpop.f32.mrb[0].mxu0
      %1676 = vmatprep.mubr.f32.mxu0 0.0
      %1677 = vmatmul.mubr.f32.gmra.mrb[0].mxu0 %v673
      %v1678 = vpop.f32.mrb[0].mxu0
      %v1679 = vadd.f32 0.0, %v1678
      %v1680 = vpop.f32.mrb[0].mxu0
      %1681 = vmatprep.mubr.f32.mxu0 0.0
      %1682 = vmatmul.mubr.f32.gmra.mrb[0].mxu0 %v675
      %v1683 = vpop.f32.mrb[0].mxu0
      %v1684 = vadd.f32 0.0, %v1683
      %v1685 = vpop.f32.mrb[0].mxu0
      %1686 = vmatprep.mubr.f32.mxu0 0.0
      %1687 = vmatmul.mubr.f32.gmra.mrb[0].mxu0 %v677
      %v1688 = vpop.f32.mrb[0].mxu0
      %v1689 = vadd.f32 0.0, %v1688
      %v1690 = vpop.f32.mrb[0].mxu0
      %1691 = vmatprep.mubr.f32.mxu0 0.0
      %1692 = vmatmul.mubr.f32.gmra.mrb[0].mxu0 %v679
      %v1693 = vpop.f32.mrb[0].mxu0
      %v1694 = vadd.f32 0.0, %v1693
      %v1695 = vpop.f32.mrb[0].mxu0
      %1696 = vmatprep.mubr.f32.mxu0 0.0
      %1697 = vmatmul.mubr.f32.gmra.mrb[0].mxu0 %v1203
      %v1698 = vpop.f32.mrb[0].mxu0
      %v1699 = vadd.f32 0.0, %v1698
      %v1700 = vpop.f32.mrb[0].mxu0
      %1701 = vmatprep.mubr.f32.mxu0 0.0
      %1702 = vmatmul.mubr.f32.gmra.mrb[0].mxu0 %v1600
      %v1703 = vpop.f32.mrb[0].mxu0
      %v1704 = vadd.f32 0.0, %v1703
      %v1705 = vpop.f32.mrb[0].mxu0
      %1706 = vdwg.mxu0
      %v1707 = vadd.f32 %v1573, %v1669
      %v1708 = vadd.f32 %v1574, %v1674
      %v1709 = vadd.f32 %v1575, %v1679
      %v1710 = vadd.f32 %v1576, %v1684
      %v1711 = vadd.f32 %v1577, %v1689
      %v1712 = vadd.f32 %v1578, %v1694
      %v1713 = vadd.f32 %v1579, %v1699
      %v1714 = vadd.f32 %v1580, %v1704
      %s1715 = scalar_lea.vmem %s4, 1024
      %v1716 = vld [vmem:[%s1715] sm:$0xff]
      %v1717 = vld [vmem:[%s1715 + $0x8] sm:$0xff]
      %v1718 = vld [vmem:[%s1715 + $0x10] sm:$0xff]
      %v1719 = vld [vmem:[%s1715 + $0x18] sm:$0xff]
      %v1720 = vld [vmem:[%s1715 + $0x20] sm:$0xff]
      %v1721 = vld [vmem:[%s1715 + $0x28] sm:$0xff]
      %v1722 = vld [vmem:[%s1715 + $0x30] sm:$0xff]
      %v1723 = vld [vmem:[%s1715 + $0x38] sm:$0xff]
      %v1724 = vld [vmem:[%s1715 + $0x40] sm:$0xff]
      %v1725 = vld [vmem:[%s1715 + $0x48] sm:$0xff]
      %v1726 = vld [vmem:[%s1715 + $0x50] sm:$0xff]
      %v1727 = vld [vmem:[%s1715 + $0x58] sm:$0xff]
      %v1728 = vld [vmem:[%s1715 + $0x60] sm:$0xff]
      %v1729 = vld [vmem:[%s1715 + $0x68] sm:$0xff]
      %v1730 = vld [vmem:[%s1715 + $0x70] sm:$0xff]
      %v1731 = vld [vmem:[%s1715 + $0x78] sm:$0xff]
      %v1732 = vrot.slane %v619, 2
      %v1733 = vsel %vm915, %v1335, %v1732
      %1735 = vmatprep.subr.mxu0 0.0
      %1736 = vmatpush1.msra.mxu0 %v1716
      %1737 = vmatprep.subr.mxu0 0.0
      %1738 = vmatpush1.msra.mxu0 %v1717
      %1739 = vmatprep.subr.mxu0 0.0
      %1740 = vmatpush1.msra.mxu0 %v1718
      %1741 = vmatprep.subr.mxu0 0.0
      %1742 = vmatpush1.msra.mxu0 %v1719
      %1743 = vmatprep.subr.mxu0 0.0
      %1744 = vmatpush1.msra.mxu0 %v1720
      %1745 = vmatprep.subr.mxu0 0.0
      %1746 = vmatpush1.msra.mxu0 %v1721
      %1747 = vmatprep.subr.mxu0 0.0
      %1748 = vmatpush1.msra.mxu0 %v1722
      %1749 = vmatprep.subr.mxu0 0.0
      %1750 = vmatpush1.msra.mxu0 %v1723
      %1751 = vmatprep.subr.mxu0 0.0
      %1752 = vmatpush1.msra.mxu0 %v1724
      %1753 = vmatprep.subr.mxu0 0.0
      %1754 = vmatpush1.msra.mxu0 %v1725
      %1755 = vmatprep.subr.mxu0 0.0
      %1756 = vmatpush1.msra.mxu0 %v1726
      %1757 = vmatprep.subr.mxu0 0.0
      %1758 = vmatpush1.msra.mxu0 %v1727
      %1759 = vmatprep.subr.mxu0 0.0
      %1760 = vmatpush1.msra.mxu0 %v1728
      %1761 = vmatprep.subr.mxu0 0.0
      %1762 = vmatpush1.msra.mxu0 %v1729
      %1763 = vmatprep.subr.mxu0 0.0
      %1764 = vmatpush1.msra.mxu0 %v1730
      %1765 = vmatprep.subr.mxu0 0.0
      %1766 = vmatpush1.msra.mxu0 %v1731
      %1767 = vmatprep.subr.mxu0 0.0
      %1768 = vmatpush1.msra.mxu0 0.0
      %1769 = vmatprep.subr.mxu0 0.0
      %1770 = vmatpush1.msra.mxu0 0.0
      %1771 = vmatprep.subr.mxu0 0.0
      %1772 = vmatpush1.msra.mxu0 0.0
      %1773 = vmatprep.subr.mxu0 0.0
      %1774 = vmatpush1.msra.mxu0 0.0
      %1775 = vmatprep.subr.mxu0 0.0
      %1776 = vmatpush1.msra.mxu0 0.0
      %1777 = vmatprep.subr.mxu0 0.0
      %1778 = vmatpush1.msra.mxu0 0.0
      %1779 = vmatprep.subr.mxu0 0.0
      %1780 = vmatpush1.msra.mxu0 0.0
      %1781 = vmatprep.subr.mxu0 0.0
      %1782 = vmatpush1.msra.mxu0 0.0
      %1783 = vmatprep.subr.mxu0 0.0
      %1784 = vmatpush1.msra.mxu0 0.0
      %1785 = vmatprep.subr.mxu0 0.0
      %1786 = vmatpush1.msra.mxu0 0.0
      %1787 = vmatprep.subr.mxu0 0.0
      %1788 = vmatpush1.msra.mxu0 0.0
      %1789 = vmatprep.subr.mxu0 0.0
      %1790 = vmatpush1.msra.mxu0 0.0
      %1791 = vmatprep.subr.mxu0 0.0
      %1792 = vmatpush1.msra.mxu0 0.0
      %1793 = vmatprep.subr.mxu0 0.0
      %1794 = vmatpush1.msra.mxu0 0.0
      %1795 = vmatprep.subr.mxu0 0.0
      %1796 = vmatpush1.msra.mxu0 0.0
      %1797 = vmatprep.subr.mxu0 0.0
      %1798 = vmatpush1.msra.mxu0 0.0
      %1799 = vmatprep.mubr.f32.mxu0 0.0
      %1800 = vmatmul.mubr.f32.gmra.mrb[0].mxu0 %v922
      %v1801 = vpop.f32.mrb[0].mxu0
      %v1802 = vadd.f32 0.0, %v1801
      %v1803 = vpop.f32.mrb[0].mxu0
      %1804 = vmatprep.mubr.f32.mxu0 0.0
      %1805 = vmatmul.mubr.f32.gmra.mrb[0].mxu0 %v924
      %v1806 = vpop.f32.mrb[0].mxu0
      %v1807 = vadd.f32 0.0, %v1806
      %v1808 = vpop.f32.mrb[0].mxu0
      %1809 = vmatprep.mubr.f32.mxu0 0.0
      %1810 = vmatmul.mubr.f32.gmra.mrb[0].mxu0 %v926
      %v1811 = vpop.f32.mrb[0].mxu0
      %v1812 = vadd.f32 0.0, %v1811
      %v1813 = vpop.f32.mrb[0].mxu0
      %1814 = vmatprep.mubr.f32.mxu0 0.0
      %1815 = vmatmul.mubr.f32.gmra.mrb[0].mxu0 %v928
      %v1816 = vpop.f32.mrb[0].mxu0
      %v1817 = vadd.f32 0.0, %v1816
      %v1818 = vpop.f32.mrb[0].mxu0
      %1819 = vmatprep.mubr.f32.mxu0 0.0
      %1820 = vmatmul.mubr.f32.gmra.mrb[0].mxu0 %v930
      %v1821 = vpop.f32.mrb[0].mxu0
      %v1822 = vadd.f32 0.0, %v1821
      %v1823 = vpop.f32.mrb[0].mxu0
      %1824 = vmatprep.mubr.f32.mxu0 0.0
      %1825 = vmatmul.mubr.f32.gmra.mrb[0].mxu0 %v932
      %v1826 = vpop.f32.mrb[0].mxu0
      %v1827 = vadd.f32 0.0, %v1826
      %v1828 = vpop.f32.mrb[0].mxu0
      %1829 = vmatprep.mubr.f32.mxu0 0.0
      %1830 = vmatmul.mubr.f32.gmra.mrb[0].mxu0 %v1336
      %v1831 = vpop.f32.mrb[0].mxu0
      %v1832 = vadd.f32 0.0, %v1831
      %v1833 = vpop.f32.mrb[0].mxu0
      %1834 = vmatprep.mubr.f32.mxu0 0.0
      %1835 = vmatmul.mubr.f32.gmra.mrb[0].mxu0 %v1733
      %v1836 = vpop.f32.mrb[0].mxu0
      %v1837 = vadd.f32 0.0, %v1836
      %v1838 = vpop.f32.mrb[0].mxu0
      %1839 = vdwg.mxu0
      %v1840 = vadd.f32 %v1707, %v1802
      %v1841 = vadd.f32 %v1708, %v1807
      %v1842 = vadd.f32 %v1709, %v1812
      %v1843 = vadd.f32 %v1710, %v1817
      %v1844 = vadd.f32 %v1711, %v1822
      %v1845 = vadd.f32 %v1712, %v1827
      %v1846 = vadd.f32 %v1713, %v1832
      %v1847 = vadd.f32 %v1714, %v1837
      %1848 = vst [vmem:[%s553] sm:$0xff] %v1840
      %1849 = vst [vmem:[%s553 + $0x8] sm:$0xff] %v1841
      %1850 = vst [vmem:[%s553 + $0x10] sm:$0xff] %v1842
      %1851 = vst [vmem:[%s553 + $0x18] sm:$0xff] %v1843
      %1852 = vst [vmem:[%s553 + $0x20] sm:$0xff] %v1844
      %1853 = vst [vmem:[%s553 + $0x28] sm:$0xff] %v1845
      %1854 = vst [vmem:[%s553 + $0x30] sm:$0xff] %v1846
      %1855 = vst [vmem:[%s553 + $0x38] sm:$0xff] %v1847
      %v1856 = vld [vmem:[%s543] sm:$0xff]
      %v1857 = vld [vmem:[%s543 + $0x8] sm:$0xff]
      %v1858 = vld [vmem:[%s543 + $0x10] sm:$0xff]
      %v1859 = vld [vmem:[%s543 + $0x18] sm:$0xff]
      %v1860 = vld [vmem:[%s543 + $0x20] sm:$0xff]
      %v1861 = vld [vmem:[%s543 + $0x28] sm:$0xff]
      %v1862 = vld [vmem:[%s543 + $0x30] sm:$0xff]
      %v1863 = vld [vmem:[%s543 + $0x38] sm:$0xff]
      %1865 = vset.pattern.permute.xlu0 0
      %1866 = vperm.xlu0 %1865, %v1856
      %v1867 = vpop.permute.xlu0 %1866
      %1870 = vset.pattern.permute.xlu0 0
      %1871 = vperm.xlu0 %1870, %v1857
      %v1872 = vpop.permute.xlu0 %1871
      %1875 = vset.pattern.permute.xlu0 0
      %1876 = vperm.xlu0 %1875, %v1858
      %v1877 = vpop.permute.xlu0 %1876
      %1880 = vset.pattern.permute.xlu0 0
      %1881 = vperm.xlu0 %1880, %v1859
      %v1882 = vpop.permute.xlu0 %1881
      %1885 = vset.pattern.permute.xlu0 0
      %1886 = vperm.xlu0 %1885, %v1860
      %v1887 = vpop.permute.xlu0 %1886
      %1890 = vset.pattern.permute.xlu0 0
      %1891 = vperm.xlu0 %1890, %v1861
      %v1892 = vpop.permute.xlu0 %1891
      %1895 = vset.pattern.permute.xlu0 0
      %1896 = vperm.xlu0 %1895, %v1862
      %v1897 = vpop.permute.xlu0 %1896
      %1900 = vset.pattern.permute.xlu0 0
      %1901 = vperm.xlu0 %1900, %v1863
      %v1902 = vpop.permute.xlu0 %1901
      %v1904 = vmul.f32 %v1840, %v1867
      %v1905 = vmul.f32 %v1841, %v1872
      %v1906 = vmul.f32 %v1842, %v1877
      %v1907 = vmul.f32 %v1843, %v1882
      %v1908 = vmul.f32 %v1844, %v1887
      %v1909 = vmul.f32 %v1845, %v1892
      %v1910 = vmul.f32 %v1846, %v1897
      %v1911 = vmul.f32 %v1847, %v1902
      %v1912 = vadd.f32 %v1904, %v1905
      %v1913 = vadd.f32 %v1912, %v1906
      %v1914 = vadd.f32 %v1913, %v1907
      %v1915 = vadd.f32 %v1914, %v1908
      %v1916 = vadd.f32 %v1915, %v1909
      %v1917 = vadd.f32 %v1916, %v1910
      %v1918 = vadd.f32 %v1917, %v1911
      %v1919 = vrot.slane %v1918, 4
      %v1920 = vadd.f32 %v1918, %v1919
      %v1921 = vrot.slane %v1920, 2
      %v1922 = vadd.f32 %v1920, %v1921
      %v1923 = vrot.slane %v1922, 1
      %v1924 = vadd.f32 %v1922, %v1923
      %v1925 = vmul.f32 %v1904, %v1904
      %v1926 = vmul.f32 %v1905, %v1905
      %v1927 = vmul.f32 %v1906, %v1906
      %v1928 = vmul.f32 %v1907, %v1907
      %v1929 = vmul.f32 %v1908, %v1908
      %v1930 = vmul.f32 %v1909, %v1909
      %v1931 = vmul.f32 %v1910, %v1910
      %v1932 = vmul.f32 %v1911, %v1911
      %v1933 = vadd.f32 %v1925, %v1926
      %v1934 = vadd.f32 %v1933, %v1927
      %v1935 = vadd.f32 %v1934, %v1928
      %v1936 = vadd.f32 %v1935, %v1929
      %v1937 = vadd.f32 %v1936, %v1930
      %v1938 = vadd.f32 %v1937, %v1931
      %v1939 = vadd.f32 %v1938, %v1932
      %v1940 = vrot.slane %v1939, 4
      %v1941 = vadd.f32 %v1939, %v1940
      %v1942 = vrot.slane %v1941, 2
      %v1943 = vadd.f32 %v1941, %v1942
      %v1944 = vrot.slane %v1943, 1
      %v1945 = vadd.f32 %v1943, %v1944
      %vm1946 = vcmask 1040384
      %v1947 = vsel %vm1946, %v1924, %v1945
      %1948 = vst [vmem:[%s561] sm:$0x3] %v1947
      %s1949 = smul.u32 8, %s26
      %p1950 = scmp.lt.s32.totalorder %s25, 1
      %s1951 = scalar_select %p1950, %s25, 1
      %p1952 = scmp.lt.s32.totalorder %s1949, 7
      %s1953 = scalar_select %p1952, %s1949, 7
      %s1954 = smul.addr %s1951, 8
      %s1955 = sadd.s32 %s1953, %s1954
      %s1956 = smul.addr %s1955, 8
      %s1957 = scalar_lea.vmem %s8, %s1956
      %p1958 = scmp.lt.s32.totalorder %s25, 1
      %s1959 = scalar_select %p1958, %s25, 1
      %p1960 = scmp.lt.s32.totalorder %s26, 0
      %s1961 = scalar_select %p1960, %s26, 0
      %s1962 = sadd.s32 %s1961, %s1959
      %s1963 = smul.addr %s1962, 2
      %s1964 = scalar_lea.vmem %s9, %s1963
      // Predicated region
      $region53: #{compress_forward.4} parent=51 // pred_check
        %p1965 = pneg %p270
      $region54: #{compress_forward.4} parent=51 // pred_check_branch
        %1967 = sbr.rel (%p1965) target = $region56
      $region55: #{compress_forward.4} parent=51 // pred_region
        %s1968 = smul.u32 8, %s26
      $region56: #{compress_forward.4} parent=51 // pred_fallthru
        _
      // Predicated region
      $region57: #{compress_forward.4} parent=51 // pred_check
        %p1969 = pneg %p298
      $region58: #{compress_forward.4} parent=51 // pred_check_branch
        %1971 = sbr.rel (%p1969) target = $region60
      $region59: #{compress_forward.4} parent=51 // pred_region
        _
      $region60: #{compress_forward.4} parent=51 // pred_fallthru
        _
    $region52: #{compress_forward.4} parent=5 // pred_fallthru
      _
    %p1972 = scmp.le.s32.totalorder 2, %s16
    // Predicated region
    $region61: #{compress_forward.4} parent=5 // pred_check
      %p1973 = pneg %p1972
    $region62: #{compress_forward.4} parent=5 // pred_check_branch
      %1975 = sbr.rel (%p1973) target = $region64
    $region63: #{compress_forward.4} parent=5 // pred_region
      %s1976 = ssub.s32 %s16, 2
      // Predicated region
      $region65: #{compress_forward.4} parent=63 // pred_check
        %p1977 = pneg %p276
      $region66: #{compress_forward.4} parent=63 // pred_check_branch
        %1979 = sbr.rel (%p1977) target = $region68
      $region67: #{compress_forward.4} parent=63 // pred_region
        %s1980 = smul.u32 8, %s28
        %p1981 = scmp.lt.s32.totalorder %s27, 1
        %s1982 = scalar_select %p1981, %s27, 1
        %p1983 = scmp.lt.s32.totalorder %s1980, 7
        %s1984 = scalar_select %p1983, %s1980, 7
        %s1985 = smul.addr %s1982, 8
        %s1986 = sadd.s32 %s1984, %s1985
        %s1987 = smul.addr %s1986, 8
        %s1988 = scalar_lea.vmem %s8, %s1987
      $region68: #{compress_forward.4} parent=63 // pred_fallthru
        _
      // Predicated region
      $region69: #{compress_forward.4} parent=63 // pred_check
        %p1989 = pneg %p304
      $region70: #{compress_forward.4} parent=63 // pred_check_branch
        %1991 = sbr.rel (%p1989) target = $region72
      $region71: #{compress_forward.4} parent=63 // pred_region
        %p1992 = scmp.lt.s32.totalorder %s27, 1
        %s1993 = scalar_select %p1992, %s27, 1
        %p1994 = scmp.lt.s32.totalorder %s28, 0
        %s1995 = scalar_select %p1994, %s28, 0
        %s1996 = sadd.s32 %s1995, %s1993
        %s1997 = smul.addr %s1996, 2
        %s1998 = scalar_lea.vmem %s9, %s1997
      $region72: #{compress_forward.4} parent=63 // pred_fallthru
        _
    $region64: #{compress_forward.4} parent=5 // pred_fallthru
      _
  $region6: #{compress_forward.4} parent=0 // loop_footer
    %s20 = sadd.s32 1, %s16
  $region7: #{compress_forward.4} parent=0 // loop_footer_branch
    %15 = sbr.rel target = $region3
  $region8: #{compress_forward.4} parent=0 // loop_exit
    _

</llo_original>
